<compile_context>
chip_gen: v5e
topology: v5e:2x2
jax: 0.10.0
libtpu: 0.0.40
codegen_flags: <defaults>
</compile_context>

<pallas_src>
import functools
import math

import jax
import jax.numpy as jnp
from jax.experimental import pallas as pl
from jax.experimental.pallas import tpu as pltpu

BN_EPS = 1e-5
LEAKY = 0.1
ACT_DTYPE = jnp.bfloat16   # inter-layer activations + weights (MXU bf16)
FUSE_M_CAP = 2048          # fuse matmul+BN+act into one pass when M fits one tile
TM_CAP = 512               # matmul M tile
TM_STREAM_CAP = 1024       # streaming (affine) pass M tile
TK_CAP = 1024              # max K tile


def _vmem_limit_bytes():
    # Chip-aware scoped-VMEM budget: ~3/4 of physical (v5e/v6e: 128 MiB,
    # v7x: 64 MiB per TC), conservatively capped; safe fallback if query fails.
    try:
        cap = pltpu.get_tpu_info().vmem_capacity_bytes
        return int(min(cap * 3 // 4, 100 * 1024 * 1024))
    except Exception:
        return 48 * 1024 * 1024


VMEM_LIMIT = _vmem_limit_bytes()


# --------------------------- tile-size selection ---------------------------
def _pick_tm(m, cap=TM_CAP):
    if m <= cap:
        return m                                   # full-extent block
    for t in range(cap - cap % 8, 7, -8):
        if m % t == 0:
            return t
    return m                                       # pathological M: single tile


def _pick_tn(cout):
    if cout <= 128:
        return cout                                # full-extent (32 / 64 / 128)
    if cout % 256 == 0 and cout >= 512:
        return 256                                 # 256-wide MXU, >=2 parallel N blocks
    if cout % 128 == 0:
        return 128
    return cout


def _pick_tn_stream(cout):
    if cout <= 512:
        return cout                                # widest lane-dense block
    for t in (512, 256, 128):
        if cout % t == 0:
            return t
    return cout


def _pick_tk(k):
    if k % 128 != 0 or k <= TK_CAP:
        return k                                   # full-K (27 / 288 / 576 / <=1024)
    for t in range(TK_CAP, 127, -128):
        if k % t == 0:
            return t
    return k


# ----------------------------- Pallas kernels ------------------------------
def _mm_bn_act_kernel(a_ref, w_ref, g_ref, b_ref, o_ref, acc_ref):
    """Fused matmul -> exact batch-norm -> LeakyReLU; whole M resident (nm == 1)."""
    k = pl.program_id(1)

    @pl.when(k == 0)
    def _():
        acc_ref[...] = jnp.zeros_like(acc_ref)

    acc_ref[...] += jnp.dot(a_ref[...], w_ref[...],
                            preferred_element_type=jnp.float32)

    @pl.when(k == pl.num_programs(1) - 1)
    def _():
        y = acc_ref[...]
        mean = jnp.mean(y, axis=0, keepdims=True)
        c = y - mean
        var = jnp.mean(c * c, axis=0, keepdims=True)    # centered: no cancellation
        z = c * (g_ref[...] * jax.lax.rsqrt(var + BN_EPS)) + b_ref[...]
        o_ref[...] = jnp.where(z >= 0, z, LEAKY * z).astype(o_ref.dtype)


def _mm_bn_act_res_kernel(a_ref, w_ref, g_ref, b_ref, r_ref, o_ref, acc_ref):
    k = pl.program_id(1)

    @pl.when(k == 0)
    def _():
        acc_ref[...] = jnp.zeros_like(acc_ref)

    acc_ref[...] += jnp.dot(a_ref[...], w_ref[...],
                            preferred_element_type=jnp.float32)

    @pl.when(k == pl.num_programs(1) - 1)
    def _():
        y = acc_ref[...]
        mean = jnp.mean(y, axis=0, keepdims=True)
        c = y - mean
        var = jnp.mean(c * c, axis=0, keepdims=True)
        z = c * (g_ref[...] * jax.lax.rsqrt(var + BN_EPS)) + b_ref[...]
        z = jnp.where(z >= 0, z, LEAKY * z) + r_ref[...].astype(jnp.float32)
        o_ref[...] = z.astype(o_ref.dtype)


def _mm_stats_kernel(a_ref, w_ref, y_ref, s_ref, q_ref, acc_ref):
    """Large-M path: tiled matmul, bf16 pre-BN output + per-tile channel stats."""
    k = pl.program_id(2)

    @pl.when(k == 0)
    def _():
        acc_ref[...] = jnp.zeros_like(acc_ref)

    acc_ref[...] += jnp.dot(a_ref[...], w_ref[...],
                            preferred_element_type=jnp.float32)

    @pl.when(k == pl.num_programs(2) - 1)
    def _():
        y = acc_ref[...]
        y_ref[...] = y.astype(y_ref.dtype)                       # bf16 intermediate
        s_ref[...] = jnp.sum(y, axis=0, keepdims=True).reshape(s_ref.shape)
        q_ref[...] = jnp.sum(y * y, axis=0, keepdims=True).reshape(q_ref.shape)


def _mm_bias_kernel(a_ref, w_ref, b_ref, o_ref, acc_ref):
    k = pl.program_id(2)

    @pl.when(k == 0)
    def _():
        acc_ref[...] = jnp.zeros_like(acc_ref)

    acc_ref[...] += jnp.dot(a_ref[...], w_ref[...],
                            preferred_element_type=jnp.float32)

    @pl.when(k == pl.num_programs(2) - 1)
    def _():
        o_ref[...] = (acc_ref[...] + b_ref[...]).astype(o_ref.dtype)


def _affine_act_kernel(y_ref, sc_ref, sh_ref, o_ref):
    y = y_ref[...].astype(jnp.float32) * sc_ref[...] + sh_ref[...]
    o_ref[...] = jnp.where(y >= 0, y, LEAKY * y).astype(o_ref.dtype)


def _affine_act_res_kernel(y_ref, sc_ref, sh_ref, r_ref, o_ref):
    y = y_ref[...].astype(jnp.float32) * sc_ref[...] + sh_ref[...]
    y = jnp.where(y >= 0, y, LEAKY * y) + r_ref[...].astype(jnp.float32)
    o_ref[...] = y.astype(o_ref.dtype)


# ------------------------------ kernel callers ------------------------------
def _matmul_bn_act_fused(a, w, gamma, beta, residual=None):
    M, K = a.shape
    Cout = w.shape[1]
    tk, tn = _pick_tk(K), _pick_tn(Cout)
    nk, nn = K // tk, Cout // tn
    g = gamma.reshape(1, Cout).astype(jnp.float32)
    b = beta.reshape(1, Cout).astype(jnp.float32)
    in_specs = [pl.BlockSpec((M, tk), lambda n, k: (0, k)),
                pl.BlockSpec((tk, tn), lambda n, k: (k, n)),
                pl.BlockSpec((1, tn), lambda n, k: (0, n)),
                pl.BlockSpec((1, tn), lambda n, k: (0, n))]
    args = [a, w, g, b]
    kernel = _mm_bn_act_kernel
    if residual is not None:
        in_specs.append(pl.BlockSpec((M, tn), lambda n, k: (0, n)))
        args.append(residual)
        kernel = _mm_bn_act_res_kernel
    return pl.pallas_call(
        kernel,
        out_shape=jax.ShapeDtypeStruct((M, Cout), ACT_DTYPE),
        grid=(nn, nk),
        in_specs=in_specs,
        out_specs=pl.BlockSpec((M, tn), lambda n, k: (0, n)),
        scratch_shapes=[pltpu.VMEM((M, tn), jnp.float32)],
        compiler_params=pltpu.CompilerParams(
            dimension_semantics=("parallel", "arbitrary"),
            vmem_limit_bytes=VMEM_LIMIT),
    )(*args)


def _matmul_stats(a, w):
    M, K = a.shape
    Cout = w.shape[1]
    tm, tk, tn = _pick_tm(M), _pick_tk(K), _pick_tn(Cout)
    nm, nk, nn = M // tm, K // tk, Cout // tn
    y, s, q = pl.pallas_call(
        _mm_stats_kernel,
        out_shape=(jax.ShapeDtypeStruct((M, Cout), ACT_DTYPE),
                   jax.ShapeDtypeStruct((nm, 1, Cout), jnp.float32),
                   jax.ShapeDtypeStruct((nm, 1, Cout), jnp.float32)),
        grid=(nm, nn, nk),
        in_specs=[pl.BlockSpec((tm, tk), lambda m, n, k: (m, k)),
                  pl.BlockSpec((tk, tn), lambda m, n, k: (k, n))],
        out_specs=(pl.BlockSpec((tm, tn), lambda m, n, k: (m, n)),
                   pl.BlockSpec((1, 1, tn), lambda m, n, k: (m, 0, n)),
                   pl.BlockSpec((1, 1, tn), lambda m, n, k: (m, 0, n))),
        scratch_shapes=[pltpu.VMEM((tm, tn), jnp.float32)],
        compiler_params=pltpu.CompilerParams(
            dimension_semantics=("parallel", "parallel", "arbitrary"),
            vmem_limit_bytes=VMEM_LIMIT),
    )(a, w)
    return y, jnp.sum(s, axis=(0, 1)), jnp.sum(q, axis=(0, 1))   # exact (Cout,) sums


def _affine_act(y, scale, shift, residual=None):
    M, Cout = y.shape
    tm, tn = _pick_tm(M, cap=TM_STREAM_CAP), _pick_tn_stream(Cout)
    nm, nn = M // tm, Cout // tn
    args = [y, scale, shift]
    in_specs = [pl.BlockSpec((tm, tn), lambda i, j: (i, j)),
                pl.BlockSpec((1, tn), lambda i, j: (0, j)),
                pl.BlockSpec((1, tn), lambda i, j: (0, j))]
    kernel = _affine_act_kernel
    if residual is not None:
        args.append(residual)
        in_specs.append(pl.BlockSpec((tm, tn), lambda i, j: (i, j)))
        kernel = _affine_act_res_kernel
    return pl.pallas_call(
        kernel,
        out_shape=jax.ShapeDtypeStruct((M, Cout), ACT_DTYPE),
        grid=(nm, nn),
        in_specs=in_specs,
        out_specs=pl.BlockSpec((tm, tn), lambda i, j: (i, j)),
        compiler_params=pltpu.CompilerParams(
            dimension_semantics=("parallel", "parallel"),
            vmem_limit_bytes=VMEM_LIMIT),
    )(*args)


def _matmul_bias(a, w, bias):
    M, K = a.shape
    Cout = w.shape[1]
    tm, tk, tn = _pick_tm(M), _pick_tk(K), _pick_tn(Cout)
    nm, nk, nn = M // tm, K // tk, Cout // tn
    return pl.pallas_call(
        _mm_bias_kernel,
        out_shape=jax.ShapeDtypeStruct((M, Cout), jnp.float32),
        grid=(nm, nn, nk),
        in_specs=[pl.BlockSpec((tm, tk), lambda m, n, k: (m, k)),
                  pl.BlockSpec((tk, tn), lambda m, n, k: (k, n)),
                  pl.BlockSpec((1, tn), lambda m, n, k: (0, n))],
        out_specs=pl.BlockSpec((tm, tn), lambda m, n, k: (m, n)),
        scratch_shapes=[pltpu.VMEM((tm, tn), jnp.float32)],
        compiler_params=pltpu.CompilerParams(
            dimension_semantics=("parallel", "parallel", "arbitrary"),
            vmem_limit_bytes=VMEM_LIMIT),
    )(a, w, bias.reshape(1, Cout).astype(jnp.float32))


# ------------------------------ JAX glue ------------------------------------
def _im2col(x, k, stride, pad):
    """NHWC -> (N*Ho*Wo, k*k*C) patch matrix (tap-major, channel-minor)."""
    N, H, W, C = x.shape
    Ho = (H + 2 * pad - k) // stride + 1
    Wo = (W + 2 * pad - k) // stride + 1
    if k == 1 and stride == 1 and pad == 0:
        return x.reshape(N * H * W, C), Ho, Wo   # free contiguous reshape
    # TODO(synk): 3x3 convs still materialize the 9x patch matrix in bf16; folding
    # the taps into shifted-window reads inside the kernel needs element-offset
    # index maps that violate the (8,128) block rule at odd spatial sizes (13/26).
    xp = jnp.pad(x, ((0, 0), (pad, pad), (pad, pad), (0, 0)))
    pieces = [xp[:, i:i + stride * Ho:stride, j:j + stride * Wo:stride, :]
              for i in range(k) for j in range(k)]
    p = jnp.stack(pieces, axis=3)                # (N, Ho, Wo, k*k, C)
    return p.reshape(N * Ho * Wo, k * k * C), Ho, Wo


def _conv_bn_core(a, w, gamma, beta, residual2d):
    M, Cout = a.shape[0], w.shape[1]
    if M <= FUSE_M_CAP:
        # Single fused pass: matmul + exact batch-stats BN + LeakyReLU (+ residual).
        return _matmul_bn_act_fused(a, w, gamma, beta, residual=residual2d)
    # Large-M two-pass path: bf16 intermediate + split (sum, sumsq) stats.
    y, s, q = _matmul_stats(a, w)
    mean = s / M                                        # exact batch stats (train mode)
    var = jnp.maximum(q / M - mean * mean, 0.0)
    scale = gamma * jax.lax.rsqrt(var + BN_EPS)
    shift = beta - mean * scale
    return _affine_act(y, scale.reshape(1, Cout).astype(jnp.float32),
                       shift.reshape(1, Cout).astype(jnp.float32),
                       residual=residual2d)


@functools.partial(jax.jit, static_argnames=("ksize", "stride", "pad"))
def conv_bn_leaky(x, w, gamma, beta, *, ksize, stride, pad):
    N = x.shape[0]
    a, Ho, Wo = _im2col(x, ksize, stride, pad)
    out = _conv_bn_core(a, w, gamma, beta, None)
    return out.reshape(N, Ho, Wo, w.shape[1])


@functools.partial(jax.jit, static_argnames=("ksize", "stride", "pad"))
def conv_bn_leaky_res(x, w, gamma, beta, residual, *, ksize, stride, pad):
    N = x.shape[0]
    a, Ho, Wo = _im2col(x, ksize, stride, pad)
    M, Cout = a.shape[0], w.shape[1]
    out = _conv_bn_core(a, w, gamma, beta, residual.reshape(M, Cout))
    return out.reshape(N, Ho, Wo, Cout)


@functools.partial(jax.jit, static_argnames=("ksize", "stride", "pad", "cout_real"))
def conv_bias(x, w, bias, *, ksize, stride, pad, cout_real):
    N = x.shape[0]
    a, Ho, Wo = _im2col(x, ksize, stride, pad)
    out = _matmul_bias(a, w, bias)                  # lane-dense (padded) head output
    return out[:, :cout_real].reshape(N, Ho, Wo, cout_real)


@jax.jit
def _upsample_cat(x, route):
    # TODO(synk): nearest-2x + concat could be folded into the following 1x1 conv
    # (1x1 conv commutes with nearest upsample); kept as XLA glue for now.
    x = jnp.repeat(jnp.repeat(x, 2, axis=1), 2, axis=2)
    return jnp.concatenate([x, route], axis=-1)      # torch.cat(dim=1) order


# ------------------------------ model params --------------------------------
def _round_up(v, m):
    return (v + m - 1) // m * m


def _make_cnn(key, cin, cout, k, stride, pad, bn_act=True):
    k1, k2, k3 = jax.random.split(key, 3)
    w = jax.random.normal(k1, (k, k, cin, cout), jnp.float32) / math.sqrt(k * k * cin)
    w2d = w.reshape(k * k * cin, cout)
    p = dict(kind="cnn", k=k, stride=stride, pad=pad, bn_act=bn_act, cout=cout)
    if bn_act:  # conv has no bias when followed by BN + LeakyReLU
        p["w"] = w2d.astype(ACT_DTYPE)
        p["gamma"] = 1.0 + 0.1 * jax.random.normal(k2, (cout,), jnp.float32)
        p["beta"] = 0.1 * jax.random.normal(k3, (cout,), jnp.float32)
    else:
        cpad = _round_up(cout, 128)                 # 75 -> 128: unmasked lane stores
        p["w"] = jnp.pad(w2d, ((0, 0), (0, cpad - cout))).astype(ACT_DTYPE)
        p["bias"] = jnp.pad(0.1 * jax.random.normal(k2, (cout,), jnp.float32),
                            (0, cpad - cout))
    return p


def _apply_cnn(x, p, residual=None):
    if p["bn_act"]:
        if residual is not None:
            return conv_bn_leaky_res(x, p["w"], p["gamma"], p["beta"], residual,
                                     ksize=p["k"], stride=p["stride"], pad=p["pad"])
        return conv_bn_leaky(x, p["w"], p["gamma"], p["beta"],
                             ksize=p["k"], stride=p["stride"], pad=p["pad"])
    return conv_bias(x, p["w"], p["bias"], ksize=p["k"], stride=p["stride"],
                     pad=p["pad"], cout_real=p["cout"])


def build_yolov3_params(key, in_channels=3, num_classes=20):
    keys = iter(jax.random.split(key, 256))

    def cnn(cin, cout, k, s, p, bn_act=True):
        return _make_cnn(next(keys), cin, cout, k, s, p, bn_act)

    def res(channels, use_residual=True, num_repeats=1):
        blocks = []
        for _ in range(num_repeats):
            blocks.append((cnn(channels, channels // 2, 1, 1, 0),
                           cnn(channels // 2, channels, 3, 1, 1)))
        return dict(kind="res", use_residual=use_residual,
                    num_repeats=num_repeats, blocks=blocks)

    def scale(cin):
        return dict(kind="scale", num_classes=num_classes,
                    conv1=cnn(cin, 2 * cin, 3, 1, 1),
                    conv2=cnn(2 * cin, (num_classes + 5) * 3, 1, 1, 0,
                              bn_act=False))

    up = dict(kind="up")
    return [
        cnn(in_channels, 32, 3, 1, 1),
        cnn(32, 64, 3, 2, 1),
        res(64, num_repeats=1),
        cnn(64, 128, 3, 2, 1),
        res(128, num_repeats=2),
        cnn(128, 256, 3, 2, 1),
        res(256, num_repeats=8),
        cnn(256, 512, 3, 2, 1),
        res(512, num_repeats=8),
        cnn(512, 1024, 3, 2, 1),
        res(1024, num_repeats=4),
        cnn(1024, 512, 1, 1, 0),
        cnn(512, 1024, 3, 1, 1),
        res(1024, use_residual=False, num_repeats=1),
        cnn(1024, 512, 1, 1, 0),
        scale(512),
        cnn(512, 256, 1, 1, 0),
        up,
        cnn(768, 256, 1, 1, 0),
        cnn(256, 512, 3, 1, 1),
        res(512, use_residual=False, num_repeats=1),
        cnn(512, 256, 1, 1, 0),
        scale(256),
        cnn(256, 128, 1, 1, 0),
        up,
        cnn(384, 128, 1, 1, 0),
        cnn(128, 256, 3, 1, 1),
        res(256, use_residual=False, num_repeats=1),
        cnn(256, 128, 1, 1, 0),
        scale(128),
    ]


def yolov3_forward(layers, x_nchw):
    # NOTE: the reference forward has debug print() calls; omitted.
    x = jnp.transpose(x_nchw, (0, 2, 3, 1)).astype(ACT_DTYPE)   # NCHW -> NHWC bf16
    outputs = []
    routes = []
    for layer in layers:
        kind = layer["kind"]
        if kind == "scale":
            h = _apply_cnn(x, layer["conv1"])
            h = _apply_cnn(h, layer["conv2"])
            N, H, W, _ = h.shape
            nc5 = layer["num_classes"] + 5
            outputs.append(h.reshape(N, H, W, 3, nc5).transpose(0, 3, 1, 2, 4))
            continue
        if kind == "cnn":
            x = _apply_cnn(x, layer)
        elif kind == "res":
            for c1, c2 in layer["blocks"]:
                h = _apply_cnn(x, c1)
                if layer["use_residual"]:
                    x = _apply_cnn(h, c2, residual=x)   # x + block(x), fused add
                else:
                    x = _apply_cnn(h, c2)
            if layer["num_repeats"] == 8:
                routes.append(x)
        elif kind == "up":
            x = _upsample_cat(x, routes.pop())          # nearest 2x + cat(dim=1)
    return outputs


if __name__ == "__main__":
    key = jax.random.PRNGKey(0)
    pkey, xkey, rkey = jax.random.split(key, 3)
    layers = build_yolov3_params(pkey, in_channels=3, num_classes=20)

    # Small input consistent with the module: NCHW, spatial divisible by 32.
    x = jax.random.normal(xkey, (2, 3, 64, 64), jnp.float32)
    outs = yolov3_forward(layers, x)
    outs = jax.block_until_ready(outs)
    expected = [(2, 3, 2, 2, 25), (2, 3, 4, 4, 25), (2, 3, 8, 8, 25)]
    assert [tuple(o.shape) for o in outs] == expected, \
        [tuple(o.shape) for o in outs]
    assert all(bool(jnp.all(jnp.isfinite(o))) for o in outs)

    # Exercise the large-M two-pass path with a fused residual (not reached by
    # the small forward above, where every residual layer fuses in pass 1).
    k1, k2, k3, k4 = jax.random.split(rkey, 4)
    xb = jax.random.normal(k1, (1, 64, 64, 64), jnp.float32).astype(ACT_DTYPE)
    wb = (jax.random.normal(k2, (3 * 3 * 64, 64), jnp.float32)
          / math.sqrt(3 * 3 * 64)).astype(ACT_DTYPE)
    gb = 1.0 + 0.1 * jax.random.normal(k3, (64,), jnp.float32)
    bb = 0.1 * jax.random.normal(k4, (64,), jnp.float32)
    yb = conv_bn_leaky_res(xb, wb, gb, bb, xb, ksize=3, stride=1, pad=1)
    yb = jax.block_until_ready(yb)
    assert yb.shape == (1, 64, 64, 64) and bool(jnp.all(jnp.isfinite(yb)))

    print("KERNEL_OK")
</pallas_src>

<mosaic_0001>
module attributes {stable_mosaic.version = 11 : i64} {
  func.func @_mm_stats_kernel(%arg0: i32, %arg1: i32, %arg2: i32, %arg3: memref<512x27xbf16, #tpu.memory_space<vmem>>, %arg4: memref<27x32xbf16, #tpu.memory_space<vmem>>, %arg5: memref<512x32xbf16, #tpu.memory_space<vmem>>, %arg6: memref<1x1x32xf32, #tpu.memory_space<vmem>>, %arg7: memref<1x1x32xf32, #tpu.memory_space<vmem>>, %arg8: memref<512x32xf32, #tpu.memory_space<vmem>>) attributes {dimension_semantics = [#tpu.dimension_semantics<parallel>, #tpu.dimension_semantics<parallel>, #tpu.dimension_semantics<arbitrary>], iteration_bounds = array<i64: 16, 1, 1>, scalar_prefetch = 0 : i64, scratch_operands = 1 : i64, tpu.core_type = #tpu.core_type<tc>, window_params = [{transform_indices = @transform_0, window_bounds = array<i64: 512, 27>}, {transform_indices = @transform_1, window_bounds = array<i64: 27, 32>}, {transform_indices = @transform_2, window_bounds = array<i64: 512, 32>}, {transform_indices = @transform_3, window_bounds = array<i64: 1, 1, 32>}, {transform_indices = @transform_4, window_bounds = array<i64: 1, 1, 32>}]} {
    %c0_i32 = arith.constant 0 : i32
    %0 = arith.cmpi eq, %arg2, %c0_i32 : i32
    %1 = arith.extui %0 : i1 to i32
    %c0_i32_0 = arith.constant 0 : i32
    %2 = arith.cmpi ne, %1, %c0_i32_0 : i32
    scf.if %2 {
      %cst_10 = arith.constant 0.000000e+00 : f32
      %12 = vector.broadcast %cst_10 : f32 to vector<512x32xf32>
      %c0_11 = arith.constant 0 : index
      %c0_12 = arith.constant 0 : index
      %13 = vector.load %arg8[%c0_11, %c0_12] : memref<512x32xf32, #tpu.memory_space<vmem>>, vector<512x32xf32>
      tpu.vector_store %arg8[%c0_11, %c0_12], %12 {strides = array<i32>} : memref<512x32xf32, #tpu.memory_space<vmem>>, vector<512x32xf32>,
    } else {
    }
    %c0 = arith.constant 0 : index
    %c0_1 = arith.constant 0 : index
    %3 = vector.load %arg8[%c0, %c0_1] : memref<512x32xf32, #tpu.memory_space<vmem>>, vector<512x32xf32>
    %c0_2 = arith.constant 0 : index
    %c0_3 = arith.constant 0 : index
    %4 = vector.load %arg3[%c0_2, %c0_3] : memref<512x27xbf16, #tpu.memory_space<vmem>>, vector<512x27xbf16>
    %c0_4 = arith.constant 0 : index
    %c0_5 = arith.constant 0 : index
    %5 = vector.load %arg4[%c0_4, %c0_5] : memref<27x32xbf16, #tpu.memory_space<vmem>>, vector<27x32xbf16>
    %cst = arith.constant dense<0.000000e+00> : vector<512x32xf32>
    %6 = tpu.matmul %4, %5, %cst {dimension_numbers = #tpu.dot_dimension_numbers<[1], [0], [0], [1], [0, 0, 1, 1], [], []>} : vector<512x27xbf16>, vector<27x32xbf16>, vector<512x32xf32> -> vector<512x32xf32>
    %7 = arith.addf %3, %6 : vector<512x32xf32>
    %c0_6 = arith.constant 0 : index
    %c0_7 = arith.constant 0 : index
    %8 = vector.load %arg8[%c0_6, %c0_7] : memref<512x32xf32, #tpu.memory_space<vmem>>, vector<512x32xf32>
    tpu.vector_store %arg8[%c0_6, %c0_7], %7 {strides = array<i32>} : memref<512x32xf32, #tpu.memory_space<vmem>>, vector<512x32xf32>,
    %c0_i32_8 = arith.constant 0 : i32
    %9 = arith.cmpi eq, %arg2, %c0_i32_8 : i32
    %10 = arith.extui %9 : i1 to i32
    %c0_i32_9 = arith.constant 0 : i32
    %11 = arith.cmpi ne, %10, %c0_i32_9 : i32
    scf.if %11 {
      %c0_10 = arith.constant 0 : index
      %c0_11 = arith.constant 0 : index
      %12 = vector.load %arg8[%c0_10, %c0_11] : memref<512x32xf32, #tpu.memory_space<vmem>>, vector<512x32xf32>
      %13 = arith.truncf %12 : vector<512x32xf32> to vector<512x32xbf16>
      %c0_12 = arith.constant 0 : index
      %c0_13 = arith.constant 0 : index
      %14 = vector.load %arg5[%c0_12, %c0_13] : memref<512x32xbf16, #tpu.memory_space<vmem>>, vector<512x32xbf16>
      tpu.vector_store %arg5[%c0_12, %c0_13], %13 {strides = array<i32>} : memref<512x32xbf16, #tpu.memory_space<vmem>>, vector<512x32xbf16>,
      %cst_14 = arith.constant dense<0.000000e+00> : vector<32xf32>
      %15 = vector.multi_reduction <add>, %12, %cst_14 [0] : vector<512x32xf32> to vector<32xf32>
      %16 = vector.shape_cast %15 : vector<32xf32> to vector<1x32xf32>
      %17 = vector.shape_cast %16 : vector<1x32xf32> to vector<1x1x32xf32>
      %c0_15 = arith.constant 0 : index
      %c0_16 = arith.constant 0 : index
      %c0_17 = arith.constant 0 : index
      %18 = vector.load %arg6[%c0_15, %c0_16, %c0_17] : memref<1x1x32xf32, #tpu.memory_space<vmem>>, vector<1x1x32xf32>
      tpu.vector_store %arg6[%c0_15, %c0_16, %c0_17], %17 {strides = array<i32>} : memref<1x1x32xf32, #tpu.memory_space<vmem>>, vector<1x1x32xf32>,
      %19 = arith.mulf %12, %12 : vector<512x32xf32>
      %cst_18 = arith.constant dense<0.000000e+00> : vector<32xf32>
      %20 = vector.multi_reduction <add>, %19, %cst_18 [0] : vector<512x32xf32> to vector<32xf32>
      %21 = vector.shape_cast %20 : vector<32xf32> to vector<1x32xf32>
      %22 = vector.shape_cast %21 : vector<1x32xf32> to vector<1x1x32xf32>
      %c0_19 = arith.constant 0 : index
      %c0_20 = arith.constant 0 : index
      %c0_21 = arith.constant 0 : index
      %23 = vector.load %arg7[%c0_19, %c0_20, %c0_21] : memref<1x1x32xf32, #tpu.memory_space<vmem>>, vector<1x1x32xf32>
      tpu.vector_store %arg7[%c0_19, %c0_20, %c0_21], %22 {strides = array<i32>} : memref<1x1x32xf32, #tpu.memory_space<vmem>>, vector<1x1x32xf32>,
    } else {
    }
    return
  }
  func.func @transform_0(%arg0: i32, %arg1: i32, %arg2: i32) -> (i32, i32) {
    %c0_i32 = arith.constant 0 : i32
    return %arg0, %arg2 : i32, i32
  }
  func.func @transform_1(%arg0: i32, %arg1: i32, %arg2: i32) -> (i32, i32) {
    %c0_i32 = arith.constant 0 : i32
    return %arg2, %arg1 : i32, i32
  }
  func.func @transform_2(%arg0: i32, %arg1: i32, %arg2: i32) -> (i32, i32) {
    %c0_i32 = arith.constant 0 : i32
    return %arg0, %arg1 : i32, i32
  }
  func.func @transform_3(%arg0: i32, %arg1: i32, %arg2: i32) -> (i32, i32, i32) {
    %c0_i32 = arith.constant 0 : i32
    %c0_i32_0 = arith.constant 0 : i32
    return %arg0, %c0_i32, %arg1 : i32, i32, i32
  }
  func.func @transform_4(%arg0: i32, %arg1: i32, %arg2: i32) -> (i32, i32, i32) {
    %c0_i32 = arith.constant 0 : i32
    %c0_i32_0 = arith.constant 0 : i32
    return %arg0, %c0_i32, %arg1 : i32, i32, i32
  }
}

module attributes {stable_mosaic.version = 11 : i64} {
  func.func @_affine_act_kernel(%arg0: i32, %arg1: i32, %arg2: memref<1024x32xbf16, #tpu.memory_space<vmem>>, %arg3: memref<1x32xf32, #tpu.memory_space<vmem>>, %arg4: memref<1x32xf32, #tpu.memory_space<vmem>>, %arg5: memref<1024x32xbf16, #tpu.memory_space<vmem>>) attributes {dimension_semantics = [#tpu.dimension_semantics<parallel>, #tpu.dimension_semantics<parallel>], iteration_bounds = array<i64: 8, 1>, scalar_prefetch = 0 : i64, scratch_operands = 0 : i64, tpu.core_type = #tpu.core_type<tc>, window_params = [{transform_indices = @transform_0, window_bounds = array<i64: 1024, 32>}, {transform_indices = @transform_1, window_bounds = array<i64: 1, 32>}, {transform_indices = @transform_2, window_bounds = array<i64: 1, 32>}, {transform_indices = @transform_3, window_bounds = array<i64: 1024, 32>}]} {
    %c0 = arith.constant 0 : index
    %c0_0 = arith.constant 0 : index
    %0 = vector.load %arg2[%c0, %c0_0] : memref<1024x32xbf16, #tpu.memory_space<vmem>>, vector<1024x32xbf16>
    %1 = arith.extf %0 : vector<1024x32xbf16> to vector<1024x32xf32>
    %c0_1 = arith.constant 0 : index
    %c0_2 = arith.constant 0 : index
    %2 = vector.load %arg3[%c0_1, %c0_2] : memref<1x32xf32, #tpu.memory_space<vmem>>, vector<1x32xf32>
    %3 = vector.broadcast %2 : vector<1x32xf32> to vector<1024x32xf32>
    %4 = arith.mulf %1, %3 : vector<1024x32xf32>
    %c0_3 = arith.constant 0 : index
    %c0_4 = arith.constant 0 : index
    %5 = vector.load %arg4[%c0_3, %c0_4] : memref<1x32xf32, #tpu.memory_space<vmem>>, vector<1x32xf32>
    %6 = vector.broadcast %5 : vector<1x32xf32> to vector<1024x32xf32>
    %7 = arith.addf %4, %6 : vector<1024x32xf32>
    %cst = arith.constant 0.000000e+00 : f32
    %8 = vector.broadcast %cst : f32 to vector<1024x32xf32>
    %9 = arith.cmpf oge, %7, %8 : vector<1024x32xf32>
    %cst_5 = arith.constant 1.000000e-01 : f32
    %10 = vector.broadcast %cst_5 : f32 to vector<1024x32xf32>
    %11 = arith.mulf %10, %7 : vector<1024x32xf32>
    %12 = arith.select %9, %7, %11 : vector<1024x32xi1>, vector<1024x32xf32>
    %13 = arith.truncf %12 : vector<1024x32xf32> to vector<1024x32xbf16>
    %c0_6 = arith.constant 0 : index
    %c0_7 = arith.constant 0 : index
    %14 = vector.load %arg5[%c0_6, %c0_7] : memref<1024x32xbf16, #tpu.memory_space<vmem>>, vector<1024x32xbf16>
    tpu.vector_store %arg5[%c0_6, %c0_7], %13 {strides = array<i32>} : memref<1024x32xbf16, #tpu.memory_space<vmem>>, vector<1024x32xbf16>,
    return
  }
  func.func @transform_0(%arg0: i32, %arg1: i32) -> (i32, i32) {
    %c0_i32 = arith.constant 0 : i32
    return %arg0, %arg1 : i32, i32
  }
  func.func @transform_1(%arg0: i32, %arg1: i32) -> (i32, i32) {
    %c0_i32 = arith.constant 0 : i32
    %c0_i32_0 = arith.constant 0 : i32
    return %c0_i32, %arg1 : i32, i32
  }
  func.func @transform_2(%arg0: i32, %arg1: i32) -> (i32, i32) {
    %c0_i32 = arith.constant 0 : i32
    %c0_i32_0 = arith.constant 0 : i32
    return %c0_i32, %arg1 : i32, i32
  }
  func.func @transform_3(%arg0: i32, %arg1: i32) -> (i32, i32) {
    %c0_i32 = arith.constant 0 : i32
    return %arg0, %arg1 : i32, i32
  }
}

</mosaic_0001>

<llo_original>
// kernel: conv_bn_leaky.2
$region0: #{conv_bn_leaky.2}
  #allocation0 [shape = 'u32[]', space=smem, size = 0x4, offset = 0x4, fixed_abs, tag = 'smem constant byte address 0x4 - core index']
  #allocation1 [shape = 'u32[72,128]{1,0:T(1,128)}', space=vmem, size = 0x9000, scoped, tag = 'internal scratch']
  #allocation2 [shape = 'f32[512,32]{1,0:T(8,128)}', space=vmem, size = 0x40000, scoped, tag = 'scratch operand']
  %s0 = inlined_call_operand.vmem [shape: bf16[8192,27], index: 0, kind: input, shape index: {}]
  %s1 = inlined_call_operand.vmem [shape: bf16[27,32], index: 1, kind: input, shape index: {}]
  %s2 = inlined_call_operand.vmem [shape: bf16[8192,32], index: 2, kind: output, shape index: {0}]
  %s3 = inlined_call_operand.vmem [shape: f32[16,1,32], index: 3, kind: output, shape index: {1}]
  %s4 = inlined_call_operand.vmem [shape: f32[16,1,32], index: 4, kind: output, shape index: {2}]
  %5 = xla_tuple %s2, %s3, %s4
  %s6 = sld [smem:[#allocation0]]
  $region65: #{conv_bn_leaky.2} parent=0
    _
  %s8 = ssub.s32 1, %s6
  %s9 = scalar_select 0, %s8, %s6
  loop: start=0, step=1, limit=18
  $region2: #{conv_bn_leaky.2} parent=0 // loop_pre_header
    _
  $region3: #{conv_bn_leaky.2} parent=0 // loop_header
    %s11 = sphi 0, %s15
    %p12 = scmp.ge.s32.totalorder %s11, 18
    %s18 = sphi 0, %s37
    %s19 = sphi 0, %s33
    %s20 = sphi 0, %s29
    %s21 = sphi 0, %s18
    %s22 = sphi 0, %s19
    %s23 = sphi 0, %s20
    %s24 = sphi 0, %s21
    %s25 = sphi 0, %s22
    %s26 = sphi 0, %s23
    %s42 = sphi 0, %s44
    %s45 = sphi 0, %s42
    %s46 = sphi 0, %s45
    %s62 = sphi 0, %s46
    %s70 = sphi 0, %s72
    %s73 = sphi 0, %s70
    %s74 = sphi 0, %s73
    %s90 = sphi 0, %s74
    %s98 = sphi 0, %s100
    %s101 = sphi 0, %s98
    %s102 = sphi 0, %s101
    %s118 = sphi 0, %s102
    %s126 = sphi 0, %s128
    %s129 = sphi 0, %s126
    %s130 = sphi 0, %s129
    %s146 = sphi 0, %s130
    %s154 = sphi 0, %s156
    %s157 = sphi 0, %s154
    %s158 = sphi 0, %s157
    %s174 = sphi 0, %s158
  $region4: #{conv_bn_leaky.2} parent=0 // loop_header_branch
    %14 = sbr.rel (%p12) target = $region8
  $region5: #{conv_bn_leaky.2} parent=0 // loop_body
    %s16 = ssub.s32 %s11, 1
    %s17 = ssub.s32 %s11, 2
    %s27 = sadd.s32 1, %s20
    %p28 = scmp.ge.s32.totalorder %s27, 1
    %s29 = scalar_select %p28, 0, %s27
    %s30 = sadd.s32 1, %s19
    %s31 = scalar_select %p28, %s30, %s19
    %p32 = scmp.ge.s32.totalorder %s31, 1
    %s33 = scalar_select %p32, 0, %s31
    %s34 = sadd.s32 1, %s18
    %s35 = scalar_select %p32, %s34, %s18
    %p36 = scmp.ge.s32.totalorder %s35, 16
    %s37 = scalar_select %p36, 0, %s35
    %s38 = ssub.s32 %s18, %s37
    %s39 = ssub.s32 %s20, %s29
    %s40 = sor.u32 %s38, %s39
    %p41 = scmp.eq.s32.totalorder %s40, 0
    %s43 = sadd.s32 %s42, 1
    %s44 = scalar_select %p41, %s42, %s43
    %p47 = pneg %p41
    %p48 = scmp.eq.s32.totalorder %s11, 15
    %p49 = por %p47, %p48
    %p50 = scmp.ne.s32.totalorder %s42, %s45
    %p51 = scmp.eq.s32.totalorder %s11, 0
    %p52 = por %p50, %p51
    %p53 = scmp.ne.s32.totalorder %s42, %s45
    %p54 = scmp.eq.s32.totalorder %s16, 15
    %p55 = por %p53, %p54
    %p56 = scmp.ne.s32.totalorder %s45, %s46
    %p57 = scmp.eq.s32.totalorder %s16, 0
    %p58 = por %p56, %p57
    %p59 = scmp.ne.s32.totalorder %s45, %s46
    %p60 = scmp.eq.s32.totalorder %s17, 15
    %p61 = por %p59, %p60
    %p63 = scmp.ne.s32.totalorder %s46, %s62
    %p64 = scmp.eq.s32.totalorder %s17, 0
    %p65 = por %p63, %p64
    %s66 = ssub.s32 %s20, %s29
    %s67 = ssub.s32 %s19, %s33
    %s68 = sor.u32 %s66, %s67
    %p69 = scmp.eq.s32.totalorder %s68, 0
    %s71 = sadd.s32 %s70, 1
    %s72 = scalar_select %p69, %s70, %s71
    %p75 = pneg %p69
    %p76 = scmp.eq.s32.totalorder %s11, 15
    %p77 = por %p75, %p76
    %p78 = scmp.ne.s32.totalorder %s70, %s73
    %p79 = scmp.eq.s32.totalorder %s11, 0
    %p80 = por %p78, %p79
    %p81 = scmp.ne.s32.totalorder %s70, %s73
    %p82 = scmp.eq.s32.totalorder %s16, 15
    %p83 = por %p81, %p82
    %p84 = scmp.ne.s32.totalorder %s73, %s74
    %p85 = scmp.eq.s32.totalorder %s16, 0
    %p86 = por %p84, %p85
    %p87 = scmp.ne.s32.totalorder %s73, %s74
    %p88 = scmp.eq.s32.totalorder %s17, 15
    %p89 = por %p87, %p88
    %p91 = scmp.ne.s32.totalorder %s74, %s90
    %p92 = scmp.eq.s32.totalorder %s17, 0
    %p93 = por %p91, %p92
    %s94 = ssub.s32 %s18, %s37
    %s95 = ssub.s32 %s19, %s33
    %s96 = sor.u32 %s94, %s95
    %p97 = scmp.eq.s32.totalorder %s96, 0
    %s99 = sadd.s32 %s98, 1
    %s100 = scalar_select %p97, %s98, %s99
    %p103 = pneg %p97
    %p104 = scmp.eq.s32.totalorder %s11, 15
    %p105 = por %p103, %p104
    %p106 = scmp.ne.s32.totalorder %s98, %s101
    %p107 = scmp.eq.s32.totalorder %s11, 0
    %p108 = por %p106, %p107
    %p109 = scmp.ne.s32.totalorder %s98, %s101
    %p110 = scmp.eq.s32.totalorder %s16, 15
    %p111 = por %p109, %p110
    %p112 = scmp.ne.s32.totalorder %s101, %s102
    %p113 = scmp.eq.s32.totalorder %s16, 0
    %p114 = por %p112, %p113
    %p115 = scmp.ne.s32.totalorder %s101, %s102
    %p116 = scmp.eq.s32.totalorder %s17, 15
    %p117 = por %p115, %p116
    %p119 = scmp.ne.s32.totalorder %s102, %s118
    %p120 = scmp.eq.s32.totalorder %s17, 0
    %p121 = por %p119, %p120
    %s122 = ssub.s32 %s18, %s37
    %s123 = ssub.s32 %s19, %s33
    %s124 = sor.u32 %s122, %s123
    %p125 = scmp.eq.s32.totalorder %s124, 0
    %s127 = sadd.s32 %s126, 1
    %s128 = scalar_select %p125, %s126, %s127
    %p131 = pneg %p125
    %p132 = scmp.eq.s32.totalorder %s11, 15
    %p133 = por %p131, %p132
    %p134 = scmp.ne.s32.totalorder %s126, %s129
    %p135 = scmp.eq.s32.totalorder %s11, 0
    %p136 = por %p134, %p135
    %p137 = scmp.ne.s32.totalorder %s126, %s129
    %p138 = scmp.eq.s32.totalorder %s16, 15
    %p139 = por %p137, %p138
    %p140 = scmp.ne.s32.totalorder %s129, %s130
    %p141 = scmp.eq.s32.totalorder %s16, 0
    %p142 = por %p140, %p141
    %p143 = scmp.ne.s32.totalorder %s129, %s130
    %p144 = scmp.eq.s32.totalorder %s17, 15
    %p145 = por %p143, %p144
    %p147 = scmp.ne.s32.totalorder %s130, %s146
    %p148 = scmp.eq.s32.totalorder %s17, 0
    %p149 = por %p147, %p148
    %s150 = ssub.s32 %s18, %s37
    %s151 = ssub.s32 %s19, %s33
    %s152 = sor.u32 %s150, %s151
    %p153 = scmp.eq.s32.totalorder %s152, 0
    %s155 = sadd.s32 %s154, 1
    %s156 = scalar_select %p153, %s154, %s155
    %p159 = pneg %p153
    %p160 = scmp.eq.s32.totalorder %s11, 15
    %p161 = por %p159, %p160
    %p162 = scmp.ne.s32.totalorder %s154, %s157
    %p163 = scmp.eq.s32.totalorder %s11, 0
    %p164 = por %p162, %p163
    %p165 = scmp.ne.s32.totalorder %s154, %s157
    %p166 = scmp.eq.s32.totalorder %s16, 15
    %p167 = por %p165, %p166
    %p168 = scmp.ne.s32.totalorder %s157, %s158
    %p169 = scmp.eq.s32.totalorder %s16, 0
    %p170 = por %p168, %p169
    %p171 = scmp.ne.s32.totalorder %s157, %s158
    %p172 = scmp.eq.s32.totalorder %s17, 15
    %p173 = por %p171, %p172
    %p175 = scmp.ne.s32.totalorder %s158, %s174
    %p176 = scmp.eq.s32.totalorder %s17, 0
    %p177 = por %p175, %p176
    %p178 = scmp.le.s32.totalorder 1, %s11
    %p179 = scmp.lt.s32.totalorder %s11, 17
    %p180 = pnand %p178, %p179
    %p181 = pneg %p180
    // Predicated region
    $region9: #{conv_bn_leaky.2} parent=5 // pred_check
      _
    $region10: #{conv_bn_leaky.2} parent=5 // pred_check_branch
      %183 = sbr.rel (%p180) target = $region12
    $region11: #{conv_bn_leaky.2} parent=5 // pred_region
      %s184 = ssub.s32 %s11, 1
      // Predicated region
      $region13: #{conv_bn_leaky.2} parent=11 // pred_check
        %p185 = pneg %p86
      $region14: #{conv_bn_leaky.2} parent=11 // pred_check_branch
        %187 = sbr.rel (%p185) target = $region16
      $region15: #{conv_bn_leaky.2} parent=11 // pred_region
        %s188 = smul.u32 4, %s23
        %p189 = scmp.lt.s32.totalorder %s188, 3
        %s190 = scalar_select %p189, %s188, 3
        %p191 = scmp.lt.s32.totalorder %s22, 0
        %s192 = scalar_select %p191, %s22, 0
        %s193 = sadd.s32 %s192, %s190
        %s194 = smul.addr %s193, 4
        %s195 = scalar_lea.vmem %s1, %s194
        %s196 = smul.u32 4, %s23
      $region16: #{conv_bn_leaky.2} parent=11 // pred_fallthru
        _
    $region12: #{conv_bn_leaky.2} parent=5 // pred_fallthru
      _
    %p197 = scmp.lt.s32.totalorder %s11, 16
    // Predicated region
    $region17: #{conv_bn_leaky.2} parent=5 // pred_check
      %p198 = pneg %p197
    $region18: #{conv_bn_leaky.2} parent=5 // pred_check_branch
      %200 = sbr.rel (%p198) target = $region20
    $region19: #{conv_bn_leaky.2} parent=5 // pred_region
      // Predicated region
      $region21: #{conv_bn_leaky.2} parent=19 // pred_check
        %p201 = pneg %p52
      $region22: #{conv_bn_leaky.2} parent=19 // pred_check_branch
        %203 = sbr.rel (%p201) target = $region24
      $region23: #{conv_bn_leaky.2} parent=19 // pred_region
        %s204 = smul.u32 64, %s18
        %p205 = scmp.lt.s32.totalorder %s204, 1023
        %s206 = scalar_select %p205, %s204, 1023
        %p207 = scmp.lt.s32.totalorder %s20, 0
        %s208 = scalar_select %p207, %s20, 0
        %s209 = sadd.s32 %s208, %s206
        %s210 = smul.addr %s209, 4
        %s211 = scalar_lea.vmem %s0, %s210
        %s212 = smul.u32 64, %s18
      $region24: #{conv_bn_leaky.2} parent=19 // pred_fallthru
        _
    $region20: #{conv_bn_leaky.2} parent=5 // pred_fallthru
      _
    %p213 = scmp.le.s32.totalorder 1, %s11
    %p214 = scmp.lt.s32.totalorder %s11, 17
    %p215 = pnand %p213, %p214
    %p216 = pneg %p215
    // Predicated region
    $region25: #{conv_bn_leaky.2} parent=5 // pred_check
      _
    $region26: #{conv_bn_leaky.2} parent=5 // pred_check_branch
      %218 = sbr.rel (%p215) target = $region28
    $region27: #{conv_bn_leaky.2} parent=5 // pred_region
      %s219 = ssub.s32 %s11, 1
      %s220 = smul.u32 64, %s21
      %p221 = scmp.lt.s32.totalorder %s220, 1023
      %s222 = scalar_select %p221, %s220, 1023
      %p223 = scmp.lt.s32.totalorder %s23, 0
      %s224 = scalar_select %p223, %s23, 0
      %s225 = sadd.s32 %s224, %s222
      %s226 = smul.addr %s225, 4
      %s227 = scalar_lea.vmem %s0, %s226
      %p228 = pneg %p58
      %p229 = pneg %p55
      %s230 = smul.u32 4, %s23
      %p231 = scmp.lt.s32.totalorder %s230, 3
      %s232 = scalar_select %p231, %s230, 3
      %p233 = scmp.lt.s32.totalorder %s22, 0
      %s234 = scalar_select %p233, %s22, 0
      %s235 = sadd.s32 %s234, %s232
      %s236 = smul.addr %s235, 4
      %s237 = scalar_lea.vmem %s1, %s236
      %p238 = pneg %p86
      %p239 = pneg %p83
      %p240 = pneg %p114
      %p241 = pneg %p111
      %s242 = smul.u32 64, %s21
      %p243 = scmp.lt.s32.totalorder %s242, 1023
      %s244 = scalar_select %p243, %s242, 1023
      %p245 = scmp.lt.s32.totalorder %s22, 0
      %s246 = scalar_select %p245, %s22, 0
      %s247 = sadd.s32 %s246, %s244
      %s248 = smul.addr %s247, 4
      %s249 = scalar_lea.vmem %s2, %s248
      %p250 = pneg %p142
      %p251 = pneg %p139
      %p252 = scmp.lt.s32.totalorder %s21, 15
      %s253 = scalar_select %p252, %s21, 15
      %p254 = scmp.lt.s32.totalorder %s22, 0
      %s255 = scalar_select %p254, %s22, 0
      %s256 = sadd.s32 %s255, %s253
      %s257 = scalar_lea.vmem %s3, %s256
      %p258 = pneg %p170
      %p259 = pneg %p167
      %p260 = scmp.lt.s32.totalorder %s21, 15
      %s261 = scalar_select %p260, %s21, 15
      %p262 = scmp.lt.s32.totalorder %s22, 0
      %s263 = scalar_select %p262, %s22, 0
      %s264 = sadd.s32 %s263, %s261
      %s265 = scalar_lea.vmem %s4, %s264
      %s266 = smul.u32 64, %s21
      %p267 = scmp.lt.s32.totalorder %s266, 1023
      %s268 = scalar_select %p267, %s266, 1023
      %p269 = scmp.lt.s32.totalorder %s23, 0
      %s270 = scalar_select %p269, %s23, 0
      %s271 = sadd.s32 %s270, %s268
      %s272 = smul.addr %s271, 4
      %s273 = scalar_lea.vmem %s0, %s272
      %s274 = smul.u32 64, %s21
      %s275 = smul.u32 4, %s23
      %p276 = scmp.lt.s32.totalorder %s275, 3
      %s277 = scalar_select %p276, %s275, 3
      %p278 = scmp.lt.s32.totalorder %s22, 0
      %s279 = scalar_select %p278, %s22, 0
      %s280 = sadd.s32 %s279, %s277
      %s281 = smul.addr %s280, 4
      %s282 = scalar_lea.vmem %s1, %s281
      %s283 = smul.u32 4, %s23
      %s284 = smul.u32 64, %s21
      %p285 = scmp.lt.s32.totalorder %s284, 1023
      %s286 = scalar_select %p285, %s284, 1023
      %p287 = scmp.lt.s32.totalorder %s22, 0
      %s288 = scalar_select %p287, %s22, 0
      %s289 = sadd.s32 %s288, %s286
      %s290 = smul.addr %s289, 4
      %s291 = scalar_lea.vmem %s2, %s290
      %s292 = smul.u32 64, %s21
      %p293 = scmp.lt.s32.totalorder %s21, 15
      %s294 = scalar_select %p293, %s21, 15
      %p295 = scmp.lt.s32.totalorder %s22, 0
      %s296 = scalar_select %p295, %s22, 0
      %s297 = sadd.s32 %s296, %s294
      %s298 = scalar_lea.vmem %s3, %s297
      %p299 = scmp.lt.s32.totalorder %s21, 15
      %s300 = scalar_select %p299, %s21, 15
      %p301 = scmp.lt.s32.totalorder %s22, 0
      %s302 = scalar_select %p301, %s22, 0
      %s303 = sadd.s32 %s302, %s300
      %s304 = scalar_lea.vmem %s4, %s303
      %p306 = scmp.eq.s32.totalorder %s23, 0
      // Predicated region
      $region29: #{conv_bn_leaky.2} parent=27 // pred_check
        %p307 = pneg %p306
      $region30: #{conv_bn_leaky.2} parent=27 // pred_check_branch
        %309 = sbr.rel (%p307) target = $region32
      $region31: #{conv_bn_leaky.2} parent=27 // pred_region
        %vm310 = vcmask 261120
        %311 = vst.msk [vmem:[#allocation2] sm:$0xff] %vm310, 0.0
        %312 = vst.msk [vmem:[#allocation2 + $0x8] sm:$0xff] %vm310, 0.0
        %313 = vst.msk [vmem:[#allocation2 + $0x10] sm:$0xff] %vm310, 0.0
        %314 = vst.msk [vmem:[#allocation2 + $0x18] sm:$0xff] %vm310, 0.0
        %315 = vst.msk [vmem:[#allocation2 + $0x20] sm:$0xff] %vm310, 0.0
        %316 = vst.msk [vmem:[#allocation2 + $0x28] sm:$0xff] %vm310, 0.0
        %317 = vst.msk [vmem:[#allocation2 + $0x30] sm:$0xff] %vm310, 0.0
        %318 = vst.msk [vmem:[#allocation2 + $0x38] sm:$0xff] %vm310, 0.0
        %319 = vst.msk [vmem:[#allocation2 + $0x40] sm:$0xff] %vm310, 0.0
        %320 = vst.msk [vmem:[#allocation2 + $0x48] sm:$0xff] %vm310, 0.0
        %321 = vst.msk [vmem:[#allocation2 + $0x50] sm:$0xff] %vm310, 0.0
        %322 = vst.msk [vmem:[#allocation2 + $0x58] sm:$0xff] %vm310, 0.0
        %323 = vst.msk [vmem:[#allocation2 + $0x60] sm:$0xff] %vm310, 0.0
        %324 = vst.msk [vmem:[#allocation2 + $0x68] sm:$0xff] %vm310, 0.0
        %325 = vst.msk [vmem:[#allocation2 + $0x70] sm:$0xff] %vm310, 0.0
        %326 = vst.msk [vmem:[#allocation2 + $0x78] sm:$0xff] %vm310, 0.0
        %327 = vst.msk [vmem:[#allocation2 + $0x80] sm:$0xff] %vm310, 0.0
        %328 = vst.msk [vmem:[#allocation2 + $0x88] sm:$0xff] %vm310, 0.0
        %329 = vst.msk [vmem:[#allocation2 + $0x90] sm:$0xff] %vm310, 0.0
        %330 = vst.msk [vmem:[#allocation2 + $0x98] sm:$0xff] %vm310, 0.0
        %331 = vst.msk [vmem:[#allocation2 + $0xa0] sm:$0xff] %vm310, 0.0
        %332 = vst.msk [vmem:[#allocation2 + $0xa8] sm:$0xff] %vm310, 0.0
        %333 = vst.msk [vmem:[#allocation2 + $0xb0] sm:$0xff] %vm310, 0.0
        %334 = vst.msk [vmem:[#allocation2 + $0xb8] sm:$0xff] %vm310, 0.0
        %335 = vst.msk [vmem:[#allocation2 + $0xc0] sm:$0xff] %vm310, 0.0
        %336 = vst.msk [vmem:[#allocation2 + $0xc8] sm:$0xff] %vm310, 0.0
        %337 = vst.msk [vmem:[#allocation2 + $0xd0] sm:$0xff] %vm310, 0.0
        %338 = vst.msk [vmem:[#allocation2 + $0xd8] sm:$0xff] %vm310, 0.0
        %339 = vst.msk [vmem:[#allocation2 + $0xe0] sm:$0xff] %vm310, 0.0
        %340 = vst.msk [vmem:[#allocation2 + $0xe8] sm:$0xff] %vm310, 0.0
        %341 = vst.msk [vmem:[#allocation2 + $0xf0] sm:$0xff] %vm310, 0.0
        %342 = vst.msk [vmem:[#allocation2 + $0xf8] sm:$0xff] %vm310, 0.0
        %343 = vst.msk [vmem:[#allocation2 + $0x100] sm:$0xff] %vm310, 0.0
        %344 = vst.msk [vmem:[#allocation2 + $0x108] sm:$0xff] %vm310, 0.0
        %345 = vst.msk [vmem:[#allocation2 + $0x110] sm:$0xff] %vm310, 0.0
        %346 = vst.msk [vmem:[#allocation2 + $0x118] sm:$0xff] %vm310, 0.0
        %347 = vst.msk [vmem:[#allocation2 + $0x120] sm:$0xff] %vm310, 0.0
        %348 = vst.msk [vmem:[#allocation2 + $0x128] sm:$0xff] %vm310, 0.0
        %349 = vst.msk [vmem:[#allocation2 + $0x130] sm:$0xff] %vm310, 0.0
        %350 = vst.msk [vmem:[#allocation2 + $0x138] sm:$0xff] %vm310, 0.0
        %351 = vst.msk [vmem:[#allocation2 + $0x140] sm:$0xff] %vm310, 0.0
        %352 = vst.msk [vmem:[#allocation2 + $0x148] sm:$0xff] %vm310, 0.0
        %353 = vst.msk [vmem:[#allocation2 + $0x150] sm:$0xff] %vm310, 0.0
        %354 = vst.msk [vmem:[#allocation2 + $0x158] sm:$0xff] %vm310, 0.0
        %355 = vst.msk [vmem:[#allocation2 + $0x160] sm:$0xff] %vm310, 0.0
        %356 = vst.msk [vmem:[#allocation2 + $0x168] sm:$0xff] %vm310, 0.0
        %357 = vst.msk [vmem:[#allocation2 + $0x170] sm:$0xff] %vm310, 0.0
        %358 = vst.msk [vmem:[#allocation2 + $0x178] sm:$0xff] %vm310, 0.0
        %359 = vst.msk [vmem:[#allocation2 + $0x180] sm:$0xff] %vm310, 0.0
        %360 = vst.msk [vmem:[#allocation2 + $0x188] sm:$0xff] %vm310, 0.0
        %361 = vst.msk [vmem:[#allocation2 + $0x190] sm:$0xff] %vm310, 0.0
        %362 = vst.msk [vmem:[#allocation2 + $0x198] sm:$0xff] %vm310, 0.0
        %363 = vst.msk [vmem:[#allocation2 + $0x1a0] sm:$0xff] %vm310, 0.0
        %364 = vst.msk [vmem:[#allocation2 + $0x1a8] sm:$0xff] %vm310, 0.0
        %365 = vst.msk [vmem:[#allocation2 + $0x1b0] sm:$0xff] %vm310, 0.0
        %366 = vst.msk [vmem:[#allocation2 + $0x1b8] sm:$0xff] %vm310, 0.0
        %367 = vst.msk [vmem:[#allocation2 + $0x1c0] sm:$0xff] %vm310, 0.0
        %368 = vst.msk [vmem:[#allocation2 + $0x1c8] sm:$0xff] %vm310, 0.0
        %369 = vst.msk [vmem:[#allocation2 + $0x1d0] sm:$0xff] %vm310, 0.0
        %370 = vst.msk [vmem:[#allocation2 + $0x1d8] sm:$0xff] %vm310, 0.0
        %371 = vst.msk [vmem:[#allocation2 + $0x1e0] sm:$0xff] %vm310, 0.0
        %372 = vst.msk [vmem:[#allocation2 + $0x1e8] sm:$0xff] %vm310, 0.0
        %373 = vst.msk [vmem:[#allocation2 + $0x1f0] sm:$0xff] %vm310, 0.0
        %374 = vst.msk [vmem:[#allocation2 + $0x1f8] sm:$0xff] %vm310, 0.0
      $region32: #{conv_bn_leaky.2} parent=27 // pred_fallthru
        _
      %v375 = vld [vmem:[#allocation2] sm:$0xff]
      %v376 = vld [vmem:[#allocation2 + $0x8] sm:$0xff]
      %v377 = vld [vmem:[#allocation2 + $0x10] sm:$0xff]
      %v378 = vld [vmem:[#allocation2 + $0x18] sm:$0xff]
      %v379 = vld [vmem:[#allocation2 + $0x20] sm:$0xff]
      %v380 = vld [vmem:[#allocation2 + $0x28] sm:$0xff]
      %v381 = vld [vmem:[#allocation2 + $0x30] sm:$0xff]
      %v382 = vld [vmem:[#allocation2 + $0x38] sm:$0xff]
      %v383 = vld [vmem:[#allocation2 + $0x40] sm:$0xff]
      %v384 = vld [vmem:[#allocation2 + $0x48] sm:$0xff]
      %v385 = vld [vmem:[#allocation2 + $0x50] sm:$0xff]
      %v386 = vld [vmem:[#allocation2 + $0x58] sm:$0xff]
      %v387 = vld [vmem:[#allocation2 + $0x60] sm:$0xff]
      %v388 = vld [vmem:[#allocation2 + $0x68] sm:$0xff]
      %v389 = vld [vmem:[#allocation2 + $0x70] sm:$0xff]
      %v390 = vld [vmem:[#allocation2 + $0x78] sm:$0xff]
      %v391 = vld [vmem:[#allocation2 + $0x80] sm:$0xff]
      %v392 = vld [vmem:[#allocation2 + $0x88] sm:$0xff]
      %v393 = vld [vmem:[#allocation2 + $0x90] sm:$0xff]
      %v394 = vld [vmem:[#allocation2 + $0x98] sm:$0xff]
      %v395 = vld [vmem:[#allocation2 + $0xa0] sm:$0xff]
      %v396 = vld [vmem:[#allocation2 + $0xa8] sm:$0xff]
      %v397 = vld [vmem:[#allocation2 + $0xb0] sm:$0xff]
      %v398 = vld [vmem:[#allocation2 + $0xb8] sm:$0xff]
      %v399 = vld [vmem:[#allocation2 + $0xc0] sm:$0xff]
      %v400 = vld [vmem:[#allocation2 + $0xc8] sm:$0xff]
      %v401 = vld [vmem:[#allocation2 + $0xd0] sm:$0xff]
      %v402 = vld [vmem:[#allocation2 + $0xd8] sm:$0xff]
      %v403 = vld [vmem:[#allocation2 + $0xe0] sm:$0xff]
      %v404 = vld [vmem:[#allocation2 + $0xe8] sm:$0xff]
      %v405 = vld [vmem:[#allocation2 + $0xf0] sm:$0xff]
      %v406 = vld [vmem:[#allocation2 + $0xf8] sm:$0xff]
      %v407 = vld [vmem:[#allocation2 + $0x100] sm:$0xff]
      %v408 = vld [vmem:[#allocation2 + $0x108] sm:$0xff]
      %v409 = vld [vmem:[#allocation2 + $0x110] sm:$0xff]
      %v410 = vld [vmem:[#allocation2 + $0x118] sm:$0xff]
      %v411 = vld [vmem:[#allocation2 + $0x120] sm:$0xff]
      %v412 = vld [vmem:[#allocation2 + $0x128] sm:$0xff]
      %v413 = vld [vmem:[#allocation2 + $0x130] sm:$0xff]
      %v414 = vld [vmem:[#allocation2 + $0x138] sm:$0xff]
      %v415 = vld [vmem:[#allocation2 + $0x140] sm:$0xff]
      %v416 = vld [vmem:[#allocation2 + $0x148] sm:$0xff]
      %v417 = vld [vmem:[#allocation2 + $0x150] sm:$0xff]
      %v418 = vld [vmem:[#allocation2 + $0x158] sm:$0xff]
      %v419 = vld [vmem:[#allocation2 + $0x160] sm:$0xff]
      %v420 = vld [vmem:[#allocation2 + $0x168] sm:$0xff]
      %v421 = vld [vmem:[#allocation2 + $0x170] sm:$0xff]
      %v422 = vld [vmem:[#allocation2 + $0x178] sm:$0xff]
      %v423 = vld [vmem:[#allocation2 + $0x180] sm:$0xff]
      %v424 = vld [vmem:[#allocation2 + $0x188] sm:$0xff]
      %v425 = vld [vmem:[#allocation2 + $0x190] sm:$0xff]
      %v426 = vld [vmem:[#allocation2 + $0x198] sm:$0xff]
      %v427 = vld [vmem:[#allocation2 + $0x1a0] sm:$0xff]
      %v428 = vld [vmem:[#allocation2 + $0x1a8] sm:$0xff]
      %v429 = vld [vmem:[#allocation2 + $0x1b0] sm:$0xff]
      %v430 = vld [vmem:[#allocation2 + $0x1b8] sm:$0xff]
      %v431 = vld [vmem:[#allocation2 + $0x1c0] sm:$0xff]
      %v432 = vld [vmem:[#allocation2 + $0x1c8] sm:$0xff]
      %v433 = vld [vmem:[#allocation2 + $0x1d0] sm:$0xff]
      %v434 = vld [vmem:[#allocation2 + $0x1d8] sm:$0xff]
      %v435 = vld [vmem:[#allocation2 + $0x1e0] sm:$0xff]
      %v436 = vld [vmem:[#allocation2 + $0x1e8] sm:$0xff]
      %v437 = vld [vmem:[#allocation2 + $0x1f0] sm:$0xff]
      %v438 = vld [vmem:[#allocation2 + $0x1f8] sm:$0xff]
      %v439 = vld [vmem:[%s273] sm:$0xf]
      %v440 = vld [vmem:[%s273 + $0x4] sm:$0xf]
      %v441 = vld [vmem:[%s273 + $0x8] sm:$0xf]
      %v442 = vld [vmem:[%s273 + $0xc] sm:$0xf]
      %v443 = vld [vmem:[%s273 + $0x10] sm:$0xf]
      %v444 = vld [vmem:[%s273 + $0x14] sm:$0xf]
      %v445 = vld [vmem:[%s273 + $0x18] sm:$0xf]
      %v446 = vld [vmem:[%s273 + $0x1c] sm:$0xf]
      %v447 = vld [vmem:[%s273 + $0x20] sm:$0xf]
      %v448 = vld [vmem:[%s273 + $0x24] sm:$0xf]
      %v449 = vld [vmem:[%s273 + $0x28] sm:$0xf]
      %v450 = vld [vmem:[%s273 + $0x2c] sm:$0xf]
      %v451 = vld [vmem:[%s273 + $0x30] sm:$0xf]
      %v452 = vld [vmem:[%s273 + $0x34] sm:$0xf]
      %v453 = vld [vmem:[%s273 + $0x38] sm:$0xf]
      %v454 = vld [vmem:[%s273 + $0x3c] sm:$0xf]
      %v455 = vld [vmem:[%s273 + $0x40] sm:$0xf]
      %v456 = vld [vmem:[%s273 + $0x44] sm:$0xf]
      %v457 = vld [vmem:[%s273 + $0x48] sm:$0xf]
      %v458 = vld [vmem:[%s273 + $0x4c] sm:$0xf]
      %v459 = vld [vmem:[%s273 + $0x50] sm:$0xf]
      %v460 = vld [vmem:[%s273 + $0x54] sm:$0xf]
      %v461 = vld [vmem:[%s273 + $0x58] sm:$0xf]
      %v462 = vld [vmem:[%s273 + $0x5c] sm:$0xf]
      %v463 = vld [vmem:[%s273 + $0x60] sm:$0xf]
      %v464 = vld [vmem:[%s273 + $0x64] sm:$0xf]
      %v465 = vld [vmem:[%s273 + $0x68] sm:$0xf]
      %v466 = vld [vmem:[%s273 + $0x6c] sm:$0xf]
      %v467 = vld [vmem:[%s273 + $0x70] sm:$0xf]
      %v468 = vld [vmem:[%s273 + $0x74] sm:$0xf]
      %v469 = vld [vmem:[%s273 + $0x78] sm:$0xf]
      %v470 = vld [vmem:[%s273 + $0x7c] sm:$0xf]
      %v471 = vld [vmem:[%s273 + $0x80] sm:$0xf]
      %v472 = vld [vmem:[%s273 + $0x84] sm:$0xf]
      %v473 = vld [vmem:[%s273 + $0x88] sm:$0xf]
      %v474 = vld [vmem:[%s273 + $0x8c] sm:$0xf]
      %v475 = vld [vmem:[%s273 + $0x90] sm:$0xf]
      %v476 = vld [vmem:[%s273 + $0x94] sm:$0xf]
      %v477 = vld [vmem:[%s273 + $0x98] sm:$0xf]
      %v478 = vld [vmem:[%s273 + $0x9c] sm:$0xf]
      %v479 = vld [vmem:[%s273 + $0xa0] sm:$0xf]
      %v480 = vld [vmem:[%s273 + $0xa4] sm:$0xf]
      %v481 = vld [vmem:[%s273 + $0xa8] sm:$0xf]
      %v482 = vld [vmem:[%s273 + $0xac] sm:$0xf]
      %v483 = vld [vmem:[%s273 + $0xb0] sm:$0xf]
      %v484 = vld [vmem:[%s273 + $0xb4] sm:$0xf]
      %v485 = vld [vmem:[%s273 + $0xb8] sm:$0xf]
      %v486 = vld [vmem:[%s273 + $0xbc] sm:$0xf]
      %v487 = vld [vmem:[%s273 + $0xc0] sm:$0xf]
      %v488 = vld [vmem:[%s273 + $0xc4] sm:$0xf]
      %v489 = vld [vmem:[%s273 + $0xc8] sm:$0xf]
      %v490 = vld [vmem:[%s273 + $0xcc] sm:$0xf]
      %v491 = vld [vmem:[%s273 + $0xd0] sm:$0xf]
      %v492 = vld [vmem:[%s273 + $0xd4] sm:$0xf]
      %v493 = vld [vmem:[%s273 + $0xd8] sm:$0xf]
      %v494 = vld [vmem:[%s273 + $0xdc] sm:$0xf]
      %v495 = vld [vmem:[%s273 + $0xe0] sm:$0xf]
      %v496 = vld [vmem:[%s273 + $0xe4] sm:$0xf]
      %v497 = vld [vmem:[%s273 + $0xe8] sm:$0xf]
      %v498 = vld [vmem:[%s273 + $0xec] sm:$0xf]
      %v499 = vld [vmem:[%s273 + $0xf0] sm:$0xf]
      %v500 = vld [vmem:[%s273 + $0xf4] sm:$0xf]
      %v501 = vld [vmem:[%s273 + $0xf8] sm:$0xf]
      %v502 = vld [vmem:[%s273 + $0xfc] sm:$0xf]
      %v503 = vld [vmem:[%s282] sm:$0xf]
      %v504 = vld [vmem:[%s282 + $0x4] sm:$0xf]
      %v505 = vld [vmem:[%s282 + $0x8] sm:$0xf]
      %v506 = vld [vmem:[%s282 + $0xc] sm:$0x3]
      %v571 = vunpack.c.l.b16 %v439
      %v572 = vunpack.c.l.b16 %v440
      %v573 = vunpack.c.l.b16 %v441
      %v574 = vunpack.c.l.b16 %v442
      %v575 = vunpack.c.l.b16 %v443
      %v576 = vunpack.c.l.b16 %v444
      %v577 = vunpack.c.l.b16 %v445
      %v578 = vunpack.c.l.b16 %v446
      %v579 = vunpack.c.l.b16 %v447
      %v580 = vunpack.c.l.b16 %v448
      %v581 = vunpack.c.l.b16 %v449
      %v582 = vunpack.c.l.b16 %v450
      %v583 = vunpack.c.l.b16 %v451
      %v584 = vunpack.c.l.b16 %v452
      %v585 = vunpack.c.l.b16 %v453
      %v586 = vunpack.c.l.b16 %v454
      %v587 = vunpack.c.l.b16 %v455
      %v588 = vunpack.c.l.b16 %v456
      %v589 = vunpack.c.l.b16 %v457
      %v590 = vunpack.c.l.b16 %v458
      %v591 = vunpack.c.l.b16 %v459
      %v592 = vunpack.c.l.b16 %v460
      %v593 = vunpack.c.l.b16 %v461
      %v594 = vunpack.c.l.b16 %v462
      %v595 = vunpack.c.l.b16 %v463
      %v596 = vunpack.c.l.b16 %v464
      %v597 = vunpack.c.l.b16 %v465
      %v598 = vunpack.c.l.b16 %v466
      %v599 = vunpack.c.l.b16 %v467
      %v600 = vunpack.c.l.b16 %v468
      %v601 = vunpack.c.l.b16 %v469
      %v602 = vunpack.c.l.b16 %v470
      %v603 = vunpack.c.l.b16 %v471
      %v604 = vunpack.c.l.b16 %v472
      %v605 = vunpack.c.l.b16 %v473
      %v606 = vunpack.c.l.b16 %v474
      %v607 = vunpack.c.l.b16 %v475
      %v608 = vunpack.c.l.b16 %v476
      %v609 = vunpack.c.l.b16 %v477
      %v610 = vunpack.c.l.b16 %v478
      %v611 = vunpack.c.l.b16 %v479
      %v612 = vunpack.c.l.b16 %v480
      %v613 = vunpack.c.l.b16 %v481
      %v614 = vunpack.c.l.b16 %v482
      %v615 = vunpack.c.l.b16 %v483
      %v616 = vunpack.c.l.b16 %v484
      %v617 = vunpack.c.l.b16 %v485
      %v618 = vunpack.c.l.b16 %v486
      %v619 = vunpack.c.l.b16 %v487
      %v620 = vunpack.c.l.b16 %v488
      %v621 = vunpack.c.l.b16 %v489
      %v622 = vunpack.c.l.b16 %v490
      %v623 = vunpack.c.l.b16 %v491
      %v624 = vunpack.c.l.b16 %v492
      %v625 = vunpack.c.l.b16 %v493
      %v626 = vunpack.c.l.b16 %v494
      %v627 = vunpack.c.l.b16 %v495
      %v628 = vunpack.c.l.b16 %v496
      %v629 = vunpack.c.l.b16 %v497
      %v630 = vunpack.c.l.b16 %v498
      %v631 = vunpack.c.l.b16 %v499
      %v632 = vunpack.c.l.b16 %v500
      %v633 = vunpack.c.l.b16 %v501
      %v634 = vunpack.c.l.b16 %v502
      %v635 = vpack.c.b16 %v572, %v571
      %v636 = vpack.c.b16 %v574, %v573
      %v637 = vpack.c.b16 %v576, %v575
      %v638 = vpack.c.b16 %v578, %v577
      %v639 = vpack.c.b16 %v580, %v579
      %v640 = vpack.c.b16 %v582, %v581
      %v641 = vpack.c.b16 %v584, %v583
      %v642 = vpack.c.b16 %v586, %v585
      %v643 = vpack.c.b16 %v588, %v587
      %v644 = vpack.c.b16 %v590, %v589
      %v645 = vpack.c.b16 %v592, %v591
      %v646 = vpack.c.b16 %v594, %v593
      %v647 = vpack.c.b16 %v596, %v595
      %v648 = vpack.c.b16 %v598, %v597
      %v649 = vpack.c.b16 %v600, %v599
      %v650 = vpack.c.b16 %v602, %v601
      %v651 = vpack.c.b16 %v604, %v603
      %v652 = vpack.c.b16 %v606, %v605
      %v653 = vpack.c.b16 %v608, %v607
      %v654 = vpack.c.b16 %v610, %v609
      %v655 = vpack.c.b16 %v612, %v611
      %v656 = vpack.c.b16 %v614, %v613
      %v657 = vpack.c.b16 %v616, %v615
      %v658 = vpack.c.b16 %v618, %v617
      %v659 = vpack.c.b16 %v620, %v619
      %v660 = vpack.c.b16 %v622, %v621
      %v661 = vpack.c.b16 %v624, %v623
      %v662 = vpack.c.b16 %v626, %v625
      %v663 = vpack.c.b16 %v628, %v627
      %v664 = vpack.c.b16 %v630, %v629
      %v665 = vpack.c.b16 %v632, %v631
      %v666 = vpack.c.b16 %v634, %v633
      %v671 = vunpack.c.l.b16 %v503
      %v672 = vunpack.c.l.b16 %v504
      %v673 = vunpack.c.l.b16 %v505
      %v674 = vunpack.c.l.b16 %v506
      %v675 = vpack.c.b16 %v672, %v671
      %v676 = vpack.c.b16 %v674, %v673
      %vm678 = vcmask 220160
      %v680 = vsel %vm678, %v635, 0
      %v683 = vsel %vm678, %v636, 0
      %v686 = vsel %vm678, %v637, 0
      %v689 = vsel %vm678, %v638, 0
      %v692 = vsel %vm678, %v639, 0
      %v695 = vsel %vm678, %v640, 0
      %v698 = vsel %vm678, %v641, 0
      %v701 = vsel %vm678, %v642, 0
      %v704 = vsel %vm678, %v643, 0
      %v707 = vsel %vm678, %v644, 0
      %v710 = vsel %vm678, %v645, 0
      %v713 = vsel %vm678, %v646, 0
      %v716 = vsel %vm678, %v647, 0
      %v719 = vsel %vm678, %v648, 0
      %v722 = vsel %vm678, %v649, 0
      %v725 = vsel %vm678, %v650, 0
      %v728 = vsel %vm678, %v651, 0
      %v731 = vsel %vm678, %v652, 0
      %v734 = vsel %vm678, %v653, 0
      %v737 = vsel %vm678, %v654, 0
      %v740 = vsel %vm678, %v655, 0
      %v743 = vsel %vm678, %v656, 0
      %v746 = vsel %vm678, %v657, 0
      %v749 = vsel %vm678, %v658, 0
      %v752 = vsel %vm678, %v659, 0
      %v755 = vsel %vm678, %v660, 0
      %v758 = vsel %vm678, %v661, 0
      %v761 = vsel %vm678, %v662, 0
      %v764 = vsel %vm678, %v663, 0
      %v767 = vsel %vm678, %v664, 0
      %v770 = vsel %vm678, %v665, 0
      %v773 = vsel %vm678, %v666, 0
      %vm775 = vcmask 1044480
      %vm776 = vcmask 1045504
      %v777 = vsel %vm775, 4294967295, 65535
      %v778 = vsel %vm776, %v777, 0
      %v780 = vand.u32 %v676, %v778
      %782 = vmatpush.bf16.msra.mxu0 0
      %783 = vmatpush.bf16.msra.mxu0 0
      %784 = vmatpush.bf16.msra.mxu0 0
      %785 = vmatpush.bf16.msra.mxu0 0
      %786 = vmatpush.bf16.msra.mxu0 0
      %787 = vmatpush.bf16.msra.mxu0 0
      %788 = vmatpush.bf16.msra.mxu0 %v780
      %789 = vmatpush.bf16.msra.mxu0 %v675
      %790 = vmatmul.bf16.gmra.mxu0 %v680
      %v791 = vpop.f32.mrf.mxu0
      %v792 = vadd.f32 0.0, %v791
      %v793 = vpop.f32.mrf.mxu0
      %v794 = vadd.f32 0.0, %v793
      %795 = vmatmul.bf16.gmra.mxu0 %v683
      %v796 = vpop.f32.mrf.mxu0
      %v797 = vadd.f32 0.0, %v796
      %v798 = vpop.f32.mrf.mxu0
      %v799 = vadd.f32 0.0, %v798
      %800 = vmatmul.bf16.gmra.mxu0 %v686
      %v801 = vpop.f32.mrf.mxu0
      %v802 = vadd.f32 0.0, %v801
      %v803 = vpop.f32.mrf.mxu0
      %v804 = vadd.f32 0.0, %v803
      %805 = vmatmul.bf16.gmra.mxu0 %v689
      %v806 = vpop.f32.mrf.mxu0
      %v807 = vadd.f32 0.0, %v806
      %v808 = vpop.f32.mrf.mxu0
      %v809 = vadd.f32 0.0, %v808
      %810 = vmatmul.bf16.gmra.mxu0 %v692
      %v811 = vpop.f32.mrf.mxu0
      %v812 = vadd.f32 0.0, %v811
      %v813 = vpop.f32.mrf.mxu0
      %v814 = vadd.f32 0.0, %v813
      %815 = vmatmul.bf16.gmra.mxu0 %v695
      %v816 = vpop.f32.mrf.mxu0
      %v817 = vadd.f32 0.0, %v816
      %v818 = vpop.f32.mrf.mxu0
      %v819 = vadd.f32 0.0, %v818
      %820 = vmatmul.bf16.gmra.mxu0 %v698
      %v821 = vpop.f32.mrf.mxu0
      %v822 = vadd.f32 0.0, %v821
      %v823 = vpop.f32.mrf.mxu0
      %v824 = vadd.f32 0.0, %v823
      %825 = vmatmul.bf16.gmra.mxu0 %v701
      %v826 = vpop.f32.mrf.mxu0
      %v827 = vadd.f32 0.0, %v826
      %v828 = vpop.f32.mrf.mxu0
      %v829 = vadd.f32 0.0, %v828
      %830 = vmatmul.bf16.gmra.mxu0 %v704
      %v831 = vpop.f32.mrf.mxu0
      %v832 = vadd.f32 0.0, %v831
      %v833 = vpop.f32.mrf.mxu0
      %v834 = vadd.f32 0.0, %v833
      %835 = vmatmul.bf16.gmra.mxu0 %v707
      %v836 = vpop.f32.mrf.mxu0
      %v837 = vadd.f32 0.0, %v836
      %v838 = vpop.f32.mrf.mxu0
      %v839 = vadd.f32 0.0, %v838
      %840 = vmatmul.bf16.gmra.mxu0 %v710
      %v841 = vpop.f32.mrf.mxu0
      %v842 = vadd.f32 0.0, %v841
      %v843 = vpop.f32.mrf.mxu0
      %v844 = vadd.f32 0.0, %v843
      %845 = vmatmul.bf16.gmra.mxu0 %v713
      %v846 = vpop.f32.mrf.mxu0
      %v847 = vadd.f32 0.0, %v846
      %v848 = vpop.f32.mrf.mxu0
      %v849 = vadd.f32 0.0, %v848
      %850 = vmatmul.bf16.gmra.mxu0 %v716
      %v851 = vpop.f32.mrf.mxu0
      %v852 = vadd.f32 0.0, %v851
      %v853 = vpop.f32.mrf.mxu0
      %v854 = vadd.f32 0.0, %v853
      %855 = vmatmul.bf16.gmra.mxu0 %v719
      %v856 = vpop.f32.mrf.mxu0
      %v857 = vadd.f32 0.0, %v856
      %v858 = vpop.f32.mrf.mxu0
      %v859 = vadd.f32 0.0, %v858
      %860 = vmatmul.bf16.gmra.mxu0 %v722
      %v861 = vpop.f32.mrf.mxu0
      %v862 = vadd.f32 0.0, %v861
      %v863 = vpop.f32.mrf.mxu0
      %v864 = vadd.f32 0.0, %v863
      %865 = vmatmul.bf16.gmra.mxu0 %v725
      %v866 = vpop.f32.mrf.mxu0
      %v867 = vadd.f32 0.0, %v866
      %v868 = vpop.f32.mrf.mxu0
      %v869 = vadd.f32 0.0, %v868
      %870 = vmatmul.bf16.gmra.mxu0 %v728
      %v871 = vpop.f32.mrf.mxu0
      %v872 = vadd.f32 0.0, %v871
      %v873 = vpop.f32.mrf.mxu0
      %v874 = vadd.f32 0.0, %v873
      %875 = vmatmul.bf16.gmra.mxu0 %v731
      %v876 = vpop.f32.mrf.mxu0
      %v877 = vadd.f32 0.0, %v876
      %v878 = vpop.f32.mrf.mxu0
      %v879 = vadd.f32 0.0, %v878
      %880 = vmatmul.bf16.gmra.mxu0 %v734
      %v881 = vpop.f32.mrf.mxu0
      %v882 = vadd.f32 0.0, %v881
      %v883 = vpop.f32.mrf.mxu0
      %v884 = vadd.f32 0.0, %v883
      %885 = vmatmul.bf16.gmra.mxu0 %v737
      %v886 = vpop.f32.mrf.mxu0
      %v887 = vadd.f32 0.0, %v886
      %v888 = vpop.f32.mrf.mxu0
      %v889 = vadd.f32 0.0, %v888
      %890 = vmatmul.bf16.gmra.mxu0 %v740
      %v891 = vpop.f32.mrf.mxu0
      %v892 = vadd.f32 0.0, %v891
      %v893 = vpop.f32.mrf.mxu0
      %v894 = vadd.f32 0.0, %v893
      %895 = vmatmul.bf16.gmra.mxu0 %v743
      %v896 = vpop.f32.mrf.mxu0
      %v897 = vadd.f32 0.0, %v896
      %v898 = vpop.f32.mrf.mxu0
      %v899 = vadd.f32 0.0, %v898
      %900 = vmatmul.bf16.gmra.mxu0 %v746
      %v901 = vpop.f32.mrf.mxu0
      %v902 = vadd.f32 0.0, %v901
      %v903 = vpop.f32.mrf.mxu0
      %v904 = vadd.f32 0.0, %v903
      %905 = vmatmul.bf16.gmra.mxu0 %v749
      %v906 = vpop.f32.mrf.mxu0
      %v907 = vadd.f32 0.0, %v906
      %v908 = vpop.f32.mrf.mxu0
      %v909 = vadd.f32 0.0, %v908
      %910 = vmatmul.bf16.gmra.mxu0 %v752
      %v911 = vpop.f32.mrf.mxu0
      %v912 = vadd.f32 0.0, %v911
      %v913 = vpop.f32.mrf.mxu0
      %v914 = vadd.f32 0.0, %v913
      %915 = vmatmul.bf16.gmra.mxu0 %v755
      %v916 = vpop.f32.mrf.mxu0
      %v917 = vadd.f32 0.0, %v916
      %v918 = vpop.f32.mrf.mxu0
      %v919 = vadd.f32 0.0, %v918
      %920 = vmatmul.bf16.gmra.mxu0 %v758
      %v921 = vpop.f32.mrf.mxu0
      %v922 = vadd.f32 0.0, %v921
      %v923 = vpop.f32.mrf.mxu0
      %v924 = vadd.f32 0.0, %v923
      %925 = vmatmul.bf16.gmra.mxu0 %v761
      %v926 = vpop.f32.mrf.mxu0
      %v927 = vadd.f32 0.0, %v926
      %v928 = vpop.f32.mrf.mxu0
      %v929 = vadd.f32 0.0, %v928
      %930 = vmatmul.bf16.gmra.mxu0 %v764
      %v931 = vpop.f32.mrf.mxu0
      %v932 = vadd.f32 0.0, %v931
      %v933 = vpop.f32.mrf.mxu0
      %v934 = vadd.f32 0.0, %v933
      %935 = vmatmul.bf16.gmra.mxu0 %v767
      %v936 = vpop.f32.mrf.mxu0
      %v937 = vadd.f32 0.0, %v936
      %v938 = vpop.f32.mrf.mxu0
      %v939 = vadd.f32 0.0, %v938
      %940 = vmatmul.bf16.gmra.mxu0 %v770
      %v941 = vpop.f32.mrf.mxu0
      %v942 = vadd.f32 0.0, %v941
      %v943 = vpop.f32.mrf.mxu0
      %v944 = vadd.f32 0.0, %v943
      %945 = vmatmul.bf16.gmra.mxu0 %v773
      %v946 = vpop.f32.mrf.mxu0
      %v947 = vadd.f32 0.0, %v946
      %v948 = vpop.f32.mrf.mxu0
      %v949 = vadd.f32 0.0, %v948
      %950 = vdwg.mxu0
      %v951 = vadd.f32 %v375, %v792
      %v952 = vadd.f32 %v376, %v794
      %v953 = vadd.f32 %v377, %v797
      %v954 = vadd.f32 %v378, %v799
      %v955 = vadd.f32 %v379, %v802
      %v956 = vadd.f32 %v380, %v804
      %v957 = vadd.f32 %v381, %v807
      %v958 = vadd.f32 %v382, %v809
      %v959 = vadd.f32 %v383, %v812
      %v960 = vadd.f32 %v384, %v814
      %v961 = vadd.f32 %v385, %v817
      %v962 = vadd.f32 %v386, %v819
      %v963 = vadd.f32 %v387, %v822
      %v964 = vadd.f32 %v388, %v824
      %v965 = vadd.f32 %v389, %v827
      %v966 = vadd.f32 %v390, %v829
      %v967 = vadd.f32 %v391, %v832
      %v968 = vadd.f32 %v392, %v834
      %v969 = vadd.f32 %v393, %v837
      %v970 = vadd.f32 %v394, %v839
      %v971 = vadd.f32 %v395, %v842
      %v972 = vadd.f32 %v396, %v844
      %v973 = vadd.f32 %v397, %v847
      %v974 = vadd.f32 %v398, %v849
      %v975 = vadd.f32 %v399, %v852
      %v976 = vadd.f32 %v400, %v854
      %v977 = vadd.f32 %v401, %v857
      %v978 = vadd.f32 %v402, %v859
      %v979 = vadd.f32 %v403, %v862
      %v980 = vadd.f32 %v404, %v864
      %v981 = vadd.f32 %v405, %v867
      %v982 = vadd.f32 %v406, %v869
      %v983 = vadd.f32 %v407, %v872
      %v984 = vadd.f32 %v408, %v874
      %v985 = vadd.f32 %v409, %v877
      %v986 = vadd.f32 %v410, %v879
      %v987 = vadd.f32 %v411, %v882
      %v988 = vadd.f32 %v412, %v884
      %v989 = vadd.f32 %v413, %v887
      %v990 = vadd.f32 %v414, %v889
      %v991 = vadd.f32 %v415, %v892
      %v992 = vadd.f32 %v416, %v894
      %v993 = vadd.f32 %v417, %v897
      %v994 = vadd.f32 %v418, %v899
      %v995 = vadd.f32 %v419, %v902
      %v996 = vadd.f32 %v420, %v904
      %v997 = vadd.f32 %v421, %v907
      %v998 = vadd.f32 %v422, %v909
      %v999 = vadd.f32 %v423, %v912
      %v1000 = vadd.f32 %v424, %v914
      %v1001 = vadd.f32 %v425, %v917
      %v1002 = vadd.f32 %v426, %v919
      %v1003 = vadd.f32 %v427, %v922
      %v1004 = vadd.f32 %v428, %v924
      %v1005 = vadd.f32 %v429, %v927
      %v1006 = vadd.f32 %v430, %v929
      %v1007 = vadd.f32 %v431, %v932
      %v1008 = vadd.f32 %v432, %v934
      %v1009 = vadd.f32 %v433, %v937
      %v1010 = vadd.f32 %v434, %v939
      %v1011 = vadd.f32 %v435, %v942
      %v1012 = vadd.f32 %v436, %v944
      %v1013 = vadd.f32 %v437, %v947
      %v1014 = vadd.f32 %v438, %v949
      %vm1015 = vcmask 261120
      %1016 = vst.msk [vmem:[#allocation2] sm:$0xff] %vm1015, %v951
      %1017 = vst.msk [vmem:[#allocation2 + $0x8] sm:$0xff] %vm1015, %v952
      %1018 = vst.msk [vmem:[#allocation2 + $0x10] sm:$0xff] %vm1015, %v953
      %1019 = vst.msk [vmem:[#allocation2 + $0x18] sm:$0xff] %vm1015, %v954
      %1020 = vst.msk [vmem:[#allocation2 + $0x20] sm:$0xff] %vm1015, %v955
      %1021 = vst.msk [vmem:[#allocation2 + $0x28] sm:$0xff] %vm1015, %v956
      %1022 = vst.msk [vmem:[#allocation2 + $0x30] sm:$0xff] %vm1015, %v957
      %1023 = vst.msk [vmem:[#allocation2 + $0x38] sm:$0xff] %vm1015, %v958
      %1024 = vst.msk [vmem:[#allocation2 + $0x40] sm:$0xff] %vm1015, %v959
      %1025 = vst.msk [vmem:[#allocation2 + $0x48] sm:$0xff] %vm1015, %v960
      %1026 = vst.msk [vmem:[#allocation2 + $0x50] sm:$0xff] %vm1015, %v961
      %1027 = vst.msk [vmem:[#allocation2 + $0x58] sm:$0xff] %vm1015, %v962
      %1028 = vst.msk [vmem:[#allocation2 + $0x60] sm:$0xff] %vm1015, %v963
      %1029 = vst.msk [vmem:[#allocation2 + $0x68] sm:$0xff] %vm1015, %v964
      %1030 = vst.msk [vmem:[#allocation2 + $0x70] sm:$0xff] %vm1015, %v965
      %1031 = vst.msk [vmem:[#allocation2 + $0x78] sm:$0xff] %vm1015, %v966
      %1032 = vst.msk [vmem:[#allocation2 + $0x80] sm:$0xff] %vm1015, %v967
      %1033 = vst.msk [vmem:[#allocation2 + $0x88] sm:$0xff] %vm1015, %v968
      %1034 = vst.msk [vmem:[#allocation2 + $0x90] sm:$0xff] %vm1015, %v969
      %1035 = vst.msk [vmem:[#allocation2 + $0x98] sm:$0xff] %vm1015, %v970
      %1036 = vst.msk [vmem:[#allocation2 + $0xa0] sm:$0xff] %vm1015, %v971
      %1037 = vst.msk [vmem:[#allocation2 + $0xa8] sm:$0xff] %vm1015, %v972
      %1038 = vst.msk [vmem:[#allocation2 + $0xb0] sm:$0xff] %vm1015, %v973
      %1039 = vst.msk [vmem:[#allocation2 + $0xb8] sm:$0xff] %vm1015, %v974
      %1040 = vst.msk [vmem:[#allocation2 + $0xc0] sm:$0xff] %vm1015, %v975
      %1041 = vst.msk [vmem:[#allocation2 + $0xc8] sm:$0xff] %vm1015, %v976
      %1042 = vst.msk [vmem:[#allocation2 + $0xd0] sm:$0xff] %vm1015, %v977
      %1043 = vst.msk [vmem:[#allocation2 + $0xd8] sm:$0xff] %vm1015, %v978
      %1044 = vst.msk [vmem:[#allocation2 + $0xe0] sm:$0xff] %vm1015, %v979
      %1045 = vst.msk [vmem:[#allocation2 + $0xe8] sm:$0xff] %vm1015, %v980
      %1046 = vst.msk [vmem:[#allocation2 + $0xf0] sm:$0xff] %vm1015, %v981
      %1047 = vst.msk [vmem:[#allocation2 + $0xf8] sm:$0xff] %vm1015, %v982
      %1048 = vst.msk [vmem:[#allocation2 + $0x100] sm:$0xff] %vm1015, %v983
      %1049 = vst.msk [vmem:[#allocation2 + $0x108] sm:$0xff] %vm1015, %v984
      %1050 = vst.msk [vmem:[#allocation2 + $0x110] sm:$0xff] %vm1015, %v985
      %1051 = vst.msk [vmem:[#allocation2 + $0x118] sm:$0xff] %vm1015, %v986
      %1052 = vst.msk [vmem:[#allocation2 + $0x120] sm:$0xff] %vm1015, %v987
      %1053 = vst.msk [vmem:[#allocation2 + $0x128] sm:$0xff] %vm1015, %v988
      %1054 = vst.msk [vmem:[#allocation2 + $0x130] sm:$0xff] %vm1015, %v989
      %1055 = vst.msk [vmem:[#allocation2 + $0x138] sm:$0xff] %vm1015, %v990
      %1056 = vst.msk [vmem:[#allocation2 + $0x140] sm:$0xff] %vm1015, %v991
      %1057 = vst.msk [vmem:[#allocation2 + $0x148] sm:$0xff] %vm1015, %v992
      %1058 = vst.msk [vmem:[#allocation2 + $0x150] sm:$0xff] %vm1015, %v993
      %1059 = vst.msk [vmem:[#allocation2 + $0x158] sm:$0xff] %vm1015, %v994
      %1060 = vst.msk [vmem:[#allocation2 + $0x160] sm:$0xff] %vm1015, %v995
      %1061 = vst.msk [vmem:[#allocation2 + $0x168] sm:$0xff] %vm1015, %v996
      %1062 = vst.msk [vmem:[#allocation2 + $0x170] sm:$0xff] %vm1015, %v997
      %1063 = vst.msk [vmem:[#allocation2 + $0x178] sm:$0xff] %vm1015, %v998
      %1064 = vst.msk [vmem:[#allocation2 + $0x180] sm:$0xff] %vm1015, %v999
      %1065 = vst.msk [vmem:[#allocation2 + $0x188] sm:$0xff] %vm1015, %v1000
      %1066 = vst.msk [vmem:[#allocation2 + $0x190] sm:$0xff] %vm1015, %v1001
      %1067 = vst.msk [vmem:[#allocation2 + $0x198] sm:$0xff] %vm1015, %v1002
      %1068 = vst.msk [vmem:[#allocation2 + $0x1a0] sm:$0xff] %vm1015, %v1003
      %1069 = vst.msk [vmem:[#allocation2 + $0x1a8] sm:$0xff] %vm1015, %v1004
      %1070 = vst.msk [vmem:[#allocation2 + $0x1b0] sm:$0xff] %vm1015, %v1005
      %1071 = vst.msk [vmem:[#allocation2 + $0x1b8] sm:$0xff] %vm1015, %v1006
      %1072 = vst.msk [vmem:[#allocation2 + $0x1c0] sm:$0xff] %vm1015, %v1007
      %1073 = vst.msk [vmem:[#allocation2 + $0x1c8] sm:$0xff] %vm1015, %v1008
      %1074 = vst.msk [vmem:[#allocation2 + $0x1d0] sm:$0xff] %vm1015, %v1009
      %1075 = vst.msk [vmem:[#allocation2 + $0x1d8] sm:$0xff] %vm1015, %v1010
      %1076 = vst.msk [vmem:[#allocation2 + $0x1e0] sm:$0xff] %vm1015, %v1011
      %1077 = vst.msk [vmem:[#allocation2 + $0x1e8] sm:$0xff] %vm1015, %v1012
      %1078 = vst.msk [vmem:[#allocation2 + $0x1f0] sm:$0xff] %vm1015, %v1013
      %1079 = vst.msk [vmem:[#allocation2 + $0x1f8] sm:$0xff] %vm1015, %v1014
      // Predicated region
      $region33: #{conv_bn_leaky.2} parent=27 // pred_check
        %p1080 = pneg %p306
      $region34: #{conv_bn_leaky.2} parent=27 // pred_check_branch
        %1082 = sbr.rel (%p1080) target = $region36
      $region35: #{conv_bn_leaky.2} parent=27 // pred_region
        %v1083 = vld [vmem:[#allocation2] sm:$0xff]
        %v1084 = vld [vmem:[#allocation2 + $0x8] sm:$0xff]
        %v1085 = vld [vmem:[#allocation2 + $0x10] sm:$0xff]
        %v1086 = vld [vmem:[#allocation2 + $0x18] sm:$0xff]
        %v1087 = vld [vmem:[#allocation2 + $0x20] sm:$0xff]
        %v1088 = vld [vmem:[#allocation2 + $0x28] sm:$0xff]
        %v1089 = vld [vmem:[#allocation2 + $0x30] sm:$0xff]
        %v1090 = vld [vmem:[#allocation2 + $0x38] sm:$0xff]
        %v1091 = vld [vmem:[#allocation2 + $0x40] sm:$0xff]
        %v1092 = vld [vmem:[#allocation2 + $0x48] sm:$0xff]
        %v1093 = vld [vmem:[#allocation2 + $0x50] sm:$0xff]
        %v1094 = vld [vmem:[#allocation2 + $0x58] sm:$0xff]
        %v1095 = vld [vmem:[#allocation2 + $0x60] sm:$0xff]
        %v1096 = vld [vmem:[#allocation2 + $0x68] sm:$0xff]
        %v1097 = vld [vmem:[#allocation2 + $0x70] sm:$0xff]
        %v1098 = vld [vmem:[#allocation2 + $0x78] sm:$0xff]
        %v1099 = vld [vmem:[#allocation2 + $0x80] sm:$0xff]
        %v1100 = vld [vmem:[#allocation2 + $0x88] sm:$0xff]
        %v1101 = vld [vmem:[#allocation2 + $0x90] sm:$0xff]
        %v1102 = vld [vmem:[#allocation2 + $0x98] sm:$0xff]
        %v1103 = vld [vmem:[#allocation2 + $0xa0] sm:$0xff]
        %v1104 = vld [vmem:[#allocation2 + $0xa8] sm:$0xff]
        %v1105 = vld [vmem:[#allocation2 + $0xb0] sm:$0xff]
        %v1106 = vld [vmem:[#allocation2 + $0xb8] sm:$0xff]
        %v1107 = vld [vmem:[#allocation2 + $0xc0] sm:$0xff]
        %v1108 = vld [vmem:[#allocation2 + $0xc8] sm:$0xff]
        %v1109 = vld [vmem:[#allocation2 + $0xd0] sm:$0xff]
        %v1110 = vld [vmem:[#allocation2 + $0xd8] sm:$0xff]
        %v1111 = vld [vmem:[#allocation2 + $0xe0] sm:$0xff]
        %v1112 = vld [vmem:[#allocation2 + $0xe8] sm:$0xff]
        %v1113 = vld [vmem:[#allocation2 + $0xf0] sm:$0xff]
        %v1114 = vld [vmem:[#allocation2 + $0xf8] sm:$0xff]
        %v1115 = vld [vmem:[#allocation2 + $0x100] sm:$0xff]
        %v1116 = vld [vmem:[#allocation2 + $0x108] sm:$0xff]
        %v1117 = vld [vmem:[#allocation2 + $0x110] sm:$0xff]
        %v1118 = vld [vmem:[#allocation2 + $0x118] sm:$0xff]
        %v1119 = vld [vmem:[#allocation2 + $0x120] sm:$0xff]
        %v1120 = vld [vmem:[#allocation2 + $0x128] sm:$0xff]
        %v1121 = vld [vmem:[#allocation2 + $0x130] sm:$0xff]
        %v1122 = vld [vmem:[#allocation2 + $0x138] sm:$0xff]
        %v1123 = vld [vmem:[#allocation2 + $0x140] sm:$0xff]
        %v1124 = vld [vmem:[#allocation2 + $0x148] sm:$0xff]
        %v1125 = vld [vmem:[#allocation2 + $0x150] sm:$0xff]
        %v1126 = vld [vmem:[#allocation2 + $0x158] sm:$0xff]
        %v1127 = vld [vmem:[#allocation2 + $0x160] sm:$0xff]
        %v1128 = vld [vmem:[#allocation2 + $0x168] sm:$0xff]
        %v1129 = vld [vmem:[#allocation2 + $0x170] sm:$0xff]
        %v1130 = vld [vmem:[#allocation2 + $0x178] sm:$0xff]
        %v1131 = vld [vmem:[#allocation2 + $0x180] sm:$0xff]
        %v1132 = vld [vmem:[#allocation2 + $0x188] sm:$0xff]
        %v1133 = vld [vmem:[#allocation2 + $0x190] sm:$0xff]
        %v1134 = vld [vmem:[#allocation2 + $0x198] sm:$0xff]
        %v1135 = vld [vmem:[#allocation2 + $0x1a0] sm:$0xff]
        %v1136 = vld [vmem:[#allocation2 + $0x1a8] sm:$0xff]
        %v1137 = vld [vmem:[#allocation2 + $0x1b0] sm:$0xff]
        %v1138 = vld [vmem:[#allocation2 + $0x1b8] sm:$0xff]
        %v1139 = vld [vmem:[#allocation2 + $0x1c0] sm:$0xff]
        %v1140 = vld [vmem:[#allocation2 + $0x1c8] sm:$0xff]
        %v1141 = vld [vmem:[#allocation2 + $0x1d0] sm:$0xff]
        %v1142 = vld [vmem:[#allocation2 + $0x1d8] sm:$0xff]
        %v1143 = vld [vmem:[#allocation2 + $0x1e0] sm:$0xff]
        %v1144 = vld [vmem:[#allocation2 + $0x1e8] sm:$0xff]
        %v1145 = vld [vmem:[#allocation2 + $0x1f0] sm:$0xff]
        %v1146 = vld [vmem:[#allocation2 + $0x1f8] sm:$0xff]
        %v1147 = vpack.c.bf16 %v1083, %v1083
        %v1148 = vpack.c.bf16 %v1084, %v1084
        %v1149 = vpack.c.bf16 %v1085, %v1085
        %v1150 = vpack.c.bf16 %v1086, %v1086
        %v1151 = vpack.c.bf16 %v1087, %v1087
        %v1152 = vpack.c.bf16 %v1088, %v1088
        %v1153 = vpack.c.bf16 %v1089, %v1089
        %v1154 = vpack.c.bf16 %v1090, %v1090
        %v1155 = vpack.c.bf16 %v1091, %v1091
        %v1156 = vpack.c.bf16 %v1092, %v1092
        %v1157 = vpack.c.bf16 %v1093, %v1093
        %v1158 = vpack.c.bf16 %v1094, %v1094
        %v1159 = vpack.c.bf16 %v1095, %v1095
        %v1160 = vpack.c.bf16 %v1096, %v1096
        %v1161 = vpack.c.bf16 %v1097, %v1097
        %v1162 = vpack.c.bf16 %v1098, %v1098
        %v1163 = vpack.c.bf16 %v1099, %v1099
        %v1164 = vpack.c.bf16 %v1100, %v1100
        %v1165 = vpack.c.bf16 %v1101, %v1101
        %v1166 = vpack.c.bf16 %v1102, %v1102
        %v1167 = vpack.c.bf16 %v1103, %v1103
        %v1168 = vpack.c.bf16 %v1104, %v1104
        %v1169 = vpack.c.bf16 %v1105, %v1105
        %v1170 = vpack.c.bf16 %v1106, %v1106
        %v1171 = vpack.c.bf16 %v1107, %v1107
        %v1172 = vpack.c.bf16 %v1108, %v1108
        %v1173 = vpack.c.bf16 %v1109, %v1109
        %v1174 = vpack.c.bf16 %v1110, %v1110
        %v1175 = vpack.c.bf16 %v1111, %v1111
        %v1176 = vpack.c.bf16 %v1112, %v1112
        %v1177 = vpack.c.bf16 %v1113, %v1113
        %v1178 = vpack.c.bf16 %v1114, %v1114
        %v1179 = vpack.c.bf16 %v1115, %v1115
        %v1180 = vpack.c.bf16 %v1116, %v1116
        %v1181 = vpack.c.bf16 %v1117, %v1117
        %v1182 = vpack.c.bf16 %v1118, %v1118
        %v1183 = vpack.c.bf16 %v1119, %v1119
        %v1184 = vpack.c.bf16 %v1120, %v1120
        %v1185 = vpack.c.bf16 %v1121, %v1121
        %v1186 = vpack.c.bf16 %v1122, %v1122
        %v1187 = vpack.c.bf16 %v1123, %v1123
        %v1188 = vpack.c.bf16 %v1124, %v1124
        %v1189 = vpack.c.bf16 %v1125, %v1125
        %v1190 = vpack.c.bf16 %v1126, %v1126
        %v1191 = vpack.c.bf16 %v1127, %v1127
        %v1192 = vpack.c.bf16 %v1128, %v1128
        %v1193 = vpack.c.bf16 %v1129, %v1129
        %v1194 = vpack.c.bf16 %v1130, %v1130
        %v1195 = vpack.c.bf16 %v1131, %v1131
        %v1196 = vpack.c.bf16 %v1132, %v1132
        %v1197 = vpack.c.bf16 %v1133, %v1133
        %v1198 = vpack.c.bf16 %v1134, %v1134
        %v1199 = vpack.c.bf16 %v1135, %v1135
        %v1200 = vpack.c.bf16 %v1136, %v1136
        %v1201 = vpack.c.bf16 %v1137, %v1137
        %v1202 = vpack.c.bf16 %v1138, %v1138
        %v1203 = vpack.c.bf16 %v1139, %v1139
        %v1204 = vpack.c.bf16 %v1140, %v1140
        %v1205 = vpack.c.bf16 %v1141, %v1141
        %v1206 = vpack.c.bf16 %v1142, %v1142
        %v1207 = vpack.c.bf16 %v1143, %v1143
        %v1208 = vpack.c.bf16 %v1144, %v1144
        %v1209 = vpack.c.bf16 %v1145, %v1145
        %v1210 = vpack.c.bf16 %v1146, %v1146
        %vm1211 = vcmask 257024
        %1212 = vst.msk [vmem:[%s291] sm:$0xf] %vm1211, %v1147
        %1213 = vst.msk [vmem:[%s291 + $0x4] sm:$0xf] %vm1211, %v1148
        %1214 = vst.msk [vmem:[%s291 + $0x8] sm:$0xf] %vm1211, %v1149
        %1215 = vst.msk [vmem:[%s291 + $0xc] sm:$0xf] %vm1211, %v1150
        %1216 = vst.msk [vmem:[%s291 + $0x10] sm:$0xf] %vm1211, %v1151
        %1217 = vst.msk [vmem:[%s291 + $0x14] sm:$0xf] %vm1211, %v1152
        %1218 = vst.msk [vmem:[%s291 + $0x18] sm:$0xf] %vm1211, %v1153
        %1219 = vst.msk [vmem:[%s291 + $0x1c] sm:$0xf] %vm1211, %v1154
        %1220 = vst.msk [vmem:[%s291 + $0x20] sm:$0xf] %vm1211, %v1155
        %1221 = vst.msk [vmem:[%s291 + $0x24] sm:$0xf] %vm1211, %v1156
        %1222 = vst.msk [vmem:[%s291 + $0x28] sm:$0xf] %vm1211, %v1157
        %1223 = vst.msk [vmem:[%s291 + $0x2c] sm:$0xf] %vm1211, %v1158
        %1224 = vst.msk [vmem:[%s291 + $0x30] sm:$0xf] %vm1211, %v1159
        %1225 = vst.msk [vmem:[%s291 + $0x34] sm:$0xf] %vm1211, %v1160
        %1226 = vst.msk [vmem:[%s291 + $0x38] sm:$0xf] %vm1211, %v1161
        %1227 = vst.msk [vmem:[%s291 + $0x3c] sm:$0xf] %vm1211, %v1162
        %1228 = vst.msk [vmem:[%s291 + $0x40] sm:$0xf] %vm1211, %v1163
        %1229 = vst.msk [vmem:[%s291 + $0x44] sm:$0xf] %vm1211, %v1164
        %1230 = vst.msk [vmem:[%s291 + $0x48] sm:$0xf] %vm1211, %v1165
        %1231 = vst.msk [vmem:[%s291 + $0x4c] sm:$0xf] %vm1211, %v1166
        %1232 = vst.msk [vmem:[%s291 + $0x50] sm:$0xf] %vm1211, %v1167
        %1233 = vst.msk [vmem:[%s291 + $0x54] sm:$0xf] %vm1211, %v1168
        %1234 = vst.msk [vmem:[%s291 + $0x58] sm:$0xf] %vm1211, %v1169
        %1235 = vst.msk [vmem:[%s291 + $0x5c] sm:$0xf] %vm1211, %v1170
        %1236 = vst.msk [vmem:[%s291 + $0x60] sm:$0xf] %vm1211, %v1171
        %1237 = vst.msk [vmem:[%s291 + $0x64] sm:$0xf] %vm1211, %v1172
        %1238 = vst.msk [vmem:[%s291 + $0x68] sm:$0xf] %vm1211, %v1173
        %1239 = vst.msk [vmem:[%s291 + $0x6c] sm:$0xf] %vm1211, %v1174
        %1240 = vst.msk [vmem:[%s291 + $0x70] sm:$0xf] %vm1211, %v1175
        %1241 = vst.msk [vmem:[%s291 + $0x74] sm:$0xf] %vm1211, %v1176
        %1242 = vst.msk [vmem:[%s291 + $0x78] sm:$0xf] %vm1211, %v1177
        %1243 = vst.msk [vmem:[%s291 + $0x7c] sm:$0xf] %vm1211, %v1178
        %1244 = vst.msk [vmem:[%s291 + $0x80] sm:$0xf] %vm1211, %v1179
        %1245 = vst.msk [vmem:[%s291 + $0x84] sm:$0xf] %vm1211, %v1180
        %1246 = vst.msk [vmem:[%s291 + $0x88] sm:$0xf] %vm1211, %v1181
        %1247 = vst.msk [vmem:[%s291 + $0x8c] sm:$0xf] %vm1211, %v1182
        %1248 = vst.msk [vmem:[%s291 + $0x90] sm:$0xf] %vm1211, %v1183
        %1249 = vst.msk [vmem:[%s291 + $0x94] sm:$0xf] %vm1211, %v1184
        %1250 = vst.msk [vmem:[%s291 + $0x98] sm:$0xf] %vm1211, %v1185
        %1251 = vst.msk [vmem:[%s291 + $0x9c] sm:$0xf] %vm1211, %v1186
        %1252 = vst.msk [vmem:[%s291 + $0xa0] sm:$0xf] %vm1211, %v1187
        %1253 = vst.msk [vmem:[%s291 + $0xa4] sm:$0xf] %vm1211, %v1188
        %1254 = vst.msk [vmem:[%s291 + $0xa8] sm:$0xf] %vm1211, %v1189
        %1255 = vst.msk [vmem:[%s291 + $0xac] sm:$0xf] %vm1211, %v1190
        %1256 = vst.msk [vmem:[%s291 + $0xb0] sm:$0xf] %vm1211, %v1191
        %1257 = vst.msk [vmem:[%s291 + $0xb4] sm:$0xf] %vm1211, %v1192
        %1258 = vst.msk [vmem:[%s291 + $0xb8] sm:$0xf] %vm1211, %v1193
        %1259 = vst.msk [vmem:[%s291 + $0xbc] sm:$0xf] %vm1211, %v1194
        %1260 = vst.msk [vmem:[%s291 + $0xc0] sm:$0xf] %vm1211, %v1195
        %1261 = vst.msk [vmem:[%s291 + $0xc4] sm:$0xf] %vm1211, %v1196
        %1262 = vst.msk [vmem:[%s291 + $0xc8] sm:$0xf] %vm1211, %v1197
        %1263 = vst.msk [vmem:[%s291 + $0xcc] sm:$0xf] %vm1211, %v1198
        %1264 = vst.msk [vmem:[%s291 + $0xd0] sm:$0xf] %vm1211, %v1199
        %1265 = vst.msk [vmem:[%s291 + $0xd4] sm:$0xf] %vm1211, %v1200
        %1266 = vst.msk [vmem:[%s291 + $0xd8] sm:$0xf] %vm1211, %v1201
        %1267 = vst.msk [vmem:[%s291 + $0xdc] sm:$0xf] %vm1211, %v1202
        %1268 = vst.msk [vmem:[%s291 + $0xe0] sm:$0xf] %vm1211, %v1203
        %1269 = vst.msk [vmem:[%s291 + $0xe4] sm:$0xf] %vm1211, %v1204
        %1270 = vst.msk [vmem:[%s291 + $0xe8] sm:$0xf] %vm1211, %v1205
        %1271 = vst.msk [vmem:[%s291 + $0xec] sm:$0xf] %vm1211, %v1206
        %1272 = vst.msk [vmem:[%s291 + $0xf0] sm:$0xf] %vm1211, %v1207
        %1273 = vst.msk [vmem:[%s291 + $0xf4] sm:$0xf] %vm1211, %v1208
        %1274 = vst.msk [vmem:[%s291 + $0xf8] sm:$0xf] %vm1211, %v1209
        %1275 = vst.msk [vmem:[%s291 + $0xfc] sm:$0xf] %vm1211, %v1210
        %v1276 = vsel %vm1015, %v1083, 0.0
        %v1277 = vsel %vm1015, %v1084, 0.0
        %v1278 = vadd.f32 %v1276, %v1277
        %v1279 = vsel %vm1015, %v1085, 0.0
        %v1280 = vadd.f32 %v1278, %v1279
        %v1281 = vsel %vm1015, %v1086, 0.0
        %v1282 = vadd.f32 %v1280, %v1281
        %v1283 = vsel %vm1015, %v1087, 0.0
        %v1284 = vadd.f32 %v1282, %v1283
        %v1285 = vsel %vm1015, %v1088, 0.0
        %v1286 = vadd.f32 %v1284, %v1285
        %v1287 = vsel %vm1015, %v1089, 0.0
        %v1288 = vadd.f32 %v1286, %v1287
        %v1289 = vsel %vm1015, %v1090, 0.0
        %v1290 = vadd.f32 %v1288, %v1289
        %v1291 = vsel %vm1015, %v1091, 0.0
        %v1292 = vadd.f32 %v1290, %v1291
        %v1293 = vsel %vm1015, %v1092, 0.0
        %v1294 = vadd.f32 %v1292, %v1293
        %v1295 = vsel %vm1015, %v1093, 0.0
        %v1296 = vadd.f32 %v1294, %v1295
        %v1297 = vsel %vm1015, %v1094, 0.0
        %v1298 = vadd.f32 %v1296, %v1297
        %v1299 = vsel %vm1015, %v1095, 0.0
        %v1300 = vadd.f32 %v1298, %v1299
        %v1301 = vsel %vm1015, %v1096, 0.0
        %v1302 = vadd.f32 %v1300, %v1301
        %v1303 = vsel %vm1015, %v1097, 0.0
        %v1304 = vadd.f32 %v1302, %v1303
        %v1305 = vsel %vm1015, %v1098, 0.0
        %v1306 = vadd.f32 %v1304, %v1305
        %v1307 = vsel %vm1015, %v1099, 0.0
        %v1308 = vadd.f32 %v1306, %v1307
        %v1309 = vsel %vm1015, %v1100, 0.0
        %v1310 = vadd.f32 %v1308, %v1309
        %v1311 = vsel %vm1015, %v1101, 0.0
        %v1312 = vadd.f32 %v1310, %v1311
        %v1313 = vsel %vm1015, %v1102, 0.0
        %v1314 = vadd.f32 %v1312, %v1313
        %v1315 = vsel %vm1015, %v1103, 0.0
        %v1316 = vadd.f32 %v1314, %v1315
        %v1317 = vsel %vm1015, %v1104, 0.0
        %v1318 = vadd.f32 %v1316, %v1317
        %v1319 = vsel %vm1015, %v1105, 0.0
        %v1320 = vadd.f32 %v1318, %v1319
        %v1321 = vsel %vm1015, %v1106, 0.0
        %v1322 = vadd.f32 %v1320, %v1321
        %v1323 = vsel %vm1015, %v1107, 0.0
        %v1324 = vadd.f32 %v1322, %v1323
        %v1325 = vsel %vm1015, %v1108, 0.0
        %v1326 = vadd.f32 %v1324, %v1325
        %v1327 = vsel %vm1015, %v1109, 0.0
        %v1328 = vadd.f32 %v1326, %v1327
        %v1329 = vsel %vm1015, %v1110, 0.0
        %v1330 = vadd.f32 %v1328, %v1329
        %v1331 = vsel %vm1015, %v1111, 0.0
        %v1332 = vadd.f32 %v1330, %v1331
        %v1333 = vsel %vm1015, %v1112, 0.0
        %v1334 = vadd.f32 %v1332, %v1333
        %v1335 = vsel %vm1015, %v1113, 0.0
        %v1336 = vadd.f32 %v1334, %v1335
        %v1337 = vsel %vm1015, %v1114, 0.0
        %v1338 = vadd.f32 %v1336, %v1337
        %v1339 = vsel %vm1015, %v1115, 0.0
        %v1340 = vadd.f32 %v1338, %v1339
        %v1341 = vsel %vm1015, %v1116, 0.0
        %v1342 = vadd.f32 %v1340, %v1341
        %v1343 = vsel %vm1015, %v1117, 0.0
        %v1344 = vadd.f32 %v1342, %v1343
        %v1345 = vsel %vm1015, %v1118, 0.0
        %v1346 = vadd.f32 %v1344, %v1345
        %v1347 = vsel %vm1015, %v1119, 0.0
        %v1348 = vadd.f32 %v1346, %v1347
        %v1349 = vsel %vm1015, %v1120, 0.0
        %v1350 = vadd.f32 %v1348, %v1349
        %v1351 = vsel %vm1015, %v1121, 0.0
        %v1352 = vadd.f32 %v1350, %v1351
        %v1353 = vsel %vm1015, %v1122, 0.0
        %v1354 = vadd.f32 %v1352, %v1353
        %v1355 = vsel %vm1015, %v1123, 0.0
        %v1356 = vadd.f32 %v1354, %v1355
        %v1357 = vsel %vm1015, %v1124, 0.0
        %v1358 = vadd.f32 %v1356, %v1357
        %v1359 = vsel %vm1015, %v1125, 0.0
        %v1360 = vadd.f32 %v1358, %v1359
        %v1361 = vsel %vm1015, %v1126, 0.0
        %v1362 = vadd.f32 %v1360, %v1361
        %v1363 = vsel %vm1015, %v1127, 0.0
        %v1364 = vadd.f32 %v1362, %v1363
        %v1365 = vsel %vm1015, %v1128, 0.0
        %v1366 = vadd.f32 %v1364, %v1365
        %v1367 = vsel %vm1015, %v1129, 0.0
        %v1368 = vadd.f32 %v1366, %v1367
        %v1369 = vsel %vm1015, %v1130, 0.0
        %v1370 = vadd.f32 %v1368, %v1369
        %v1371 = vsel %vm1015, %v1131, 0.0
        %v1372 = vadd.f32 %v1370, %v1371
        %v1373 = vsel %vm1015, %v1132, 0.0
        %v1374 = vadd.f32 %v1372, %v1373
        %v1375 = vsel %vm1015, %v1133, 0.0
        %v1376 = vadd.f32 %v1374, %v1375
        %v1377 = vsel %vm1015, %v1134, 0.0
        %v1378 = vadd.f32 %v1376, %v1377
        %v1379 = vsel %vm1015, %v1135, 0.0
        %v1380 = vadd.f32 %v1378, %v1379
        %v1381 = vsel %vm1015, %v1136, 0.0
        %v1382 = vadd.f32 %v1380, %v1381
        %v1383 = vsel %vm1015, %v1137, 0.0
        %v1384 = vadd.f32 %v1382, %v1383
        %v1385 = vsel %vm1015, %v1138, 0.0
        %v1386 = vadd.f32 %v1384, %v1385
        %v1387 = vsel %vm1015, %v1139, 0.0
        %v1388 = vadd.f32 %v1386, %v1387
        %v1389 = vsel %vm1015, %v1140, 0.0
        %v1390 = vadd.f32 %v1388, %v1389
        %v1391 = vsel %vm1015, %v1141, 0.0
        %v1392 = vadd.f32 %v1390, %v1391
        %v1393 = vsel %vm1015, %v1142, 0.0
        %v1394 = vadd.f32 %v1392, %v1393
        %v1395 = vsel %vm1015, %v1143, 0.0
        %v1396 = vadd.f32 %v1394, %v1395
        %v1397 = vsel %vm1015, %v1144, 0.0
        %v1398 = vadd.f32 %v1396, %v1397
        %v1399 = vsel %vm1015, %v1145, 0.0
        %v1400 = vadd.f32 %v1398, %v1399
        %v1401 = vsel %vm1015, %v1146, 0.0
        %v1402 = vadd.f32 %v1400, %v1401
        %v1403 = vrot.slane %v1402, 4
        %v1404 = vadd.f32 %v1402, %v1403
        %v1405 = vrot.slane %v1404, 2
        %v1406 = vadd.f32 %v1404, %v1405
        %v1407 = vrot.slane %v1406, 1
        %v1408 = vadd.f32 %v1406, %v1407
        %vm1409 = vcmask 253952
        %1410 = vst.msk [vmem:[%s298] sm:$0x1] %vm1409, %v1408
        %v1411 = vmul.f32 %v1083, %v1083
        %v1412 = vmul.f32 %v1084, %v1084
        %v1413 = vmul.f32 %v1085, %v1085
        %v1414 = vmul.f32 %v1086, %v1086
        %v1415 = vmul.f32 %v1087, %v1087
        %v1416 = vmul.f32 %v1088, %v1088
        %v1417 = vmul.f32 %v1089, %v1089
        %v1418 = vmul.f32 %v1090, %v1090
        %v1419 = vmul.f32 %v1091, %v1091
        %v1420 = vmul.f32 %v1092, %v1092
        %v1421 = vmul.f32 %v1093, %v1093
        %v1422 = vmul.f32 %v1094, %v1094
        %v1423 = vmul.f32 %v1095, %v1095
        %v1424 = vmul.f32 %v1096, %v1096
        %v1425 = vmul.f32 %v1097, %v1097
        %v1426 = vmul.f32 %v1098, %v1098
        %v1427 = vmul.f32 %v1099, %v1099
        %v1428 = vmul.f32 %v1100, %v1100
        %v1429 = vmul.f32 %v1101, %v1101
        %v1430 = vmul.f32 %v1102, %v1102
        %v1431 = vmul.f32 %v1103, %v1103
        %v1432 = vmul.f32 %v1104, %v1104
        %v1433 = vmul.f32 %v1105, %v1105
        %v1434 = vmul.f32 %v1106, %v1106
        %v1435 = vmul.f32 %v1107, %v1107
        %v1436 = vmul.f32 %v1108, %v1108
        %v1437 = vmul.f32 %v1109, %v1109
        %v1438 = vmul.f32 %v1110, %v1110
        %v1439 = vmul.f32 %v1111, %v1111
        %v1440 = vmul.f32 %v1112, %v1112
        %v1441 = vmul.f32 %v1113, %v1113
        %v1442 = vmul.f32 %v1114, %v1114
        %v1443 = vmul.f32 %v1115, %v1115
        %v1444 = vmul.f32 %v1116, %v1116
        %v1445 = vmul.f32 %v1117, %v1117
        %v1446 = vmul.f32 %v1118, %v1118
        %v1447 = vmul.f32 %v1119, %v1119
        %v1448 = vmul.f32 %v1120, %v1120
        %v1449 = vmul.f32 %v1121, %v1121
        %v1450 = vmul.f32 %v1122, %v1122
        %v1451 = vmul.f32 %v1123, %v1123
        %v1452 = vmul.f32 %v1124, %v1124
        %v1453 = vmul.f32 %v1125, %v1125
        %v1454 = vmul.f32 %v1126, %v1126
        %v1455 = vmul.f32 %v1127, %v1127
        %v1456 = vmul.f32 %v1128, %v1128
        %v1457 = vmul.f32 %v1129, %v1129
        %v1458 = vmul.f32 %v1130, %v1130
        %v1459 = vmul.f32 %v1131, %v1131
        %v1460 = vmul.f32 %v1132, %v1132
        %v1461 = vmul.f32 %v1133, %v1133
        %v1462 = vmul.f32 %v1134, %v1134
        %v1463 = vmul.f32 %v1135, %v1135
        %v1464 = vmul.f32 %v1136, %v1136
        %v1465 = vmul.f32 %v1137, %v1137
        %v1466 = vmul.f32 %v1138, %v1138
        %v1467 = vmul.f32 %v1139, %v1139
        %v1468 = vmul.f32 %v1140, %v1140
        %v1469 = vmul.f32 %v1141, %v1141
        %v1470 = vmul.f32 %v1142, %v1142
        %v1471 = vmul.f32 %v1143, %v1143
        %v1472 = vmul.f32 %v1144, %v1144
        %v1473 = vmul.f32 %v1145, %v1145
        %v1474 = vmul.f32 %v1146, %v1146
        %v1475 = vsel %vm1015, %v1411, 0.0
        %v1476 = vsel %vm1015, %v1412, 0.0
        %v1477 = vadd.f32 %v1475, %v1476
        %v1478 = vsel %vm1015, %v1413, 0.0
        %v1479 = vadd.f32 %v1477, %v1478
        %v1480 = vsel %vm1015, %v1414, 0.0
        %v1481 = vadd.f32 %v1479, %v1480
        %v1482 = vsel %vm1015, %v1415, 0.0
        %v1483 = vadd.f32 %v1481, %v1482
        %v1484 = vsel %vm1015, %v1416, 0.0
        %v1485 = vadd.f32 %v1483, %v1484
        %v1486 = vsel %vm1015, %v1417, 0.0
        %v1487 = vadd.f32 %v1485, %v1486
        %v1488 = vsel %vm1015, %v1418, 0.0
        %v1489 = vadd.f32 %v1487, %v1488
        %v1490 = vsel %vm1015, %v1419, 0.0
        %v1491 = vadd.f32 %v1489, %v1490
        %v1492 = vsel %vm1015, %v1420, 0.0
        %v1493 = vadd.f32 %v1491, %v1492
        %v1494 = vsel %vm1015, %v1421, 0.0
        %v1495 = vadd.f32 %v1493, %v1494
        %v1496 = vsel %vm1015, %v1422, 0.0
        %v1497 = vadd.f32 %v1495, %v1496
        %v1498 = vsel %vm1015, %v1423, 0.0
        %v1499 = vadd.f32 %v1497, %v1498
        %v1500 = vsel %vm1015, %v1424, 0.0
        %v1501 = vadd.f32 %v1499, %v1500
        %v1502 = vsel %vm1015, %v1425, 0.0
        %v1503 = vadd.f32 %v1501, %v1502
        %v1504 = vsel %vm1015, %v1426, 0.0
        %v1505 = vadd.f32 %v1503, %v1504
        %v1506 = vsel %vm1015, %v1427, 0.0
        %v1507 = vadd.f32 %v1505, %v1506
        %v1508 = vsel %vm1015, %v1428, 0.0
        %v1509 = vadd.f32 %v1507, %v1508
        %v1510 = vsel %vm1015, %v1429, 0.0
        %v1511 = vadd.f32 %v1509, %v1510
        %v1512 = vsel %vm1015, %v1430, 0.0
        %v1513 = vadd.f32 %v1511, %v1512
        %v1514 = vsel %vm1015, %v1431, 0.0
        %v1515 = vadd.f32 %v1513, %v1514
        %v1516 = vsel %vm1015, %v1432, 0.0
        %v1517 = vadd.f32 %v1515, %v1516
        %v1518 = vsel %vm1015, %v1433, 0.0
        %v1519 = vadd.f32 %v1517, %v1518
        %v1520 = vsel %vm1015, %v1434, 0.0
        %v1521 = vadd.f32 %v1519, %v1520
        %v1522 = vsel %vm1015, %v1435, 0.0
        %v1523 = vadd.f32 %v1521, %v1522
        %v1524 = vsel %vm1015, %v1436, 0.0
        %v1525 = vadd.f32 %v1523, %v1524
        %v1526 = vsel %vm1015, %v1437, 0.0
        %v1527 = vadd.f32 %v1525, %v1526
        %v1528 = vsel %vm1015, %v1438, 0.0
        %v1529 = vadd.f32 %v1527, %v1528
        %v1530 = vsel %vm1015, %v1439, 0.0
        %v1531 = vadd.f32 %v1529, %v1530
        %v1532 = vsel %vm1015, %v1440, 0.0
        %v1533 = vadd.f32 %v1531, %v1532
        %v1534 = vsel %vm1015, %v1441, 0.0
        %v1535 = vadd.f32 %v1533, %v1534
        %v1536 = vsel %vm1015, %v1442, 0.0
        %v1537 = vadd.f32 %v1535, %v1536
        %v1538 = vsel %vm1015, %v1443, 0.0
        %v1539 = vadd.f32 %v1537, %v1538
        %v1540 = vsel %vm1015, %v1444, 0.0
        %v1541 = vadd.f32 %v1539, %v1540
        %v1542 = vsel %vm1015, %v1445, 0.0
        %v1543 = vadd.f32 %v1541, %v1542
        %v1544 = vsel %vm1015, %v1446, 0.0
        %v1545 = vadd.f32 %v1543, %v1544
        %v1546 = vsel %vm1015, %v1447, 0.0
        %v1547 = vadd.f32 %v1545, %v1546
        %v1548 = vsel %vm1015, %v1448, 0.0
        %v1549 = vadd.f32 %v1547, %v1548
        %v1550 = vsel %vm1015, %v1449, 0.0
        %v1551 = vadd.f32 %v1549, %v1550
        %v1552 = vsel %vm1015, %v1450, 0.0
        %v1553 = vadd.f32 %v1551, %v1552
        %v1554 = vsel %vm1015, %v1451, 0.0
        %v1555 = vadd.f32 %v1553, %v1554
        %v1556 = vsel %vm1015, %v1452, 0.0
        %v1557 = vadd.f32 %v1555, %v1556
        %v1558 = vsel %vm1015, %v1453, 0.0
        %v1559 = vadd.f32 %v1557, %v1558
        %v1560 = vsel %vm1015, %v1454, 0.0
        %v1561 = vadd.f32 %v1559, %v1560
        %v1562 = vsel %vm1015, %v1455, 0.0
        %v1563 = vadd.f32 %v1561, %v1562
        %v1564 = vsel %vm1015, %v1456, 0.0
        %v1565 = vadd.f32 %v1563, %v1564
        %v1566 = vsel %vm1015, %v1457, 0.0
        %v1567 = vadd.f32 %v1565, %v1566
        %v1568 = vsel %vm1015, %v1458, 0.0
        %v1569 = vadd.f32 %v1567, %v1568
        %v1570 = vsel %vm1015, %v1459, 0.0
        %v1571 = vadd.f32 %v1569, %v1570
        %v1572 = vsel %vm1015, %v1460, 0.0
        %v1573 = vadd.f32 %v1571, %v1572
        %v1574 = vsel %vm1015, %v1461, 0.0
        %v1575 = vadd.f32 %v1573, %v1574
        %v1576 = vsel %vm1015, %v1462, 0.0
        %v1577 = vadd.f32 %v1575, %v1576
        %v1578 = vsel %vm1015, %v1463, 0.0
        %v1579 = vadd.f32 %v1577, %v1578
        %v1580 = vsel %vm1015, %v1464, 0.0
        %v1581 = vadd.f32 %v1579, %v1580
        %v1582 = vsel %vm1015, %v1465, 0.0
        %v1583 = vadd.f32 %v1581, %v1582
        %v1584 = vsel %vm1015, %v1466, 0.0
        %v1585 = vadd.f32 %v1583, %v1584
        %v1586 = vsel %vm1015, %v1467, 0.0
        %v1587 = vadd.f32 %v1585, %v1586
        %v1588 = vsel %vm1015, %v1468, 0.0
        %v1589 = vadd.f32 %v1587, %v1588
        %v1590 = vsel %vm1015, %v1469, 0.0
        %v1591 = vadd.f32 %v1589, %v1590
        %v1592 = vsel %vm1015, %v1470, 0.0
        %v1593 = vadd.f32 %v1591, %v1592
        %v1594 = vsel %vm1015, %v1471, 0.0
        %v1595 = vadd.f32 %v1593, %v1594
        %v1596 = vsel %vm1015, %v1472, 0.0
        %v1597 = vadd.f32 %v1595, %v1596
        %v1598 = vsel %vm1015, %v1473, 0.0
        %v1599 = vadd.f32 %v1597, %v1598
        %v1600 = vsel %vm1015, %v1474, 0.0
        %v1601 = vadd.f32 %v1599, %v1600
        %v1602 = vrot.slane %v1601, 4
        %v1603 = vadd.f32 %v1601, %v1602
        %v1604 = vrot.slane %v1603, 2
        %v1605 = vadd.f32 %v1603, %v1604
        %v1606 = vrot.slane %v1605, 1
        %v1607 = vadd.f32 %v1605, %v1606
        %1608 = vst.msk [vmem:[%s304] sm:$0x1] %vm1409, %v1607
      $region36: #{conv_bn_leaky.2} parent=27 // pred_fallthru
        _
      %s1609 = smul.u32 64, %s21
      %p1610 = scmp.lt.s32.totalorder %s1609, 1023
      %s1611 = scalar_select %p1610, %s1609, 1023
      %p1612 = scmp.lt.s32.totalorder %s22, 0
      %s1613 = scalar_select %p1612, %s22, 0
      %s1614 = sadd.s32 %s1613, %s1611
      %s1615 = smul.addr %s1614, 4
      %s1616 = scalar_lea.vmem %s2, %s1615
      %p1617 = scmp.lt.s32.totalorder %s21, 15
      %s1618 = scalar_select %p1617, %s21, 15
      %p1619 = scmp.lt.s32.totalorder %s22, 0
      %s1620 = scalar_select %p1619, %s22, 0
      %s1621 = sadd.s32 %s1620, %s1618
      %s1622 = scalar_lea.vmem %s3, %s1621
      %p1623 = scmp.lt.s32.totalorder %s21, 15
      %s1624 = scalar_select %p1623, %s21, 15
      %p1625 = scmp.lt.s32.totalorder %s22, 0
      %s1626 = scalar_select %p1625, %s22, 0
      %s1627 = sadd.s32 %s1626, %s1624
      %s1628 = scalar_lea.vmem %s4, %s1627
      // Predicated region
      $region37: #{conv_bn_leaky.2} parent=27 // pred_check
        %p1629 = pneg %p111
      $region38: #{conv_bn_leaky.2} parent=27 // pred_check_branch
        %1631 = sbr.rel (%p1629) target = $region40
      $region39: #{conv_bn_leaky.2} parent=27 // pred_region
        %s1632 = smul.u32 64, %s21
      $region40: #{conv_bn_leaky.2} parent=27 // pred_fallthru
        _
      // Predicated region
      $region41: #{conv_bn_leaky.2} parent=27 // pred_check
        %p1633 = pneg %p139
      $region42: #{conv_bn_leaky.2} parent=27 // pred_check_branch
        %1635 = sbr.rel (%p1633) target = $region44
      $region43: #{conv_bn_leaky.2} parent=27 // pred_region
        _
      $region44: #{conv_bn_leaky.2} parent=27 // pred_fallthru
        _
      // Predicated region
      $region45: #{conv_bn_leaky.2} parent=27 // pred_check
        %p1636 = pneg %p167
      $region46: #{conv_bn_leaky.2} parent=27 // pred_check_branch
        %1638 = sbr.rel (%p1636) target = $region48
      $region47: #{conv_bn_leaky.2} parent=27 // pred_region
        _
      $region48: #{conv_bn_leaky.2} parent=27 // pred_fallthru
        _
    $region28: #{conv_bn_leaky.2} parent=5 // pred_fallthru
      _
    %p1639 = scmp.le.s32.totalorder 2, %s11
    // Predicated region
    $region49: #{conv_bn_leaky.2} parent=5 // pred_check
      %p1640 = pneg %p1639
    $region50: #{conv_bn_leaky.2} parent=5 // pred_check_branch
      %1642 = sbr.rel (%p1640) target = $region52
    $region51: #{conv_bn_leaky.2} parent=5 // pred_region
      %s1643 = ssub.s32 %s11, 2
      // Predicated region
      $region53: #{conv_bn_leaky.2} parent=51 // pred_check
        %p1644 = pneg %p117
      $region54: #{conv_bn_leaky.2} parent=51 // pred_check_branch
        %1646 = sbr.rel (%p1644) target = $region56
      $region55: #{conv_bn_leaky.2} parent=51 // pred_region
        %s1647 = smul.u32 64, %s24
        %p1648 = scmp.lt.s32.totalorder %s1647, 1023
        %s1649 = scalar_select %p1648, %s1647, 1023
        %p1650 = scmp.lt.s32.totalorder %s25, 0
        %s1651 = scalar_select %p1650, %s25, 0
        %s1652 = sadd.s32 %s1651, %s1649
        %s1653 = smul.addr %s1652, 4
        %s1654 = scalar_lea.vmem %s2, %s1653
      $region56: #{conv_bn_leaky.2} parent=51 // pred_fallthru
        _
      // Predicated region
      $region57: #{conv_bn_leaky.2} parent=51 // pred_check
        %p1655 = pneg %p145
      $region58: #{conv_bn_leaky.2} parent=51 // pred_check_branch
        %1657 = sbr.rel (%p1655) target = $region60
      $region59: #{conv_bn_leaky.2} parent=51 // pred_region
        %p1658 = scmp.lt.s32.totalorder %s24, 15
        %s1659 = scalar_select %p1658, %s24, 15
        %p1660 = scmp.lt.s32.totalorder %s25, 0
        %s1661 = scalar_select %p1660, %s25, 0
        %s1662 = sadd.s32 %s1661, %s1659
        %s1663 = scalar_lea.vmem %s3, %s1662
      $region60: #{conv_bn_leaky.2} parent=51 // pred_fallthru
        _
      // Predicated region
      $region61: #{conv_bn_leaky.2} parent=51 // pred_check
        %p1664 = pneg %p173
      $region62: #{conv_bn_leaky.2} parent=51 // pred_check_branch
        %1666 = sbr.rel (%p1664) target = $region64
      $region63: #{conv_bn_leaky.2} parent=51 // pred_region
        %p1667 = scmp.lt.s32.totalorder %s24, 15
        %s1668 = scalar_select %p1667, %s24, 15
        %p1669 = scmp.lt.s32.totalorder %s25, 0
        %s1670 = scalar_select %p1669, %s25, 0
        %s1671 = sadd.s32 %s1670, %s1668
        %s1672 = scalar_lea.vmem %s4, %s1671
      $region64: #{conv_bn_leaky.2} parent=51 // pred_fallthru
        _
    $region52: #{conv_bn_leaky.2} parent=5 // pred_fallthru
      _
  $region6: #{conv_bn_leaky.2} parent=0 // loop_footer
    %s15 = sadd.s32 1, %s11
  $region7: #{conv_bn_leaky.2} parent=0 // loop_footer_branch
    %10 = sbr.rel target = $region3
  $region8: #{conv_bn_leaky.2} parent=0 // loop_exit
    _

// kernel: conv_bn_leaky.3
$region0: #{conv_bn_leaky.3}
  #allocation0 [shape = 'u32[]', space=smem, size = 0x4, offset = 0x4, fixed_abs, tag = 'smem constant byte address 0x4 - core index']
  #allocation1 [shape = 'u32[72,128]{1,0:T(1,128)}', space=vmem, size = 0x9000, scoped, tag = 'internal scratch']
  %s0 = inlined_call_operand.vmem [shape: bf16[8192,32], index: 0, kind: input, shape index: {}]
  %s1 = inlined_call_operand.vmem [shape: f32[1,32], index: 1, kind: input, shape index: {}]
  %s2 = inlined_call_operand.vmem [shape: f32[1,32], index: 2, kind: input, shape index: {}]
  %s3 = inlined_call_operand.vmem [shape: bf16[8192,32], index: 3, kind: output, shape index: {}]
  %s4 = sld [smem:[#allocation0]]
  $region45: #{conv_bn_leaky.3} parent=0
    _
  %s6 = ssub.s32 1, %s4
  %s7 = scalar_select 0, %s6, %s4
  loop: start=0, step=1, limit=10
  $region2: #{conv_bn_leaky.3} parent=0 // loop_pre_header
    _
  $region3: #{conv_bn_leaky.3} parent=0 // loop_header
    %s9 = sphi 0, %s13
    %p10 = scmp.ge.s32.totalorder %s9, 10
    %s16 = sphi 0, %s28
    %s17 = sphi 0, %s24
    %s18 = sphi 0, %s16
    %s19 = sphi 0, %s17
    %s20 = sphi 0, %s18
    %s21 = sphi 0, %s19
    %s33 = sphi 0, %s35
    %s36 = sphi 0, %s33
    %s37 = sphi 0, %s36
    %s53 = sphi 0, %s37
    %s59 = sphi 0, %s61
    %s62 = sphi 0, %s59
    %s63 = sphi 0, %s62
    %s79 = sphi 0, %s63
    %s85 = sphi 0, %s87
    %s88 = sphi 0, %s85
    %s89 = sphi 0, %s88
    %s105 = sphi 0, %s89
    %s113 = sphi 0, %s115
    %s116 = sphi 0, %s113
    %s117 = sphi 0, %s116
    %s133 = sphi 0, %s117
  $region4: #{conv_bn_leaky.3} parent=0 // loop_header_branch
    %12 = sbr.rel (%p10) target = $region8
  $region5: #{conv_bn_leaky.3} parent=0 // loop_body
    %s14 = ssub.s32 %s9, 1
    %s15 = ssub.s32 %s9, 2
    %s22 = sadd.s32 1, %s17
    %p23 = scmp.ge.s32.totalorder %s22, 1
    %s24 = scalar_select %p23, 0, %s22
    %s25 = sadd.s32 1, %s16
    %s26 = scalar_select %p23, %s25, %s16
    %p27 = scmp.ge.s32.totalorder %s26, 8
    %s28 = scalar_select %p27, 0, %s26
    %s29 = ssub.s32 %s16, %s28
    %s30 = ssub.s32 %s17, %s24
    %s31 = sor.u32 %s29, %s30
    %p32 = scmp.eq.s32.totalorder %s31, 0
    %s34 = sadd.s32 %s33, 1
    %s35 = scalar_select %p32, %s33, %s34
    %p38 = pneg %p32
    %p39 = scmp.eq.s32.totalorder %s9, 7
    %p40 = por %p38, %p39
    %p41 = scmp.ne.s32.totalorder %s33, %s36
    %p42 = scmp.eq.s32.totalorder %s9, 0
    %p43 = por %p41, %p42
    %p44 = scmp.ne.s32.totalorder %s33, %s36
    %p45 = scmp.eq.s32.totalorder %s14, 7
    %p46 = por %p44, %p45
    %p47 = scmp.ne.s32.totalorder %s36, %s37
    %p48 = scmp.eq.s32.totalorder %s14, 0
    %p49 = por %p47, %p48
    %p50 = scmp.ne.s32.totalorder %s36, %s37
    %p51 = scmp.eq.s32.totalorder %s15, 7
    %p52 = por %p50, %p51
    %p54 = scmp.ne.s32.totalorder %s37, %s53
    %p55 = scmp.eq.s32.totalorder %s15, 0
    %p56 = por %p54, %p55
    %s57 = ssub.s32 %s17, %s24
    %p58 = scmp.eq.s32.totalorder %s57, 0
    %s60 = sadd.s32 %s59, 1
    %s61 = scalar_select %p58, %s59, %s60
    %p64 = pneg %p58
    %p65 = scmp.eq.s32.totalorder %s9, 7
    %p66 = por %p64, %p65
    %p67 = scmp.ne.s32.totalorder %s59, %s62
    %p68 = scmp.eq.s32.totalorder %s9, 0
    %p69 = por %p67, %p68
    %p70 = scmp.ne.s32.totalorder %s59, %s62
    %p71 = scmp.eq.s32.totalorder %s14, 7
    %p72 = por %p70, %p71
    %p73 = scmp.ne.s32.totalorder %s62, %s63
    %p74 = scmp.eq.s32.totalorder %s14, 0
    %p75 = por %p73, %p74
    %p76 = scmp.ne.s32.totalorder %s62, %s63
    %p77 = scmp.eq.s32.totalorder %s15, 7
    %p78 = por %p76, %p77
    %p80 = scmp.ne.s32.totalorder %s63, %s79
    %p81 = scmp.eq.s32.totalorder %s15, 0
    %p82 = por %p80, %p81
    %s83 = ssub.s32 %s17, %s24
    %p84 = scmp.eq.s32.totalorder %s83, 0
    %s86 = sadd.s32 %s85, 1
    %s87 = scalar_select %p84, %s85, %s86
    %p90 = pneg %p84
    %p91 = scmp.eq.s32.totalorder %s9, 7
    %p92 = por %p90, %p91
    %p93 = scmp.ne.s32.totalorder %s85, %s88
    %p94 = scmp.eq.s32.totalorder %s9, 0
    %p95 = por %p93, %p94
    %p96 = scmp.ne.s32.totalorder %s85, %s88
    %p97 = scmp.eq.s32.totalorder %s14, 7
    %p98 = por %p96, %p97
    %p99 = scmp.ne.s32.totalorder %s88, %s89
    %p100 = scmp.eq.s32.totalorder %s14, 0
    %p101 = por %p99, %p100
    %p102 = scmp.ne.s32.totalorder %s88, %s89
    %p103 = scmp.eq.s32.totalorder %s15, 7
    %p104 = por %p102, %p103
    %p106 = scmp.ne.s32.totalorder %s89, %s105
    %p107 = scmp.eq.s32.totalorder %s15, 0
    %p108 = por %p106, %p107
    %s109 = ssub.s32 %s16, %s28
    %s110 = ssub.s32 %s17, %s24
    %s111 = sor.u32 %s109, %s110
    %p112 = scmp.eq.s32.totalorder %s111, 0
    %s114 = sadd.s32 %s113, 1
    %s115 = scalar_select %p112, %s113, %s114
    %p118 = pneg %p112
    %p119 = scmp.eq.s32.totalorder %s9, 7
    %p120 = por %p118, %p119
    %p121 = scmp.ne.s32.totalorder %s113, %s116
    %p122 = scmp.eq.s32.totalorder %s9, 0
    %p123 = por %p121, %p122
    %p124 = scmp.ne.s32.totalorder %s113, %s116
    %p125 = scmp.eq.s32.totalorder %s14, 7
    %p126 = por %p124, %p125
    %p127 = scmp.ne.s32.totalorder %s116, %s117
    %p128 = scmp.eq.s32.totalorder %s14, 0
    %p129 = por %p127, %p128
    %p130 = scmp.ne.s32.totalorder %s116, %s117
    %p131 = scmp.eq.s32.totalorder %s15, 7
    %p132 = por %p130, %p131
    %p134 = scmp.ne.s32.totalorder %s117, %s133
    %p135 = scmp.eq.s32.totalorder %s15, 0
    %p136 = por %p134, %p135
    %p137 = scmp.le.s32.totalorder 1, %s9
    %p138 = scmp.lt.s32.totalorder %s9, 9
    %p139 = pnand %p137, %p138
    %p140 = pneg %p139
    // Predicated region
    $region9: #{conv_bn_leaky.3} parent=5 // pred_check
      _
    $region10: #{conv_bn_leaky.3} parent=5 // pred_check_branch
      %142 = sbr.rel (%p139) target = $region12
    $region11: #{conv_bn_leaky.3} parent=5 // pred_region
      %s143 = ssub.s32 %s9, 1
      // Predicated region
      $region13: #{conv_bn_leaky.3} parent=11 // pred_check
        %p144 = pneg %p75
      $region14: #{conv_bn_leaky.3} parent=11 // pred_check_branch
        %146 = sbr.rel (%p144) target = $region16
      $region15: #{conv_bn_leaky.3} parent=11 // pred_region
        %p147 = scmp.lt.s32.totalorder %s19, 0
        %s148 = scalar_select %p147, %s19, 0
        %s149 = scalar_lea.vmem %s1, %s148
      $region16: #{conv_bn_leaky.3} parent=11 // pred_fallthru
        _
      // Predicated region
      $region17: #{conv_bn_leaky.3} parent=11 // pred_check
        %p150 = pneg %p101
      $region18: #{conv_bn_leaky.3} parent=11 // pred_check_branch
        %152 = sbr.rel (%p150) target = $region20
      $region19: #{conv_bn_leaky.3} parent=11 // pred_region
        %p153 = scmp.lt.s32.totalorder %s19, 0
        %s154 = scalar_select %p153, %s19, 0
        %s155 = scalar_lea.vmem %s2, %s154
      $region20: #{conv_bn_leaky.3} parent=11 // pred_fallthru
        _
    $region12: #{conv_bn_leaky.3} parent=5 // pred_fallthru
      _
    %p156 = scmp.lt.s32.totalorder %s9, 8
    // Predicated region
    $region21: #{conv_bn_leaky.3} parent=5 // pred_check
      %p157 = pneg %p156
    $region22: #{conv_bn_leaky.3} parent=5 // pred_check_branch
      %159 = sbr.rel (%p157) target = $region24
    $region23: #{conv_bn_leaky.3} parent=5 // pred_region
      // Predicated region
      $region25: #{conv_bn_leaky.3} parent=23 // pred_check
        %p160 = pneg %p43
      $region26: #{conv_bn_leaky.3} parent=23 // pred_check_branch
        %162 = sbr.rel (%p160) target = $region28
      $region27: #{conv_bn_leaky.3} parent=23 // pred_region
        %s163 = smul.u32 128, %s16
        %p164 = scmp.lt.s32.totalorder %s163, 1023
        %s165 = scalar_select %p164, %s163, 1023
        %p166 = scmp.lt.s32.totalorder %s17, 0
        %s167 = scalar_select %p166, %s17, 0
        %s168 = sadd.s32 %s167, %s165
        %s169 = smul.addr %s168, 4
        %s170 = scalar_lea.vmem %s0, %s169
        %s171 = smul.u32 128, %s16
      $region28: #{conv_bn_leaky.3} parent=23 // pred_fallthru
        _
    $region24: #{conv_bn_leaky.3} parent=5 // pred_fallthru
      _
    %p172 = scmp.le.s32.totalorder 1, %s9
    %p173 = scmp.lt.s32.totalorder %s9, 9
    %p174 = pnand %p172, %p173
    %p175 = pneg %p174
    // Predicated region
    $region29: #{conv_bn_leaky.3} parent=5 // pred_check
      _
    $region30: #{conv_bn_leaky.3} parent=5 // pred_check_branch
      %177 = sbr.rel (%p174) target = $region32
    $region31: #{conv_bn_leaky.3} parent=5 // pred_region
      %s178 = ssub.s32 %s9, 1
      %s179 = smul.u32 128, %s18
      %p180 = scmp.lt.s32.totalorder %s179, 1023
      %s181 = scalar_select %p180, %s179, 1023
      %p182 = scmp.lt.s32.totalorder %s19, 0
      %s183 = scalar_select %p182, %s19, 0
      %s184 = sadd.s32 %s183, %s181
      %s185 = smul.addr %s184, 4
      %s186 = scalar_lea.vmem %s0, %s185
      %p187 = pneg %p49
      %p188 = pneg %p46
      %p189 = scmp.lt.s32.totalorder %s19, 0
      %s190 = scalar_select %p189, %s19, 0
      %s191 = scalar_lea.vmem %s1, %s190
      %p192 = pneg %p75
      %p193 = pneg %p72
      %p194 = scmp.lt.s32.totalorder %s19, 0
      %s195 = scalar_select %p194, %s19, 0
      %s196 = scalar_lea.vmem %s2, %s195
      %p197 = pneg %p101
      %p198 = pneg %p98
      %p199 = pneg %p129
      %p200 = pneg %p126
      %s201 = smul.u32 128, %s18
      %p202 = scmp.lt.s32.totalorder %s201, 1023
      %s203 = scalar_select %p202, %s201, 1023
      %p204 = scmp.lt.s32.totalorder %s19, 0
      %s205 = scalar_select %p204, %s19, 0
      %s206 = sadd.s32 %s205, %s203
      %s207 = smul.addr %s206, 4
      %s208 = scalar_lea.vmem %s3, %s207
      %s209 = smul.u32 128, %s18
      %p210 = scmp.lt.s32.totalorder %s209, 1023
      %s211 = scalar_select %p210, %s209, 1023
      %p212 = scmp.lt.s32.totalorder %s19, 0
      %s213 = scalar_select %p212, %s19, 0
      %s214 = sadd.s32 %s213, %s211
      %s215 = smul.addr %s214, 4
      %s216 = scalar_lea.vmem %s0, %s215
      %s217 = smul.u32 128, %s18
      %p218 = scmp.lt.s32.totalorder %s19, 0
      %s219 = scalar_select %p218, %s19, 0
      %s220 = scalar_lea.vmem %s1, %s219
      %p221 = scmp.lt.s32.totalorder %s19, 0
      %s222 = scalar_select %p221, %s19, 0
      %s223 = scalar_lea.vmem %s2, %s222
      %s224 = smul.u32 128, %s18
      %p225 = scmp.lt.s32.totalorder %s224, 1023
      %s226 = scalar_select %p225, %s224, 1023
      %p227 = scmp.lt.s32.totalorder %s19, 0
      %s228 = scalar_select %p227, %s19, 0
      %s229 = sadd.s32 %s228, %s226
      %s230 = smul.addr %s229, 4
      %s231 = scalar_lea.vmem %s3, %s230
      %s232 = smul.u32 128, %s18
      %v233 = vld [vmem:[%s216] sm:$0xf]
      %v234 = vld [vmem:[%s216 + $0x4] sm:$0xf]
      %v235 = vld [vmem:[%s216 + $0x8] sm:$0xf]
      %v236 = vld [vmem:[%s216 + $0xc] sm:$0xf]
      %v237 = vld [vmem:[%s216 + $0x10] sm:$0xf]
      %v238 = vld [vmem:[%s216 + $0x14] sm:$0xf]
      %v239 = vld [vmem:[%s216 + $0x18] sm:$0xf]
      %v240 = vld [vmem:[%s216 + $0x1c] sm:$0xf]
      %v241 = vld [vmem:[%s216 + $0x20] sm:$0xf]
      %v242 = vld [vmem:[%s216 + $0x24] sm:$0xf]
      %v243 = vld [vmem:[%s216 + $0x28] sm:$0xf]
      %v244 = vld [vmem:[%s216 + $0x2c] sm:$0xf]
      %v245 = vld [vmem:[%s216 + $0x30] sm:$0xf]
      %v246 = vld [vmem:[%s216 + $0x34] sm:$0xf]
      %v247 = vld [vmem:[%s216 + $0x38] sm:$0xf]
      %v248 = vld [vmem:[%s216 + $0x3c] sm:$0xf]
      %v249 = vld [vmem:[%s216 + $0x40] sm:$0xf]
      %v250 = vld [vmem:[%s216 + $0x44] sm:$0xf]
      %v251 = vld [vmem:[%s216 + $0x48] sm:$0xf]
      %v252 = vld [vmem:[%s216 + $0x4c] sm:$0xf]
      %v253 = vld [vmem:[%s216 + $0x50] sm:$0xf]
      %v254 = vld [vmem:[%s216 + $0x54] sm:$0xf]
      %v255 = vld [vmem:[%s216 + $0x58] sm:$0xf]
      %v256 = vld [vmem:[%s216 + $0x5c] sm:$0xf]
      %v257 = vld [vmem:[%s216 + $0x60] sm:$0xf]
      %v258 = vld [vmem:[%s216 + $0x64] sm:$0xf]
      %v259 = vld [vmem:[%s216 + $0x68] sm:$0xf]
      %v260 = vld [vmem:[%s216 + $0x6c] sm:$0xf]
      %v261 = vld [vmem:[%s216 + $0x70] sm:$0xf]
      %v262 = vld [vmem:[%s216 + $0x74] sm:$0xf]
      %v263 = vld [vmem:[%s216 + $0x78] sm:$0xf]
      %v264 = vld [vmem:[%s216 + $0x7c] sm:$0xf]
      %v265 = vld [vmem:[%s216 + $0x80] sm:$0xf]
      %v266 = vld [vmem:[%s216 + $0x84] sm:$0xf]
      %v267 = vld [vmem:[%s216 + $0x88] sm:$0xf]
      %v268 = vld [vmem:[%s216 + $0x8c] sm:$0xf]
      %v269 = vld [vmem:[%s216 + $0x90] sm:$0xf]
      %v270 = vld [vmem:[%s216 + $0x94] sm:$0xf]
      %v271 = vld [vmem:[%s216 + $0x98] sm:$0xf]
      %v272 = vld [vmem:[%s216 + $0x9c] sm:$0xf]
      %v273 = vld [vmem:[%s216 + $0xa0] sm:$0xf]
      %v274 = vld [vmem:[%s216 + $0xa4] sm:$0xf]
      %v275 = vld [vmem:[%s216 + $0xa8] sm:$0xf]
      %v276 = vld [vmem:[%s216 + $0xac] sm:$0xf]
      %v277 = vld [vmem:[%s216 + $0xb0] sm:$0xf]
      %v278 = vld [vmem:[%s216 + $0xb4] sm:$0xf]
      %v279 = vld [vmem:[%s216 + $0xb8] sm:$0xf]
      %v280 = vld [vmem:[%s216 + $0xbc] sm:$0xf]
      %v281 = vld [vmem:[%s216 + $0xc0] sm:$0xf]
      %v282 = vld [vmem:[%s216 + $0xc4] sm:$0xf]
      %v283 = vld [vmem:[%s216 + $0xc8] sm:$0xf]
      %v284 = vld [vmem:[%s216 + $0xcc] sm:$0xf]
      %v285 = vld [vmem:[%s216 + $0xd0] sm:$0xf]
      %v286 = vld [vmem:[%s216 + $0xd4] sm:$0xf]
      %v287 = vld [vmem:[%s216 + $0xd8] sm:$0xf]
      %v288 = vld [vmem:[%s216 + $0xdc] sm:$0xf]
      %v289 = vld [vmem:[%s216 + $0xe0] sm:$0xf]
      %v290 = vld [vmem:[%s216 + $0xe4] sm:$0xf]
      %v291 = vld [vmem:[%s216 + $0xe8] sm:$0xf]
      %v292 = vld [vmem:[%s216 + $0xec] sm:$0xf]
      %v293 = vld [vmem:[%s216 + $0xf0] sm:$0xf]
      %v294 = vld [vmem:[%s216 + $0xf4] sm:$0xf]
      %v295 = vld [vmem:[%s216 + $0xf8] sm:$0xf]
      %v296 = vld [vmem:[%s216 + $0xfc] sm:$0xf]
      %v297 = vld [vmem:[%s216 + $0x100] sm:$0xf]
      %v298 = vld [vmem:[%s216 + $0x104] sm:$0xf]
      %v299 = vld [vmem:[%s216 + $0x108] sm:$0xf]
      %v300 = vld [vmem:[%s216 + $0x10c] sm:$0xf]
      %v301 = vld [vmem:[%s216 + $0x110] sm:$0xf]
      %v302 = vld [vmem:[%s216 + $0x114] sm:$0xf]
      %v303 = vld [vmem:[%s216 + $0x118] sm:$0xf]
      %v304 = vld [vmem:[%s216 + $0x11c] sm:$0xf]
      %v305 = vld [vmem:[%s216 + $0x120] sm:$0xf]
      %v306 = vld [vmem:[%s216 + $0x124] sm:$0xf]
      %v307 = vld [vmem:[%s216 + $0x128] sm:$0xf]
      %v308 = vld [vmem:[%s216 + $0x12c] sm:$0xf]
      %v309 = vld [vmem:[%s216 + $0x130] sm:$0xf]
      %v310 = vld [vmem:[%s216 + $0x134] sm:$0xf]
      %v311 = vld [vmem:[%s216 + $0x138] sm:$0xf]
      %v312 = vld [vmem:[%s216 + $0x13c] sm:$0xf]
      %v313 = vld [vmem:[%s216 + $0x140] sm:$0xf]
      %v314 = vld [vmem:[%s216 + $0x144] sm:$0xf]
      %v315 = vld [vmem:[%s216 + $0x148] sm:$0xf]
      %v316 = vld [vmem:[%s216 + $0x14c] sm:$0xf]
      %v317 = vld [vmem:[%s216 + $0x150] sm:$0xf]
      %v318 = vld [vmem:[%s216 + $0x154] sm:$0xf]
      %v319 = vld [vmem:[%s216 + $0x158] sm:$0xf]
      %v320 = vld [vmem:[%s216 + $0x15c] sm:$0xf]
      %v321 = vld [vmem:[%s216 + $0x160] sm:$0xf]
      %v322 = vld [vmem:[%s216 + $0x164] sm:$0xf]
      %v323 = vld [vmem:[%s216 + $0x168] sm:$0xf]
      %v324 = vld [vmem:[%s216 + $0x16c] sm:$0xf]
      %v325 = vld [vmem:[%s216 + $0x170] sm:$0xf]
      %v326 = vld [vmem:[%s216 + $0x174] sm:$0xf]
      %v327 = vld [vmem:[%s216 + $0x178] sm:$0xf]
      %v328 = vld [vmem:[%s216 + $0x17c] sm:$0xf]
      %v329 = vld [vmem:[%s216 + $0x180] sm:$0xf]
      %v330 = vld [vmem:[%s216 + $0x184] sm:$0xf]
      %v331 = vld [vmem:[%s216 + $0x188] sm:$0xf]
      %v332 = vld [vmem:[%s216 + $0x18c] sm:$0xf]
      %v333 = vld [vmem:[%s216 + $0x190] sm:$0xf]
      %v334 = vld [vmem:[%s216 + $0x194] sm:$0xf]
      %v335 = vld [vmem:[%s216 + $0x198] sm:$0xf]
      %v336 = vld [vmem:[%s216 + $0x19c] sm:$0xf]
      %v337 = vld [vmem:[%s216 + $0x1a0] sm:$0xf]
      %v338 = vld [vmem:[%s216 + $0x1a4] sm:$0xf]
      %v339 = vld [vmem:[%s216 + $0x1a8] sm:$0xf]
      %v340 = vld [vmem:[%s216 + $0x1ac] sm:$0xf]
      %v341 = vld [vmem:[%s216 + $0x1b0] sm:$0xf]
      %v342 = vld [vmem:[%s216 + $0x1b4] sm:$0xf]
      %v343 = vld [vmem:[%s216 + $0x1b8] sm:$0xf]
      %v344 = vld [vmem:[%s216 + $0x1bc] sm:$0xf]
      %v345 = vld [vmem:[%s216 + $0x1c0] sm:$0xf]
      %v346 = vld [vmem:[%s216 + $0x1c4] sm:$0xf]
      %v347 = vld [vmem:[%s216 + $0x1c8] sm:$0xf]
      %v348 = vld [vmem:[%s216 + $0x1cc] sm:$0xf]
      %v349 = vld [vmem:[%s216 + $0x1d0] sm:$0xf]
      %v350 = vld [vmem:[%s216 + $0x1d4] sm:$0xf]
      %v351 = vld [vmem:[%s216 + $0x1d8] sm:$0xf]
      %v352 = vld [vmem:[%s216 + $0x1dc] sm:$0xf]
      %v353 = vld [vmem:[%s216 + $0x1e0] sm:$0xf]
      %v354 = vld [vmem:[%s216 + $0x1e4] sm:$0xf]
      %v355 = vld [vmem:[%s216 + $0x1e8] sm:$0xf]
      %v356 = vld [vmem:[%s216 + $0x1ec] sm:$0xf]
      %v357 = vld [vmem:[%s216 + $0x1f0] sm:$0xf]
      %v358 = vld [vmem:[%s216 + $0x1f4] sm:$0xf]
      %v359 = vld [vmem:[%s216 + $0x1f8] sm:$0xf]
      %v360 = vld [vmem:[%s216 + $0x1fc] sm:$0xf]
      %v361 = vunpack.c.l.bf16 %v233
      %v362 = vunpack.c.l.bf16 %v234
      %v363 = vunpack.c.l.bf16 %v235
      %v364 = vunpack.c.l.bf16 %v236
      %v365 = vunpack.c.l.bf16 %v237
      %v366 = vunpack.c.l.bf16 %v238
      %v367 = vunpack.c.l.bf16 %v239
      %v368 = vunpack.c.l.bf16 %v240
      %v369 = vunpack.c.l.bf16 %v241
      %v370 = vunpack.c.l.bf16 %v242
      %v371 = vunpack.c.l.bf16 %v243
      %v372 = vunpack.c.l.bf16 %v244
      %v373 = vunpack.c.l.bf16 %v245
      %v374 = vunpack.c.l.bf16 %v246
      %v375 = vunpack.c.l.bf16 %v247
      %v376 = vunpack.c.l.bf16 %v248
      %v377 = vunpack.c.l.bf16 %v249
      %v378 = vunpack.c.l.bf16 %v250
      %v379 = vunpack.c.l.bf16 %v251
      %v380 = vunpack.c.l.bf16 %v252
      %v381 = vunpack.c.l.bf16 %v253
      %v382 = vunpack.c.l.bf16 %v254
      %v383 = vunpack.c.l.bf16 %v255
      %v384 = vunpack.c.l.bf16 %v256
      %v385 = vunpack.c.l.bf16 %v257
      %v386 = vunpack.c.l.bf16 %v258
      %v387 = vunpack.c.l.bf16 %v259
      %v388 = vunpack.c.l.bf16 %v260
      %v389 = vunpack.c.l.bf16 %v261
      %v390 = vunpack.c.l.bf16 %v262
      %v391 = vunpack.c.l.bf16 %v263
      %v392 = vunpack.c.l.bf16 %v264
      %v393 = vunpack.c.l.bf16 %v265
      %v394 = vunpack.c.l.bf16 %v266
      %v395 = vunpack.c.l.bf16 %v267
      %v396 = vunpack.c.l.bf16 %v268
      %v397 = vunpack.c.l.bf16 %v269
      %v398 = vunpack.c.l.bf16 %v270
      %v399 = vunpack.c.l.bf16 %v271
      %v400 = vunpack.c.l.bf16 %v272
      %v401 = vunpack.c.l.bf16 %v273
      %v402 = vunpack.c.l.bf16 %v274
      %v403 = vunpack.c.l.bf16 %v275
      %v404 = vunpack.c.l.bf16 %v276
      %v405 = vunpack.c.l.bf16 %v277
      %v406 = vunpack.c.l.bf16 %v278
      %v407 = vunpack.c.l.bf16 %v279
      %v408 = vunpack.c.l.bf16 %v280
      %v409 = vunpack.c.l.bf16 %v281
      %v410 = vunpack.c.l.bf16 %v282
      %v411 = vunpack.c.l.bf16 %v283
      %v412 = vunpack.c.l.bf16 %v284
      %v413 = vunpack.c.l.bf16 %v285
      %v414 = vunpack.c.l.bf16 %v286
      %v415 = vunpack.c.l.bf16 %v287
      %v416 = vunpack.c.l.bf16 %v288
      %v417 = vunpack.c.l.bf16 %v289
      %v418 = vunpack.c.l.bf16 %v290
      %v419 = vunpack.c.l.bf16 %v291
      %v420 = vunpack.c.l.bf16 %v292
      %v421 = vunpack.c.l.bf16 %v293
      %v422 = vunpack.c.l.bf16 %v294
      %v423 = vunpack.c.l.bf16 %v295
      %v424 = vunpack.c.l.bf16 %v296
      %v425 = vunpack.c.l.bf16 %v297
      %v426 = vunpack.c.l.bf16 %v298
      %v427 = vunpack.c.l.bf16 %v299
      %v428 = vunpack.c.l.bf16 %v300
      %v429 = vunpack.c.l.bf16 %v301
      %v430 = vunpack.c.l.bf16 %v302
      %v431 = vunpack.c.l.bf16 %v303
      %v432 = vunpack.c.l.bf16 %v304
      %v433 = vunpack.c.l.bf16 %v305
      %v434 = vunpack.c.l.bf16 %v306
      %v435 = vunpack.c.l.bf16 %v307
      %v436 = vunpack.c.l.bf16 %v308
      %v437 = vunpack.c.l.bf16 %v309
      %v438 = vunpack.c.l.bf16 %v310
      %v439 = vunpack.c.l.bf16 %v311
      %v440 = vunpack.c.l.bf16 %v312
      %v441 = vunpack.c.l.bf16 %v313
      %v442 = vunpack.c.l.bf16 %v314
      %v443 = vunpack.c.l.bf16 %v315
      %v444 = vunpack.c.l.bf16 %v316
      %v445 = vunpack.c.l.bf16 %v317
      %v446 = vunpack.c.l.bf16 %v318
      %v447 = vunpack.c.l.bf16 %v319
      %v448 = vunpack.c.l.bf16 %v320
      %v449 = vunpack.c.l.bf16 %v321
      %v450 = vunpack.c.l.bf16 %v322
      %v451 = vunpack.c.l.bf16 %v323
      %v452 = vunpack.c.l.bf16 %v324
      %v453 = vunpack.c.l.bf16 %v325
      %v454 = vunpack.c.l.bf16 %v326
      %v455 = vunpack.c.l.bf16 %v327
      %v456 = vunpack.c.l.bf16 %v328
      %v457 = vunpack.c.l.bf16 %v329
      %v458 = vunpack.c.l.bf16 %v330
      %v459 = vunpack.c.l.bf16 %v331
      %v460 = vunpack.c.l.bf16 %v332
      %v461 = vunpack.c.l.bf16 %v333
      %v462 = vunpack.c.l.bf16 %v334
      %v463 = vunpack.c.l.bf16 %v335
      %v464 = vunpack.c.l.bf16 %v336
      %v465 = vunpack.c.l.bf16 %v337
      %v466 = vunpack.c.l.bf16 %v338
      %v467 = vunpack.c.l.bf16 %v339
      %v468 = vunpack.c.l.bf16 %v340
      %v469 = vunpack.c.l.bf16 %v341
      %v470 = vunpack.c.l.bf16 %v342
      %v471 = vunpack.c.l.bf16 %v343
      %v472 = vunpack.c.l.bf16 %v344
      %v473 = vunpack.c.l.bf16 %v345
      %v474 = vunpack.c.l.bf16 %v346
      %v475 = vunpack.c.l.bf16 %v347
      %v476 = vunpack.c.l.bf16 %v348
      %v477 = vunpack.c.l.bf16 %v349
      %v478 = vunpack.c.l.bf16 %v350
      %v479 = vunpack.c.l.bf16 %v351
      %v480 = vunpack.c.l.bf16 %v352
      %v481 = vunpack.c.l.bf16 %v353
      %v482 = vunpack.c.l.bf16 %v354
      %v483 = vunpack.c.l.bf16 %v355
      %v484 = vunpack.c.l.bf16 %v356
      %v485 = vunpack.c.l.bf16 %v357
      %v486 = vunpack.c.l.bf16 %v358
      %v487 = vunpack.c.l.bf16 %v359
      %v488 = vunpack.c.l.bf16 %v360
      %v489 = vld [vmem:[%s220] sm:$0x1]
      %v491 = vperm.slane %v489, 0
      %v493 = vmul.f32 %v361, %v491
      %v494 = vmul.f32 %v362, %v491
      %v495 = vmul.f32 %v363, %v491
      %v496 = vmul.f32 %v364, %v491
      %v497 = vmul.f32 %v365, %v491
      %v498 = vmul.f32 %v366, %v491
      %v499 = vmul.f32 %v367, %v491
      %v500 = vmul.f32 %v368, %v491
      %v501 = vmul.f32 %v369, %v491
      %v502 = vmul.f32 %v370, %v491
      %v503 = vmul.f32 %v371, %v491
      %v504 = vmul.f32 %v372, %v491
      %v505 = vmul.f32 %v373, %v491
      %v506 = vmul.f32 %v374, %v491
      %v507 = vmul.f32 %v375, %v491
      %v508 = vmul.f32 %v376, %v491
      %v509 = vmul.f32 %v377, %v491
      %v510 = vmul.f32 %v378, %v491
      %v511 = vmul.f32 %v379, %v491
      %v512 = vmul.f32 %v380, %v491
      %v513 = vmul.f32 %v381, %v491
      %v514 = vmul.f32 %v382, %v491
      %v515 = vmul.f32 %v383, %v491
      %v516 = vmul.f32 %v384, %v491
      %v517 = vmul.f32 %v385, %v491
      %v518 = vmul.f32 %v386, %v491
      %v519 = vmul.f32 %v387, %v491
      %v520 = vmul.f32 %v388, %v491
      %v521 = vmul.f32 %v389, %v491
      %v522 = vmul.f32 %v390, %v491
      %v523 = vmul.f32 %v391, %v491
      %v524 = vmul.f32 %v392, %v491
      %v525 = vmul.f32 %v393, %v491
      %v526 = vmul.f32 %v394, %v491
      %v527 = vmul.f32 %v395, %v491
      %v528 = vmul.f32 %v396, %v491
      %v529 = vmul.f32 %v397, %v491
      %v530 = vmul.f32 %v398, %v491
      %v531 = vmul.f32 %v399, %v491
      %v532 = vmul.f32 %v400, %v491
      %v533 = vmul.f32 %v401, %v491
      %v534 = vmul.f32 %v402, %v491
      %v535 = vmul.f32 %v403, %v491
      %v536 = vmul.f32 %v404, %v491
      %v537 = vmul.f32 %v405, %v491
      %v538 = vmul.f32 %v406, %v491
      %v539 = vmul.f32 %v407, %v491
      %v540 = vmul.f32 %v408, %v491
      %v541 = vmul.f32 %v409, %v491
      %v542 = vmul.f32 %v410, %v491
      %v543 = vmul.f32 %v411, %v491
      %v544 = vmul.f32 %v412, %v491
      %v545 = vmul.f32 %v413, %v491
      %v546 = vmul.f32 %v414, %v491
      %v547 = vmul.f32 %v415, %v491
      %v548 = vmul.f32 %v416, %v491
      %v549 = vmul.f32 %v417, %v491
      %v550 = vmul.f32 %v418, %v491
      %v551 = vmul.f32 %v419, %v491
      %v552 = vmul.f32 %v420, %v491
      %v553 = vmul.f32 %v421, %v491
      %v554 = vmul.f32 %v422, %v491
      %v555 = vmul.f32 %v423, %v491
      %v556 = vmul.f32 %v424, %v491
      %v557 = vmul.f32 %v425, %v491
      %v558 = vmul.f32 %v426, %v491
      %v559 = vmul.f32 %v427, %v491
      %v560 = vmul.f32 %v428, %v491
      %v561 = vmul.f32 %v429, %v491
      %v562 = vmul.f32 %v430, %v491
      %v563 = vmul.f32 %v431, %v491
      %v564 = vmul.f32 %v432, %v491
      %v565 = vmul.f32 %v433, %v491
      %v566 = vmul.f32 %v434, %v491
      %v567 = vmul.f32 %v435, %v491
      %v568 = vmul.f32 %v436, %v491
      %v569 = vmul.f32 %v437, %v491
      %v570 = vmul.f32 %v438, %v491
      %v571 = vmul.f32 %v439, %v491
      %v572 = vmul.f32 %v440, %v491
      %v573 = vmul.f32 %v441, %v491
      %v574 = vmul.f32 %v442, %v491
      %v575 = vmul.f32 %v443, %v491
      %v576 = vmul.f32 %v444, %v491
      %v577 = vmul.f32 %v445, %v491
      %v578 = vmul.f32 %v446, %v491
      %v579 = vmul.f32 %v447, %v491
      %v580 = vmul.f32 %v448, %v491
      %v581 = vmul.f32 %v449, %v491
      %v582 = vmul.f32 %v450, %v491
      %v583 = vmul.f32 %v451, %v491
      %v584 = vmul.f32 %v452, %v491
      %v585 = vmul.f32 %v453, %v491
      %v586 = vmul.f32 %v454, %v491
      %v587 = vmul.f32 %v455, %v491
      %v588 = vmul.f32 %v456, %v491
      %v589 = vmul.f32 %v457, %v491
      %v590 = vmul.f32 %v458, %v491
      %v591 = vmul.f32 %v459, %v491
      %v592 = vmul.f32 %v460, %v491
      %v593 = vmul.f32 %v461, %v491
      %v594 = vmul.f32 %v462, %v491
      %v595 = vmul.f32 %v463, %v491
      %v596 = vmul.f32 %v464, %v491
      %v597 = vmul.f32 %v465, %v491
      %v598 = vmul.f32 %v466, %v491
      %v599 = vmul.f32 %v467, %v491
      %v600 = vmul.f32 %v468, %v491
      %v601 = vmul.f32 %v469, %v491
      %v602 = vmul.f32 %v470, %v491
      %v603 = vmul.f32 %v471, %v491
      %v604 = vmul.f32 %v472, %v491
      %v605 = vmul.f32 %v473, %v491
      %v606 = vmul.f32 %v474, %v491
      %v607 = vmul.f32 %v475, %v491
      %v608 = vmul.f32 %v476, %v491
      %v609 = vmul.f32 %v477, %v491
      %v610 = vmul.f32 %v478, %v491
      %v611 = vmul.f32 %v479, %v491
      %v612 = vmul.f32 %v480, %v491
      %v613 = vmul.f32 %v481, %v491
      %v614 = vmul.f32 %v482, %v491
      %v615 = vmul.f32 %v483, %v491
      %v616 = vmul.f32 %v484, %v491
      %v617 = vmul.f32 %v485, %v491
      %v618 = vmul.f32 %v486, %v491
      %v619 = vmul.f32 %v487, %v491
      %v620 = vmul.f32 %v488, %v491
      %v621 = vld [vmem:[%s223] sm:$0x1]
      %v623 = vperm.slane %v621, 0
      %v625 = vadd.f32 %v493, %v623
      %v626 = vadd.f32 %v494, %v623
      %v627 = vadd.f32 %v495, %v623
      %v628 = vadd.f32 %v496, %v623
      %v629 = vadd.f32 %v497, %v623
      %v630 = vadd.f32 %v498, %v623
      %v631 = vadd.f32 %v499, %v623
      %v632 = vadd.f32 %v500, %v623
      %v633 = vadd.f32 %v501, %v623
      %v634 = vadd.f32 %v502, %v623
      %v635 = vadd.f32 %v503, %v623
      %v636 = vadd.f32 %v504, %v623
      %v637 = vadd.f32 %v505, %v623
      %v638 = vadd.f32 %v506, %v623
      %v639 = vadd.f32 %v507, %v623
      %v640 = vadd.f32 %v508, %v623
      %v641 = vadd.f32 %v509, %v623
      %v642 = vadd.f32 %v510, %v623
      %v643 = vadd.f32 %v511, %v623
      %v644 = vadd.f32 %v512, %v623
      %v645 = vadd.f32 %v513, %v623
      %v646 = vadd.f32 %v514, %v623
      %v647 = vadd.f32 %v515, %v623
      %v648 = vadd.f32 %v516, %v623
      %v649 = vadd.f32 %v517, %v623
      %v650 = vadd.f32 %v518, %v623
      %v651 = vadd.f32 %v519, %v623
      %v652 = vadd.f32 %v520, %v623
      %v653 = vadd.f32 %v521, %v623
      %v654 = vadd.f32 %v522, %v623
      %v655 = vadd.f32 %v523, %v623
      %v656 = vadd.f32 %v524, %v623
      %v657 = vadd.f32 %v525, %v623
      %v658 = vadd.f32 %v526, %v623
      %v659 = vadd.f32 %v527, %v623
      %v660 = vadd.f32 %v528, %v623
      %v661 = vadd.f32 %v529, %v623
      %v662 = vadd.f32 %v530, %v623
      %v663 = vadd.f32 %v531, %v623
      %v664 = vadd.f32 %v532, %v623
      %v665 = vadd.f32 %v533, %v623
      %v666 = vadd.f32 %v534, %v623
      %v667 = vadd.f32 %v535, %v623
      %v668 = vadd.f32 %v536, %v623
      %v669 = vadd.f32 %v537, %v623
      %v670 = vadd.f32 %v538, %v623
      %v671 = vadd.f32 %v539, %v623
      %v672 = vadd.f32 %v540, %v623
      %v673 = vadd.f32 %v541, %v623
      %v674 = vadd.f32 %v542, %v623
      %v675 = vadd.f32 %v543, %v623
      %v676 = vadd.f32 %v544, %v623
      %v677 = vadd.f32 %v545, %v623
      %v678 = vadd.f32 %v546, %v623
      %v679 = vadd.f32 %v547, %v623
      %v680 = vadd.f32 %v548, %v623
      %v681 = vadd.f32 %v549, %v623
      %v682 = vadd.f32 %v550, %v623
      %v683 = vadd.f32 %v551, %v623
      %v684 = vadd.f32 %v552, %v623
      %v685 = vadd.f32 %v553, %v623
      %v686 = vadd.f32 %v554, %v623
      %v687 = vadd.f32 %v555, %v623
      %v688 = vadd.f32 %v556, %v623
      %v689 = vadd.f32 %v557, %v623
      %v690 = vadd.f32 %v558, %v623
      %v691 = vadd.f32 %v559, %v623
      %v692 = vadd.f32 %v560, %v623
      %v693 = vadd.f32 %v561, %v623
      %v694 = vadd.f32 %v562, %v623
      %v695 = vadd.f32 %v563, %v623
      %v696 = vadd.f32 %v564, %v623
      %v697 = vadd.f32 %v565, %v623
      %v698 = vadd.f32 %v566, %v623
      %v699 = vadd.f32 %v567, %v623
      %v700 = vadd.f32 %v568, %v623
      %v701 = vadd.f32 %v569, %v623
      %v702 = vadd.f32 %v570, %v623
      %v703 = vadd.f32 %v571, %v623
      %v704 = vadd.f32 %v572, %v623
      %v705 = vadd.f32 %v573, %v623
      %v706 = vadd.f32 %v574, %v623
      %v707 = vadd.f32 %v575, %v623
      %v708 = vadd.f32 %v576, %v623
      %v709 = vadd.f32 %v577, %v623
      %v710 = vadd.f32 %v578, %v623
      %v711 = vadd.f32 %v579, %v623
      %v712 = vadd.f32 %v580, %v623
      %v713 = vadd.f32 %v581, %v623
      %v714 = vadd.f32 %v582, %v623
      %v715 = vadd.f32 %v583, %v623
      %v716 = vadd.f32 %v584, %v623
      %v717 = vadd.f32 %v585, %v623
      %v718 = vadd.f32 %v586, %v623
      %v719 = vadd.f32 %v587, %v623
      %v720 = vadd.f32 %v588, %v623
      %v721 = vadd.f32 %v589, %v623
      %v722 = vadd.f32 %v590, %v623
      %v723 = vadd.f32 %v591, %v623
      %v724 = vadd.f32 %v592, %v623
      %v725 = vadd.f32 %v593, %v623
      %v726 = vadd.f32 %v594, %v623
      %v727 = vadd.f32 %v595, %v623
      %v728 = vadd.f32 %v596, %v623
      %v729 = vadd.f32 %v597, %v623
      %v730 = vadd.f32 %v598, %v623
      %v731 = vadd.f32 %v599, %v623
      %v732 = vadd.f32 %v600, %v623
      %v733 = vadd.f32 %v601, %v623
      %v734 = vadd.f32 %v602, %v623
      %v735 = vadd.f32 %v603, %v623
      %v736 = vadd.f32 %v604, %v623
      %v737 = vadd.f32 %v605, %v623
      %v738 = vadd.f32 %v606, %v623
      %v739 = vadd.f32 %v607, %v623
      %v740 = vadd.f32 %v608, %v623
      %v741 = vadd.f32 %v609, %v623
      %v742 = vadd.f32 %v610, %v623
      %v743 = vadd.f32 %v611, %v623
      %v744 = vadd.f32 %v612, %v623
      %v745 = vadd.f32 %v613, %v623
      %v746 = vadd.f32 %v614, %v623
      %v747 = vadd.f32 %v615, %v623
      %v748 = vadd.f32 %v616, %v623
      %v749 = vadd.f32 %v617, %v623
      %v750 = vadd.f32 %v618, %v623
      %v751 = vadd.f32 %v619, %v623
      %v752 = vadd.f32 %v620, %v623
      %vm753 = vcmp.ge.f32.partialorder %v625, 0.0
      %vm754 = vcmp.ge.f32.partialorder %v626, 0.0
      %vm755 = vcmp.ge.f32.partialorder %v627, 0.0
      %vm756 = vcmp.ge.f32.partialorder %v628, 0.0
      %vm757 = vcmp.ge.f32.partialorder %v629, 0.0
      %vm758 = vcmp.ge.f32.partialorder %v630, 0.0
      %vm759 = vcmp.ge.f32.partialorder %v631, 0.0
      %vm760 = vcmp.ge.f32.partialorder %v632, 0.0
      %vm761 = vcmp.ge.f32.partialorder %v633, 0.0
      %vm762 = vcmp.ge.f32.partialorder %v634, 0.0
      %vm763 = vcmp.ge.f32.partialorder %v635, 0.0
      %vm764 = vcmp.ge.f32.partialorder %v636, 0.0
      %vm765 = vcmp.ge.f32.partialorder %v637, 0.0
      %vm766 = vcmp.ge.f32.partialorder %v638, 0.0
      %vm767 = vcmp.ge.f32.partialorder %v639, 0.0
      %vm768 = vcmp.ge.f32.partialorder %v640, 0.0
      %vm769 = vcmp.ge.f32.partialorder %v641, 0.0
      %vm770 = vcmp.ge.f32.partialorder %v642, 0.0
      %vm771 = vcmp.ge.f32.partialorder %v643, 0.0
      %vm772 = vcmp.ge.f32.partialorder %v644, 0.0
      %vm773 = vcmp.ge.f32.partialorder %v645, 0.0
      %vm774 = vcmp.ge.f32.partialorder %v646, 0.0
      %vm775 = vcmp.ge.f32.partialorder %v647, 0.0
      %vm776 = vcmp.ge.f32.partialorder %v648, 0.0
      %vm777 = vcmp.ge.f32.partialorder %v649, 0.0
      %vm778 = vcmp.ge.f32.partialorder %v650, 0.0
      %vm779 = vcmp.ge.f32.partialorder %v651, 0.0
      %vm780 = vcmp.ge.f32.partialorder %v652, 0.0
      %vm781 = vcmp.ge.f32.partialorder %v653, 0.0
      %vm782 = vcmp.ge.f32.partialorder %v654, 0.0
      %vm783 = vcmp.ge.f32.partialorder %v655, 0.0
      %vm784 = vcmp.ge.f32.partialorder %v656, 0.0
      %vm785 = vcmp.ge.f32.partialorder %v657, 0.0
      %vm786 = vcmp.ge.f32.partialorder %v658, 0.0
      %vm787 = vcmp.ge.f32.partialorder %v659, 0.0
      %vm788 = vcmp.ge.f32.partialorder %v660, 0.0
      %vm789 = vcmp.ge.f32.partialorder %v661, 0.0
      %vm790 = vcmp.ge.f32.partialorder %v662, 0.0
      %vm791 = vcmp.ge.f32.partialorder %v663, 0.0
      %vm792 = vcmp.ge.f32.partialorder %v664, 0.0
      %vm793 = vcmp.ge.f32.partialorder %v665, 0.0
      %vm794 = vcmp.ge.f32.partialorder %v666, 0.0
      %vm795 = vcmp.ge.f32.partialorder %v667, 0.0
      %vm796 = vcmp.ge.f32.partialorder %v668, 0.0
      %vm797 = vcmp.ge.f32.partialorder %v669, 0.0
      %vm798 = vcmp.ge.f32.partialorder %v670, 0.0
      %vm799 = vcmp.ge.f32.partialorder %v671, 0.0
      %vm800 = vcmp.ge.f32.partialorder %v672, 0.0
      %vm801 = vcmp.ge.f32.partialorder %v673, 0.0
      %vm802 = vcmp.ge.f32.partialorder %v674, 0.0
      %vm803 = vcmp.ge.f32.partialorder %v675, 0.0
      %vm804 = vcmp.ge.f32.partialorder %v676, 0.0
      %vm805 = vcmp.ge.f32.partialorder %v677, 0.0
      %vm806 = vcmp.ge.f32.partialorder %v678, 0.0
      %vm807 = vcmp.ge.f32.partialorder %v679, 0.0
      %vm808 = vcmp.ge.f32.partialorder %v680, 0.0
      %vm809 = vcmp.ge.f32.partialorder %v681, 0.0
      %vm810 = vcmp.ge.f32.partialorder %v682, 0.0
      %vm811 = vcmp.ge.f32.partialorder %v683, 0.0
      %vm812 = vcmp.ge.f32.partialorder %v684, 0.0
      %vm813 = vcmp.ge.f32.partialorder %v685, 0.0
      %vm814 = vcmp.ge.f32.partialorder %v686, 0.0
      %vm815 = vcmp.ge.f32.partialorder %v687, 0.0
      %vm816 = vcmp.ge.f32.partialorder %v688, 0.0
      %vm817 = vcmp.ge.f32.partialorder %v689, 0.0
      %vm818 = vcmp.ge.f32.partialorder %v690, 0.0
      %vm819 = vcmp.ge.f32.partialorder %v691, 0.0
      %vm820 = vcmp.ge.f32.partialorder %v692, 0.0
      %vm821 = vcmp.ge.f32.partialorder %v693, 0.0
      %vm822 = vcmp.ge.f32.partialorder %v694, 0.0
      %vm823 = vcmp.ge.f32.partialorder %v695, 0.0
      %vm824 = vcmp.ge.f32.partialorder %v696, 0.0
      %vm825 = vcmp.ge.f32.partialorder %v697, 0.0
      %vm826 = vcmp.ge.f32.partialorder %v698, 0.0
      %vm827 = vcmp.ge.f32.partialorder %v699, 0.0
      %vm828 = vcmp.ge.f32.partialorder %v700, 0.0
      %vm829 = vcmp.ge.f32.partialorder %v701, 0.0
      %vm830 = vcmp.ge.f32.partialorder %v702, 0.0
      %vm831 = vcmp.ge.f32.partialorder %v703, 0.0
      %vm832 = vcmp.ge.f32.partialorder %v704, 0.0
      %vm833 = vcmp.ge.f32.partialorder %v705, 0.0
      %vm834 = vcmp.ge.f32.partialorder %v706, 0.0
      %vm835 = vcmp.ge.f32.partialorder %v707, 0.0
      %vm836 = vcmp.ge.f32.partialorder %v708, 0.0
      %vm837 = vcmp.ge.f32.partialorder %v709, 0.0
      %vm838 = vcmp.ge.f32.partialorder %v710, 0.0
      %vm839 = vcmp.ge.f32.partialorder %v711, 0.0
      %vm840 = vcmp.ge.f32.partialorder %v712, 0.0
      %vm841 = vcmp.ge.f32.partialorder %v713, 0.0
      %vm842 = vcmp.ge.f32.partialorder %v714, 0.0
      %vm843 = vcmp.ge.f32.partialorder %v715, 0.0
      %vm844 = vcmp.ge.f32.partialorder %v716, 0.0
      %vm845 = vcmp.ge.f32.partialorder %v717, 0.0
      %vm846 = vcmp.ge.f32.partialorder %v718, 0.0
      %vm847 = vcmp.ge.f32.partialorder %v719, 0.0
      %vm848 = vcmp.ge.f32.partialorder %v720, 0.0
      %vm849 = vcmp.ge.f32.partialorder %v721, 0.0
      %vm850 = vcmp.ge.f32.partialorder %v722, 0.0
      %vm851 = vcmp.ge.f32.partialorder %v723, 0.0
      %vm852 = vcmp.ge.f32.partialorder %v724, 0.0
      %vm853 = vcmp.ge.f32.partialorder %v725, 0.0
      %vm854 = vcmp.ge.f32.partialorder %v726, 0.0
      %vm855 = vcmp.ge.f32.partialorder %v727, 0.0
      %vm856 = vcmp.ge.f32.partialorder %v728, 0.0
      %vm857 = vcmp.ge.f32.partialorder %v729, 0.0
      %vm858 = vcmp.ge.f32.partialorder %v730, 0.0
      %vm859 = vcmp.ge.f32.partialorder %v731, 0.0
      %vm860 = vcmp.ge.f32.partialorder %v732, 0.0
      %vm861 = vcmp.ge.f32.partialorder %v733, 0.0
      %vm862 = vcmp.ge.f32.partialorder %v734, 0.0
      %vm863 = vcmp.ge.f32.partialorder %v735, 0.0
      %vm864 = vcmp.ge.f32.partialorder %v736, 0.0
      %vm865 = vcmp.ge.f32.partialorder %v737, 0.0
      %vm866 = vcmp.ge.f32.partialorder %v738, 0.0
      %vm867 = vcmp.ge.f32.partialorder %v739, 0.0
      %vm868 = vcmp.ge.f32.partialorder %v740, 0.0
      %vm869 = vcmp.ge.f32.partialorder %v741, 0.0
      %vm870 = vcmp.ge.f32.partialorder %v742, 0.0
      %vm871 = vcmp.ge.f32.partialorder %v743, 0.0
      %vm872 = vcmp.ge.f32.partialorder %v744, 0.0
      %vm873 = vcmp.ge.f32.partialorder %v745, 0.0
      %vm874 = vcmp.ge.f32.partialorder %v746, 0.0
      %vm875 = vcmp.ge.f32.partialorder %v747, 0.0
      %vm876 = vcmp.ge.f32.partialorder %v748, 0.0
      %vm877 = vcmp.ge.f32.partialorder %v749, 0.0
      %vm878 = vcmp.ge.f32.partialorder %v750, 0.0
      %vm879 = vcmp.ge.f32.partialorder %v751, 0.0
      %vm880 = vcmp.ge.f32.partialorder %v752, 0.0
      %v881 = vmul.f32 %v625, 0.1
      %v882 = vmul.f32 %v626, 0.1
      %v883 = vmul.f32 %v627, 0.1
      %v884 = vmul.f32 %v628, 0.1
      %v885 = vmul.f32 %v629, 0.1
      %v886 = vmul.f32 %v630, 0.1
      %v887 = vmul.f32 %v631, 0.1
      %v888 = vmul.f32 %v632, 0.1
      %v889 = vmul.f32 %v633, 0.1
      %v890 = vmul.f32 %v634, 0.1
      %v891 = vmul.f32 %v635, 0.1
      %v892 = vmul.f32 %v636, 0.1
      %v893 = vmul.f32 %v637, 0.1
      %v894 = vmul.f32 %v638, 0.1
      %v895 = vmul.f32 %v639, 0.1
      %v896 = vmul.f32 %v640, 0.1
      %v897 = vmul.f32 %v641, 0.1
      %v898 = vmul.f32 %v642, 0.1
      %v899 = vmul.f32 %v643, 0.1
      %v900 = vmul.f32 %v644, 0.1
      %v901 = vmul.f32 %v645, 0.1
      %v902 = vmul.f32 %v646, 0.1
      %v903 = vmul.f32 %v647, 0.1
      %v904 = vmul.f32 %v648, 0.1
      %v905 = vmul.f32 %v649, 0.1
      %v906 = vmul.f32 %v650, 0.1
      %v907 = vmul.f32 %v651, 0.1
      %v908 = vmul.f32 %v652, 0.1
      %v909 = vmul.f32 %v653, 0.1
      %v910 = vmul.f32 %v654, 0.1
      %v911 = vmul.f32 %v655, 0.1
      %v912 = vmul.f32 %v656, 0.1
      %v913 = vmul.f32 %v657, 0.1
      %v914 = vmul.f32 %v658, 0.1
      %v915 = vmul.f32 %v659, 0.1
      %v916 = vmul.f32 %v660, 0.1
      %v917 = vmul.f32 %v661, 0.1
      %v918 = vmul.f32 %v662, 0.1
      %v919 = vmul.f32 %v663, 0.1
      %v920 = vmul.f32 %v664, 0.1
      %v921 = vmul.f32 %v665, 0.1
      %v922 = vmul.f32 %v666, 0.1
      %v923 = vmul.f32 %v667, 0.1
      %v924 = vmul.f32 %v668, 0.1
      %v925 = vmul.f32 %v669, 0.1
      %v926 = vmul.f32 %v670, 0.1
      %v927 = vmul.f32 %v671, 0.1
      %v928 = vmul.f32 %v672, 0.1
      %v929 = vmul.f32 %v673, 0.1
      %v930 = vmul.f32 %v674, 0.1
      %v931 = vmul.f32 %v675, 0.1
      %v932 = vmul.f32 %v676, 0.1
      %v933 = vmul.f32 %v677, 0.1
      %v934 = vmul.f32 %v678, 0.1
      %v935 = vmul.f32 %v679, 0.1
      %v936 = vmul.f32 %v680, 0.1
      %v937 = vmul.f32 %v681, 0.1
      %v938 = vmul.f32 %v682, 0.1
      %v939 = vmul.f32 %v683, 0.1
      %v940 = vmul.f32 %v684, 0.1
      %v941 = vmul.f32 %v685, 0.1
      %v942 = vmul.f32 %v686, 0.1
      %v943 = vmul.f32 %v687, 0.1
      %v944 = vmul.f32 %v688, 0.1
      %v945 = vmul.f32 %v689, 0.1
      %v946 = vmul.f32 %v690, 0.1
      %v947 = vmul.f32 %v691, 0.1
      %v948 = vmul.f32 %v692, 0.1
      %v949 = vmul.f32 %v693, 0.1
      %v950 = vmul.f32 %v694, 0.1
      %v951 = vmul.f32 %v695, 0.1
      %v952 = vmul.f32 %v696, 0.1
      %v953 = vmul.f32 %v697, 0.1
      %v954 = vmul.f32 %v698, 0.1
      %v955 = vmul.f32 %v699, 0.1
      %v956 = vmul.f32 %v700, 0.1
      %v957 = vmul.f32 %v701, 0.1
      %v958 = vmul.f32 %v702, 0.1
      %v959 = vmul.f32 %v703, 0.1
      %v960 = vmul.f32 %v704, 0.1
      %v961 = vmul.f32 %v705, 0.1
      %v962 = vmul.f32 %v706, 0.1
      %v963 = vmul.f32 %v707, 0.1
      %v964 = vmul.f32 %v708, 0.1
      %v965 = vmul.f32 %v709, 0.1
      %v966 = vmul.f32 %v710, 0.1
      %v967 = vmul.f32 %v711, 0.1
      %v968 = vmul.f32 %v712, 0.1
      %v969 = vmul.f32 %v713, 0.1
      %v970 = vmul.f32 %v714, 0.1
      %v971 = vmul.f32 %v715, 0.1
      %v972 = vmul.f32 %v716, 0.1
      %v973 = vmul.f32 %v717, 0.1
      %v974 = vmul.f32 %v718, 0.1
      %v975 = vmul.f32 %v719, 0.1
      %v976 = vmul.f32 %v720, 0.1
      %v977 = vmul.f32 %v721, 0.1
      %v978 = vmul.f32 %v722, 0.1
      %v979 = vmul.f32 %v723, 0.1
      %v980 = vmul.f32 %v724, 0.1
      %v981 = vmul.f32 %v725, 0.1
      %v982 = vmul.f32 %v726, 0.1
      %v983 = vmul.f32 %v727, 0.1
      %v984 = vmul.f32 %v728, 0.1
      %v985 = vmul.f32 %v729, 0.1
      %v986 = vmul.f32 %v730, 0.1
      %v987 = vmul.f32 %v731, 0.1
      %v988 = vmul.f32 %v732, 0.1
      %v989 = vmul.f32 %v733, 0.1
      %v990 = vmul.f32 %v734, 0.1
      %v991 = vmul.f32 %v735, 0.1
      %v992 = vmul.f32 %v736, 0.1
      %v993 = vmul.f32 %v737, 0.1
      %v994 = vmul.f32 %v738, 0.1
      %v995 = vmul.f32 %v739, 0.1
      %v996 = vmul.f32 %v740, 0.1
      %v997 = vmul.f32 %v741, 0.1
      %v998 = vmul.f32 %v742, 0.1
      %v999 = vmul.f32 %v743, 0.1
      %v1000 = vmul.f32 %v744, 0.1
      %v1001 = vmul.f32 %v745, 0.1
      %v1002 = vmul.f32 %v746, 0.1
      %v1003 = vmul.f32 %v747, 0.1
      %v1004 = vmul.f32 %v748, 0.1
      %v1005 = vmul.f32 %v749, 0.1
      %v1006 = vmul.f32 %v750, 0.1
      %v1007 = vmul.f32 %v751, 0.1
      %v1008 = vmul.f32 %v752, 0.1
      %v1009 = vsel %vm753, %v625, %v881
      %v1010 = vsel %vm754, %v626, %v882
      %v1011 = vsel %vm755, %v627, %v883
      %v1012 = vsel %vm756, %v628, %v884
      %v1013 = vsel %vm757, %v629, %v885
      %v1014 = vsel %vm758, %v630, %v886
      %v1015 = vsel %vm759, %v631, %v887
      %v1016 = vsel %vm760, %v632, %v888
      %v1017 = vsel %vm761, %v633, %v889
      %v1018 = vsel %vm762, %v634, %v890
      %v1019 = vsel %vm763, %v635, %v891
      %v1020 = vsel %vm764, %v636, %v892
      %v1021 = vsel %vm765, %v637, %v893
      %v1022 = vsel %vm766, %v638, %v894
      %v1023 = vsel %vm767, %v639, %v895
      %v1024 = vsel %vm768, %v640, %v896
      %v1025 = vsel %vm769, %v641, %v897
      %v1026 = vsel %vm770, %v642, %v898
      %v1027 = vsel %vm771, %v643, %v899
      %v1028 = vsel %vm772, %v644, %v900
      %v1029 = vsel %vm773, %v645, %v901
      %v1030 = vsel %vm774, %v646, %v902
      %v1031 = vsel %vm775, %v647, %v903
      %v1032 = vsel %vm776, %v648, %v904
      %v1033 = vsel %vm777, %v649, %v905
      %v1034 = vsel %vm778, %v650, %v906
      %v1035 = vsel %vm779, %v651, %v907
      %v1036 = vsel %vm780, %v652, %v908
      %v1037 = vsel %vm781, %v653, %v909
      %v1038 = vsel %vm782, %v654, %v910
      %v1039 = vsel %vm783, %v655, %v911
      %v1040 = vsel %vm784, %v656, %v912
      %v1041 = vsel %vm785, %v657, %v913
      %v1042 = vsel %vm786, %v658, %v914
      %v1043 = vsel %vm787, %v659, %v915
      %v1044 = vsel %vm788, %v660, %v916
      %v1045 = vsel %vm789, %v661, %v917
      %v1046 = vsel %vm790, %v662, %v918
      %v1047 = vsel %vm791, %v663, %v919
      %v1048 = vsel %vm792, %v664, %v920
      %v1049 = vsel %vm793, %v665, %v921
      %v1050 = vsel %vm794, %v666, %v922
      %v1051 = vsel %vm795, %v667, %v923
      %v1052 = vsel %vm796, %v668, %v924
      %v1053 = vsel %vm797, %v669, %v925
      %v1054 = vsel %vm798, %v670, %v926
      %v1055 = vsel %vm799, %v671, %v927
      %v1056 = vsel %vm800, %v672, %v928
      %v1057 = vsel %vm801, %v673, %v929
      %v1058 = vsel %vm802, %v674, %v930
      %v1059 = vsel %vm803, %v675, %v931
      %v1060 = vsel %vm804, %v676, %v932
      %v1061 = vsel %vm805, %v677, %v933
      %v1062 = vsel %vm806, %v678, %v934
      %v1063 = vsel %vm807, %v679, %v935
      %v1064 = vsel %vm808, %v680, %v936
      %v1065 = vsel %vm809, %v681, %v937
      %v1066 = vsel %vm810, %v682, %v938
      %v1067 = vsel %vm811, %v683, %v939
      %v1068 = vsel %vm812, %v684, %v940
      %v1069 = vsel %vm813, %v685, %v941
      %v1070 = vsel %vm814, %v686, %v942
      %v1071 = vsel %vm815, %v687, %v943
      %v1072 = vsel %vm816, %v688, %v944
      %v1073 = vsel %vm817, %v689, %v945
      %v1074 = vsel %vm818, %v690, %v946
      %v1075 = vsel %vm819, %v691, %v947
      %v1076 = vsel %vm820, %v692, %v948
      %v1077 = vsel %vm821, %v693, %v949
      %v1078 = vsel %vm822, %v694, %v950
      %v1079 = vsel %vm823, %v695, %v951
      %v1080 = vsel %vm824, %v696, %v952
      %v1081 = vsel %vm825, %v697, %v953
      %v1082 = vsel %vm826, %v698, %v954
      %v1083 = vsel %vm827, %v699, %v955
      %v1084 = vsel %vm828, %v700, %v956
      %v1085 = vsel %vm829, %v701, %v957
      %v1086 = vsel %vm830, %v702, %v958
      %v1087 = vsel %vm831, %v703, %v959
      %v1088 = vsel %vm832, %v704, %v960
      %v1089 = vsel %vm833, %v705, %v961
      %v1090 = vsel %vm834, %v706, %v962
      %v1091 = vsel %vm835, %v707, %v963
      %v1092 = vsel %vm836, %v708, %v964
      %v1093 = vsel %vm837, %v709, %v965
      %v1094 = vsel %vm838, %v710, %v966
      %v1095 = vsel %vm839, %v711, %v967
      %v1096 = vsel %vm840, %v712, %v968
      %v1097 = vsel %vm841, %v713, %v969
      %v1098 = vsel %vm842, %v714, %v970
      %v1099 = vsel %vm843, %v715, %v971
      %v1100 = vsel %vm844, %v716, %v972
      %v1101 = vsel %vm845, %v717, %v973
      %v1102 = vsel %vm846, %v718, %v974
      %v1103 = vsel %vm847, %v719, %v975
      %v1104 = vsel %vm848, %v720, %v976
      %v1105 = vsel %vm849, %v721, %v977
      %v1106 = vsel %vm850, %v722, %v978
      %v1107 = vsel %vm851, %v723, %v979
      %v1108 = vsel %vm852, %v724, %v980
      %v1109 = vsel %vm853, %v725, %v981
      %v1110 = vsel %vm854, %v726, %v982
      %v1111 = vsel %vm855, %v727, %v983
      %v1112 = vsel %vm856, %v728, %v984
      %v1113 = vsel %vm857, %v729, %v985
      %v1114 = vsel %vm858, %v730, %v986
      %v1115 = vsel %vm859, %v731, %v987
      %v1116 = vsel %vm860, %v732, %v988
      %v1117 = vsel %vm861, %v733, %v989
      %v1118 = vsel %vm862, %v734, %v990
      %v1119 = vsel %vm863, %v735, %v991
      %v1120 = vsel %vm864, %v736, %v992
      %v1121 = vsel %vm865, %v737, %v993
      %v1122 = vsel %vm866, %v738, %v994
      %v1123 = vsel %vm867, %v739, %v995
      %v1124 = vsel %vm868, %v740, %v996
      %v1125 = vsel %vm869, %v741, %v997
      %v1126 = vsel %vm870, %v742, %v998
      %v1127 = vsel %vm871, %v743, %v999
      %v1128 = vsel %vm872, %v744, %v1000
      %v1129 = vsel %vm873, %v745, %v1001
      %v1130 = vsel %vm874, %v746, %v1002
      %v1131 = vsel %vm875, %v747, %v1003
      %v1132 = vsel %vm876, %v748, %v1004
      %v1133 = vsel %vm877, %v749, %v1005
      %v1134 = vsel %vm878, %v750, %v1006
      %v1135 = vsel %vm879, %v751, %v1007
      %v1136 = vsel %vm880, %v752, %v1008
      %v1137 = vpack.c.bf16 %v1009, %v1009
      %v1138 = vpack.c.bf16 %v1010, %v1010
      %v1139 = vpack.c.bf16 %v1011, %v1011
      %v1140 = vpack.c.bf16 %v1012, %v1012
      %v1141 = vpack.c.bf16 %v1013, %v1013
      %v1142 = vpack.c.bf16 %v1014, %v1014
      %v1143 = vpack.c.bf16 %v1015, %v1015
      %v1144 = vpack.c.bf16 %v1016, %v1016
      %v1145 = vpack.c.bf16 %v1017, %v1017
      %v1146 = vpack.c.bf16 %v1018, %v1018
      %v1147 = vpack.c.bf16 %v1019, %v1019
      %v1148 = vpack.c.bf16 %v1020, %v1020
      %v1149 = vpack.c.bf16 %v1021, %v1021
      %v1150 = vpack.c.bf16 %v1022, %v1022
      %v1151 = vpack.c.bf16 %v1023, %v1023
      %v1152 = vpack.c.bf16 %v1024, %v1024
      %v1153 = vpack.c.bf16 %v1025, %v1025
      %v1154 = vpack.c.bf16 %v1026, %v1026
      %v1155 = vpack.c.bf16 %v1027, %v1027
      %v1156 = vpack.c.bf16 %v1028, %v1028
      %v1157 = vpack.c.bf16 %v1029, %v1029
      %v1158 = vpack.c.bf16 %v1030, %v1030
      %v1159 = vpack.c.bf16 %v1031, %v1031
      %v1160 = vpack.c.bf16 %v1032, %v1032
      %v1161 = vpack.c.bf16 %v1033, %v1033
      %v1162 = vpack.c.bf16 %v1034, %v1034
      %v1163 = vpack.c.bf16 %v1035, %v1035
      %v1164 = vpack.c.bf16 %v1036, %v1036
      %v1165 = vpack.c.bf16 %v1037, %v1037
      %v1166 = vpack.c.bf16 %v1038, %v1038
      %v1167 = vpack.c.bf16 %v1039, %v1039
      %v1168 = vpack.c.bf16 %v1040, %v1040
      %v1169 = vpack.c.bf16 %v1041, %v1041
      %v1170 = vpack.c.bf16 %v1042, %v1042
      %v1171 = vpack.c.bf16 %v1043, %v1043
      %v1172 = vpack.c.bf16 %v1044, %v1044
      %v1173 = vpack.c.bf16 %v1045, %v1045
      %v1174 = vpack.c.bf16 %v1046, %v1046
      %v1175 = vpack.c.bf16 %v1047, %v1047
      %v1176 = vpack.c.bf16 %v1048, %v1048
      %v1177 = vpack.c.bf16 %v1049, %v1049
      %v1178 = vpack.c.bf16 %v1050, %v1050
      %v1179 = vpack.c.bf16 %v1051, %v1051
      %v1180 = vpack.c.bf16 %v1052, %v1052
      %v1181 = vpack.c.bf16 %v1053, %v1053
      %v1182 = vpack.c.bf16 %v1054, %v1054
      %v1183 = vpack.c.bf16 %v1055, %v1055
      %v1184 = vpack.c.bf16 %v1056, %v1056
      %v1185 = vpack.c.bf16 %v1057, %v1057
      %v1186 = vpack.c.bf16 %v1058, %v1058
      %v1187 = vpack.c.bf16 %v1059, %v1059
      %v1188 = vpack.c.bf16 %v1060, %v1060
      %v1189 = vpack.c.bf16 %v1061, %v1061
      %v1190 = vpack.c.bf16 %v1062, %v1062
      %v1191 = vpack.c.bf16 %v1063, %v1063
      %v1192 = vpack.c.bf16 %v1064, %v1064
      %v1193 = vpack.c.bf16 %v1065, %v1065
      %v1194 = vpack.c.bf16 %v1066, %v1066
      %v1195 = vpack.c.bf16 %v1067, %v1067
      %v1196 = vpack.c.bf16 %v1068, %v1068
      %v1197 = vpack.c.bf16 %v1069, %v1069
      %v1198 = vpack.c.bf16 %v1070, %v1070
      %v1199 = vpack.c.bf16 %v1071, %v1071
      %v1200 = vpack.c.bf16 %v1072, %v1072
      %v1201 = vpack.c.bf16 %v1073, %v1073
      %v1202 = vpack.c.bf16 %v1074, %v1074
      %v1203 = vpack.c.bf16 %v1075, %v1075
      %v1204 = vpack.c.bf16 %v1076, %v1076
      %v1205 = vpack.c.bf16 %v1077, %v1077
      %v1206 = vpack.c.bf16 %v1078, %v1078
      %v1207 = vpack.c.bf16 %v1079, %v1079
      %v1208 = vpack.c.bf16 %v1080, %v1080
      %v1209 = vpack.c.bf16 %v1081, %v1081
      %v1210 = vpack.c.bf16 %v1082, %v1082
      %v1211 = vpack.c.bf16 %v1083, %v1083
      %v1212 = vpack.c.bf16 %v1084, %v1084
      %v1213 = vpack.c.bf16 %v1085, %v1085
      %v1214 = vpack.c.bf16 %v1086, %v1086
      %v1215 = vpack.c.bf16 %v1087, %v1087
      %v1216 = vpack.c.bf16 %v1088, %v1088
      %v1217 = vpack.c.bf16 %v1089, %v1089
      %v1218 = vpack.c.bf16 %v1090, %v1090
      %v1219 = vpack.c.bf16 %v1091, %v1091
      %v1220 = vpack.c.bf16 %v1092, %v1092
      %v1221 = vpack.c.bf16 %v1093, %v1093
      %v1222 = vpack.c.bf16 %v1094, %v1094
      %v1223 = vpack.c.bf16 %v1095, %v1095
      %v1224 = vpack.c.bf16 %v1096, %v1096
      %v1225 = vpack.c.bf16 %v1097, %v1097
      %v1226 = vpack.c.bf16 %v1098, %v1098
      %v1227 = vpack.c.bf16 %v1099, %v1099
      %v1228 = vpack.c.bf16 %v1100, %v1100
      %v1229 = vpack.c.bf16 %v1101, %v1101
      %v1230 = vpack.c.bf16 %v1102, %v1102
      %v1231 = vpack.c.bf16 %v1103, %v1103
      %v1232 = vpack.c.bf16 %v1104, %v1104
      %v1233 = vpack.c.bf16 %v1105, %v1105
      %v1234 = vpack.c.bf16 %v1106, %v1106
      %v1235 = vpack.c.bf16 %v1107, %v1107
      %v1236 = vpack.c.bf16 %v1108, %v1108
      %v1237 = vpack.c.bf16 %v1109, %v1109
      %v1238 = vpack.c.bf16 %v1110, %v1110
      %v1239 = vpack.c.bf16 %v1111, %v1111
      %v1240 = vpack.c.bf16 %v1112, %v1112
      %v1241 = vpack.c.bf16 %v1113, %v1113
      %v1242 = vpack.c.bf16 %v1114, %v1114
      %v1243 = vpack.c.bf16 %v1115, %v1115
      %v1244 = vpack.c.bf16 %v1116, %v1116
      %v1245 = vpack.c.bf16 %v1117, %v1117
      %v1246 = vpack.c.bf16 %v1118, %v1118
      %v1247 = vpack.c.bf16 %v1119, %v1119
      %v1248 = vpack.c.bf16 %v1120, %v1120
      %v1249 = vpack.c.bf16 %v1121, %v1121
      %v1250 = vpack.c.bf16 %v1122, %v1122
      %v1251 = vpack.c.bf16 %v1123, %v1123
      %v1252 = vpack.c.bf16 %v1124, %v1124
      %v1253 = vpack.c.bf16 %v1125, %v1125
      %v1254 = vpack.c.bf16 %v1126, %v1126
      %v1255 = vpack.c.bf16 %v1127, %v1127
      %v1256 = vpack.c.bf16 %v1128, %v1128
      %v1257 = vpack.c.bf16 %v1129, %v1129
      %v1258 = vpack.c.bf16 %v1130, %v1130
      %v1259 = vpack.c.bf16 %v1131, %v1131
      %v1260 = vpack.c.bf16 %v1132, %v1132
      %v1261 = vpack.c.bf16 %v1133, %v1133
      %v1262 = vpack.c.bf16 %v1134, %v1134
      %v1263 = vpack.c.bf16 %v1135, %v1135
      %v1264 = vpack.c.bf16 %v1136, %v1136
      %vm1265 = vcmask 257024
      %1266 = vst.msk [vmem:[%s231] sm:$0xf] %vm1265, %v1137
      %1267 = vst.msk [vmem:[%s231 + $0x4] sm:$0xf] %vm1265, %v1138
      %1268 = vst.msk [vmem:[%s231 + $0x8] sm:$0xf] %vm1265, %v1139
      %1269 = vst.msk [vmem:[%s231 + $0xc] sm:$0xf] %vm1265, %v1140
      %1270 = vst.msk [vmem:[%s231 + $0x10] sm:$0xf] %vm1265, %v1141
      %1271 = vst.msk [vmem:[%s231 + $0x14] sm:$0xf] %vm1265, %v1142
      %1272 = vst.msk [vmem:[%s231 + $0x18] sm:$0xf] %vm1265, %v1143
      %1273 = vst.msk [vmem:[%s231 + $0x1c] sm:$0xf] %vm1265, %v1144
      %1274 = vst.msk [vmem:[%s231 + $0x20] sm:$0xf] %vm1265, %v1145
      %1275 = vst.msk [vmem:[%s231 + $0x24] sm:$0xf] %vm1265, %v1146
      %1276 = vst.msk [vmem:[%s231 + $0x28] sm:$0xf] %vm1265, %v1147
      %1277 = vst.msk [vmem:[%s231 + $0x2c] sm:$0xf] %vm1265, %v1148
      %1278 = vst.msk [vmem:[%s231 + $0x30] sm:$0xf] %vm1265, %v1149
      %1279 = vst.msk [vmem:[%s231 + $0x34] sm:$0xf] %vm1265, %v1150
      %1280 = vst.msk [vmem:[%s231 + $0x38] sm:$0xf] %vm1265, %v1151
      %1281 = vst.msk [vmem:[%s231 + $0x3c] sm:$0xf] %vm1265, %v1152
      %1282 = vst.msk [vmem:[%s231 + $0x40] sm:$0xf] %vm1265, %v1153
      %1283 = vst.msk [vmem:[%s231 + $0x44] sm:$0xf] %vm1265, %v1154
      %1284 = vst.msk [vmem:[%s231 + $0x48] sm:$0xf] %vm1265, %v1155
      %1285 = vst.msk [vmem:[%s231 + $0x4c] sm:$0xf] %vm1265, %v1156
      %1286 = vst.msk [vmem:[%s231 + $0x50] sm:$0xf] %vm1265, %v1157
      %1287 = vst.msk [vmem:[%s231 + $0x54] sm:$0xf] %vm1265, %v1158
      %1288 = vst.msk [vmem:[%s231 + $0x58] sm:$0xf] %vm1265, %v1159
      %1289 = vst.msk [vmem:[%s231 + $0x5c] sm:$0xf] %vm1265, %v1160
      %1290 = vst.msk [vmem:[%s231 + $0x60] sm:$0xf] %vm1265, %v1161
      %1291 = vst.msk [vmem:[%s231 + $0x64] sm:$0xf] %vm1265, %v1162
      %1292 = vst.msk [vmem:[%s231 + $0x68] sm:$0xf] %vm1265, %v1163
      %1293 = vst.msk [vmem:[%s231 + $0x6c] sm:$0xf] %vm1265, %v1164
      %1294 = vst.msk [vmem:[%s231 + $0x70] sm:$0xf] %vm1265, %v1165
      %1295 = vst.msk [vmem:[%s231 + $0x74] sm:$0xf] %vm1265, %v1166
      %1296 = vst.msk [vmem:[%s231 + $0x78] sm:$0xf] %vm1265, %v1167
      %1297 = vst.msk [vmem:[%s231 + $0x7c] sm:$0xf] %vm1265, %v1168
      %1298 = vst.msk [vmem:[%s231 + $0x80] sm:$0xf] %vm1265, %v1169
      %1299 = vst.msk [vmem:[%s231 + $0x84] sm:$0xf] %vm1265, %v1170
      %1300 = vst.msk [vmem:[%s231 + $0x88] sm:$0xf] %vm1265, %v1171
      %1301 = vst.msk [vmem:[%s231 + $0x8c] sm:$0xf] %vm1265, %v1172
      %1302 = vst.msk [vmem:[%s231 + $0x90] sm:$0xf] %vm1265, %v1173
      %1303 = vst.msk [vmem:[%s231 + $0x94] sm:$0xf] %vm1265, %v1174
      %1304 = vst.msk [vmem:[%s231 + $0x98] sm:$0xf] %vm1265, %v1175
      %1305 = vst.msk [vmem:[%s231 + $0x9c] sm:$0xf] %vm1265, %v1176
      %1306 = vst.msk [vmem:[%s231 + $0xa0] sm:$0xf] %vm1265, %v1177
      %1307 = vst.msk [vmem:[%s231 + $0xa4] sm:$0xf] %vm1265, %v1178
      %1308 = vst.msk [vmem:[%s231 + $0xa8] sm:$0xf] %vm1265, %v1179
      %1309 = vst.msk [vmem:[%s231 + $0xac] sm:$0xf] %vm1265, %v1180
      %1310 = vst.msk [vmem:[%s231 + $0xb0] sm:$0xf] %vm1265, %v1181
      %1311 = vst.msk [vmem:[%s231 + $0xb4] sm:$0xf] %vm1265, %v1182
      %1312 = vst.msk [vmem:[%s231 + $0xb8] sm:$0xf] %vm1265, %v1183
      %1313 = vst.msk [vmem:[%s231 + $0xbc] sm:$0xf] %vm1265, %v1184
      %1314 = vst.msk [vmem:[%s231 + $0xc0] sm:$0xf] %vm1265, %v1185
      %1315 = vst.msk [vmem:[%s231 + $0xc4] sm:$0xf] %vm1265, %v1186
      %1316 = vst.msk [vmem:[%s231 + $0xc8] sm:$0xf] %vm1265, %v1187
      %1317 = vst.msk [vmem:[%s231 + $0xcc] sm:$0xf] %vm1265, %v1188
      %1318 = vst.msk [vmem:[%s231 + $0xd0] sm:$0xf] %vm1265, %v1189
      %1319 = vst.msk [vmem:[%s231 + $0xd4] sm:$0xf] %vm1265, %v1190
      %1320 = vst.msk [vmem:[%s231 + $0xd8] sm:$0xf] %vm1265, %v1191
      %1321 = vst.msk [vmem:[%s231 + $0xdc] sm:$0xf] %vm1265, %v1192
      %1322 = vst.msk [vmem:[%s231 + $0xe0] sm:$0xf] %vm1265, %v1193
      %1323 = vst.msk [vmem:[%s231 + $0xe4] sm:$0xf] %vm1265, %v1194
      %1324 = vst.msk [vmem:[%s231 + $0xe8] sm:$0xf] %vm1265, %v1195
      %1325 = vst.msk [vmem:[%s231 + $0xec] sm:$0xf] %vm1265, %v1196
      %1326 = vst.msk [vmem:[%s231 + $0xf0] sm:$0xf] %vm1265, %v1197
      %1327 = vst.msk [vmem:[%s231 + $0xf4] sm:$0xf] %vm1265, %v1198
      %1328 = vst.msk [vmem:[%s231 + $0xf8] sm:$0xf] %vm1265, %v1199
      %1329 = vst.msk [vmem:[%s231 + $0xfc] sm:$0xf] %vm1265, %v1200
      %1330 = vst.msk [vmem:[%s231 + $0x100] sm:$0xf] %vm1265, %v1201
      %1331 = vst.msk [vmem:[%s231 + $0x104] sm:$0xf] %vm1265, %v1202
      %1332 = vst.msk [vmem:[%s231 + $0x108] sm:$0xf] %vm1265, %v1203
      %1333 = vst.msk [vmem:[%s231 + $0x10c] sm:$0xf] %vm1265, %v1204
      %1334 = vst.msk [vmem:[%s231 + $0x110] sm:$0xf] %vm1265, %v1205
      %1335 = vst.msk [vmem:[%s231 + $0x114] sm:$0xf] %vm1265, %v1206
      %1336 = vst.msk [vmem:[%s231 + $0x118] sm:$0xf] %vm1265, %v1207
      %1337 = vst.msk [vmem:[%s231 + $0x11c] sm:$0xf] %vm1265, %v1208
      %1338 = vst.msk [vmem:[%s231 + $0x120] sm:$0xf] %vm1265, %v1209
      %1339 = vst.msk [vmem:[%s231 + $0x124] sm:$0xf] %vm1265, %v1210
      %1340 = vst.msk [vmem:[%s231 + $0x128] sm:$0xf] %vm1265, %v1211
      %1341 = vst.msk [vmem:[%s231 + $0x12c] sm:$0xf] %vm1265, %v1212
      %1342 = vst.msk [vmem:[%s231 + $0x130] sm:$0xf] %vm1265, %v1213
      %1343 = vst.msk [vmem:[%s231 + $0x134] sm:$0xf] %vm1265, %v1214
      %1344 = vst.msk [vmem:[%s231 + $0x138] sm:$0xf] %vm1265, %v1215
      %1345 = vst.msk [vmem:[%s231 + $0x13c] sm:$0xf] %vm1265, %v1216
      %1346 = vst.msk [vmem:[%s231 + $0x140] sm:$0xf] %vm1265, %v1217
      %1347 = vst.msk [vmem:[%s231 + $0x144] sm:$0xf] %vm1265, %v1218
      %1348 = vst.msk [vmem:[%s231 + $0x148] sm:$0xf] %vm1265, %v1219
      %1349 = vst.msk [vmem:[%s231 + $0x14c] sm:$0xf] %vm1265, %v1220
      %1350 = vst.msk [vmem:[%s231 + $0x150] sm:$0xf] %vm1265, %v1221
      %1351 = vst.msk [vmem:[%s231 + $0x154] sm:$0xf] %vm1265, %v1222
      %1352 = vst.msk [vmem:[%s231 + $0x158] sm:$0xf] %vm1265, %v1223
      %1353 = vst.msk [vmem:[%s231 + $0x15c] sm:$0xf] %vm1265, %v1224
      %1354 = vst.msk [vmem:[%s231 + $0x160] sm:$0xf] %vm1265, %v1225
      %1355 = vst.msk [vmem:[%s231 + $0x164] sm:$0xf] %vm1265, %v1226
      %1356 = vst.msk [vmem:[%s231 + $0x168] sm:$0xf] %vm1265, %v1227
      %1357 = vst.msk [vmem:[%s231 + $0x16c] sm:$0xf] %vm1265, %v1228
      %1358 = vst.msk [vmem:[%s231 + $0x170] sm:$0xf] %vm1265, %v1229
      %1359 = vst.msk [vmem:[%s231 + $0x174] sm:$0xf] %vm1265, %v1230
      %1360 = vst.msk [vmem:[%s231 + $0x178] sm:$0xf] %vm1265, %v1231
      %1361 = vst.msk [vmem:[%s231 + $0x17c] sm:$0xf] %vm1265, %v1232
      %1362 = vst.msk [vmem:[%s231 + $0x180] sm:$0xf] %vm1265, %v1233
      %1363 = vst.msk [vmem:[%s231 + $0x184] sm:$0xf] %vm1265, %v1234
      %1364 = vst.msk [vmem:[%s231 + $0x188] sm:$0xf] %vm1265, %v1235
      %1365 = vst.msk [vmem:[%s231 + $0x18c] sm:$0xf] %vm1265, %v1236
      %1366 = vst.msk [vmem:[%s231 + $0x190] sm:$0xf] %vm1265, %v1237
      %1367 = vst.msk [vmem:[%s231 + $0x194] sm:$0xf] %vm1265, %v1238
      %1368 = vst.msk [vmem:[%s231 + $0x198] sm:$0xf] %vm1265, %v1239
      %1369 = vst.msk [vmem:[%s231 + $0x19c] sm:$0xf] %vm1265, %v1240
      %1370 = vst.msk [vmem:[%s231 + $0x1a0] sm:$0xf] %vm1265, %v1241
      %1371 = vst.msk [vmem:[%s231 + $0x1a4] sm:$0xf] %vm1265, %v1242
      %1372 = vst.msk [vmem:[%s231 + $0x1a8] sm:$0xf] %vm1265, %v1243
      %1373 = vst.msk [vmem:[%s231 + $0x1ac] sm:$0xf] %vm1265, %v1244
      %1374 = vst.msk [vmem:[%s231 + $0x1b0] sm:$0xf] %vm1265, %v1245
      %1375 = vst.msk [vmem:[%s231 + $0x1b4] sm:$0xf] %vm1265, %v1246
      %1376 = vst.msk [vmem:[%s231 + $0x1b8] sm:$0xf] %vm1265, %v1247
      %1377 = vst.msk [vmem:[%s231 + $0x1bc] sm:$0xf] %vm1265, %v1248
      %1378 = vst.msk [vmem:[%s231 + $0x1c0] sm:$0xf] %vm1265, %v1249
      %1379 = vst.msk [vmem:[%s231 + $0x1c4] sm:$0xf] %vm1265, %v1250
      %1380 = vst.msk [vmem:[%s231 + $0x1c8] sm:$0xf] %vm1265, %v1251
      %1381 = vst.msk [vmem:[%s231 + $0x1cc] sm:$0xf] %vm1265, %v1252
      %1382 = vst.msk [vmem:[%s231 + $0x1d0] sm:$0xf] %vm1265, %v1253
      %1383 = vst.msk [vmem:[%s231 + $0x1d4] sm:$0xf] %vm1265, %v1254
      %1384 = vst.msk [vmem:[%s231 + $0x1d8] sm:$0xf] %vm1265, %v1255
      %1385 = vst.msk [vmem:[%s231 + $0x1dc] sm:$0xf] %vm1265, %v1256
      %1386 = vst.msk [vmem:[%s231 + $0x1e0] sm:$0xf] %vm1265, %v1257
      %1387 = vst.msk [vmem:[%s231 + $0x1e4] sm:$0xf] %vm1265, %v1258
      %1388 = vst.msk [vmem:[%s231 + $0x1e8] sm:$0xf] %vm1265, %v1259
      %1389 = vst.msk [vmem:[%s231 + $0x1ec] sm:$0xf] %vm1265, %v1260
      %1390 = vst.msk [vmem:[%s231 + $0x1f0] sm:$0xf] %vm1265, %v1261
      %1391 = vst.msk [vmem:[%s231 + $0x1f4] sm:$0xf] %vm1265, %v1262
      %1392 = vst.msk [vmem:[%s231 + $0x1f8] sm:$0xf] %vm1265, %v1263
      %1393 = vst.msk [vmem:[%s231 + $0x1fc] sm:$0xf] %vm1265, %v1264
      %s1394 = smul.u32 128, %s18
      %p1395 = scmp.lt.s32.totalorder %s1394, 1023
      %s1396 = scalar_select %p1395, %s1394, 1023
      %p1397 = scmp.lt.s32.totalorder %s19, 0
      %s1398 = scalar_select %p1397, %s19, 0
      %s1399 = sadd.s32 %s1398, %s1396
      %s1400 = smul.addr %s1399, 4
      %s1401 = scalar_lea.vmem %s3, %s1400
      // Predicated region
      $region33: #{conv_bn_leaky.3} parent=31 // pred_check
        %p1402 = pneg %p126
      $region34: #{conv_bn_leaky.3} parent=31 // pred_check_branch
        %1404 = sbr.rel (%p1402) target = $region36
      $region35: #{conv_bn_leaky.3} parent=31 // pred_region
        %s1405 = smul.u32 128, %s18
      $region36: #{conv_bn_leaky.3} parent=31 // pred_fallthru
        _
    $region32: #{conv_bn_leaky.3} parent=5 // pred_fallthru
      _
    %p1406 = scmp.le.s32.totalorder 2, %s9
    // Predicated region
    $region37: #{conv_bn_leaky.3} parent=5 // pred_check
      %p1407 = pneg %p1406
    $region38: #{conv_bn_leaky.3} parent=5 // pred_check_branch
      %1409 = sbr.rel (%p1407) target = $region40
    $region39: #{conv_bn_leaky.3} parent=5 // pred_region
      %s1410 = ssub.s32 %s9, 2
      // Predicated region
      $region41: #{conv_bn_leaky.3} parent=39 // pred_check
        %p1411 = pneg %p132
      $region42: #{conv_bn_leaky.3} parent=39 // pred_check_branch
        %1413 = sbr.rel (%p1411) target = $region44
      $region43: #{conv_bn_leaky.3} parent=39 // pred_region
        %s1414 = smul.u32 128, %s20
        %p1415 = scmp.lt.s32.totalorder %s1414, 1023
        %s1416 = scalar_select %p1415, %s1414, 1023
        %p1417 = scmp.lt.s32.totalorder %s21, 0
        %s1418 = scalar_select %p1417, %s21, 0
        %s1419 = sadd.s32 %s1418, %s1416
        %s1420 = smul.addr %s1419, 4
        %s1421 = scalar_lea.vmem %s3, %s1420
      $region44: #{conv_bn_leaky.3} parent=39 // pred_fallthru
        _
    $region40: #{conv_bn_leaky.3} parent=5 // pred_fallthru
      _
  $region6: #{conv_bn_leaky.3} parent=0 // loop_footer
    %s13 = sadd.s32 1, %s9
  $region7: #{conv_bn_leaky.3} parent=0 // loop_footer_branch
    %8 = sbr.rel target = $region3
  $region8: #{conv_bn_leaky.3} parent=0 // loop_exit
    _

</llo_original>
